<compile_context>
chip_gen: v6e
topology: v6e:2x2x1
jax: 0.10.0
libtpu: 0.0.40
codegen_flags: <defaults>
</compile_context>

<pallas_src>
import functools
import math

import jax
import jax.numpy as jnp
from jax.experimental import pallas as pl
from jax.experimental.pallas import tpu as pltpu


def _mha_flash_kernel(mask_ref, q_ref, k_ref, v_ref, w_ref, b_ref, o_ref,
                      m_sc, l_sc, acc_sc, *, heads, scale):
    """One (batch, q-tile, k-tile) grid step; all heads batched on the lead dim.

    mask_ref: (Tq, Tk) int8        q_ref: (H, Tq, Dh) bf16
    k_ref/v_ref: (H, Tk, Dh) bf16  w_ref: (H, Dh, E) bf16   b_ref: (1, E) f32
    o_ref: (Tq, E)                 m_sc/l_sc: (H, Tq, 1) f32
    acc_sc: (H, Tq, Dh) f32
    """
    j = pl.program_id(2)

    @pl.when(j == 0)
    def _init():
        m_sc[...] = jnp.full_like(m_sc, -jnp.inf)
        l_sc[...] = jnp.zeros_like(l_sc)
        acc_sc[...] = jnp.zeros_like(acc_sc)

    # Fold 1/sqrt(Dh) into q (H*Tq*Dh VPU ops instead of H*Tq*Tk).
    q = q_ref[...] * scale
    # scores (H, Tq, Tk): bf16 operands, f32 accumulation on the MXU.
    s = jnp.einsum("hqd,hkd->hqk", q, k_ref[...],
                   preferred_element_type=jnp.float32)
    # int8 mask re-read per tile (cheaper than keeping an f32 bias resident).
    s = jnp.where((mask_ref[...] != 0)[None, :, :], s, jnp.float32(-1e30))

    # Online (flash) softmax update, f32 throughout.
    m_prev = m_sc[...]
    m_new = jnp.maximum(m_prev, jnp.max(s, axis=-1, keepdims=True))
    alpha = jnp.exp(m_prev - m_new)
    p = jnp.exp(s - m_new)
    l_sc[...] = alpha * l_sc[...] + jnp.sum(p, axis=-1, keepdims=True)
    acc_sc[...] = alpha * acc_sc[...] + jnp.einsum(
        "hqk,hkd->hqd", p.astype(jnp.bfloat16), v_ref[...],
        preferred_element_type=jnp.float32)
    m_sc[...] = m_new

    @pl.when(j == pl.num_programs(2) - 1)
    def _finalize():
        # Exact EUP reciprocal (approx=False) per correctness review.
        ctx = (acc_sc[...] * pl.reciprocal(l_sc[...], approx=False)
               ).astype(jnp.bfloat16)
        # Fused fc_out: per-head (Tq, Dh) @ (Dh, E) matmuls accumulated in f32,
        # written once as a lane-dense (Tq, E) block.  Only major-dim (head)
        # indexing — no lane slices, no masked partial stores.
        acc = jnp.zeros(o_ref.shape, jnp.float32)
        for h in range(heads):
            acc = acc + jnp.dot(ctx[h], w_ref[h],
                                preferred_element_type=jnp.float32)
        o_ref[...] = (acc + b_ref[...]).astype(o_ref.dtype)


def _pick_block(total, target):
    """Largest tile <= target that is the full extent or a multiple of 128
    dividing `total` (keeps every block lane/sublane aligned)."""
    if total <= target:
        return total
    b = (target // 128) * 128
    while b >= 128:
        if total % b == 0:
            return b
        b -= 128
    return total


def _tpu_tuning():
    """Per-generation block sizes / VMEM budget (performance review)."""
    kind = ""
    try:
        kind = jax.devices()[0].device_kind.lower()
    except Exception:
        pass
    if "v5 lite" in kind or "v5e" in kind or "v5lite" in kind:
        # v5e: 4x128^2 MXU (M=128 already fills it), 128 MiB VMEM, 1 vst slot;
        # spend headroom on deeper q/mask buffering instead of bigger M tiles.
        return dict(block_q=128, block_k=512, vmem_limit=100 * 1024 * 1024,
                    stream_bufs=3)
    if "v7" in kind or "tpu7" in kind:
        # v7x: 2x256^2 MXU but only 64 MiB VMEM per TensorCore.
        return dict(block_q=256, block_k=256, vmem_limit=56 * 1024 * 1024,
                    stream_bufs=None)
    if "v6" in kind:
        # v6e: 2x256^2 MXU, 128 MiB VMEM.
        return dict(block_q=256, block_k=512, vmem_limit=100 * 1024 * 1024,
                    stream_bufs=None)
    # Unknown generation: conservative defaults.
    return dict(block_q=128, block_k=256, vmem_limit=64 * 1024 * 1024,
                stream_bufs=None)


def multi_head_attention(values, keys, query, mask, w_fc, b_fc, *, heads,
                         block_q=None, block_k=None, out_dtype=jnp.float32):
    """values/keys/query: (N, L, E); mask: (N, Lq, Lk) (nonzero = attend);
    w_fc: (E, E) torch layout (out, in); b_fc: (E,).
    Returns (N, Lq, E) in `out_dtype` (pass jnp.bfloat16 to halve output HBM
    writes when the consumer accepts it)."""
    N, Lq, E = query.shape
    Lk = keys.shape[1]
    assert values.shape[1] == Lk, "key_len must equal value_len"
    assert E % heads == 0, "embed_size must be divisible by heads"
    Dh = E // heads
    scale = 1.0 / math.sqrt(Dh)

    tuning = _tpu_tuning()
    if block_q is None:
        block_q = _pick_block(Lq, tuning["block_q"])
    if block_k is None:
        block_k = _pick_block(Lk, tuning["block_k"])
    assert Lq % block_q == 0 and Lk % block_k == 0

    # Split heads in the wrapper so every kernel tile's minor dim is the full
    # per-head Dh (lane-dense; no in-kernel lane slicing).
    def split(x):
        return (x.reshape(N, -1, heads, Dh).transpose(0, 2, 1, 3)
                .astype(jnp.bfloat16))

    q4, k4, v4 = split(query), split(keys), split(values)

    if mask is None:
        mask_i8 = jnp.ones((N, Lq, Lk), jnp.int8)
    else:
        mask_i8 = (jnp.broadcast_to(mask, (N, Lq, Lk)) != 0).astype(jnp.int8)

    # fc_out weight regrouped per head: w3[h, d, e] = W[e, h*Dh + d]
    w3 = w_fc.reshape(E, heads, Dh).transpose(1, 2, 0).astype(jnp.bfloat16)
    b2 = b_fc.reshape(1, E).astype(jnp.float32)

    kernel = functools.partial(_mha_flash_kernel, heads=heads, scale=scale)
    grid = (N, Lq // block_q, Lk // block_k)

    def run(use_pipeline_mode):
        def bs(shape, imap, bufs=None):
            if use_pipeline_mode and bufs is not None and hasattr(pl, "Buffered"):
                return pl.BlockSpec(shape, imap, pipeline_mode=pl.Buffered(bufs))
            return pl.BlockSpec(shape, imap)

        sb = tuning["stream_bufs"]
        in_specs = [
            bs((None, block_q, block_k), lambda n, i, j: (n, i, j), sb),        # mask
            bs((None, heads, block_q, Dh), lambda n, i, j: (n, 0, i, 0), sb),   # q
            pl.BlockSpec((None, heads, block_k, Dh), lambda n, i, j: (n, 0, j, 0)),  # k
            pl.BlockSpec((None, heads, block_k, Dh), lambda n, i, j: (n, 0, j, 0)),  # v
            bs((heads, Dh, E), lambda n, i, j: (0, 0, 0), 1),                   # fc_out W
            bs((1, E), lambda n, i, j: (0, 0), 1),                              # fc_out b
        ]
        return pl.pallas_call(
            kernel,
            out_shape=jax.ShapeDtypeStruct((N, Lq, E), out_dtype),
            grid=grid,
            in_specs=in_specs,
            out_specs=pl.BlockSpec((None, block_q, E), lambda n, i, j: (n, i, 0)),
            scratch_shapes=[
                pltpu.VMEM((heads, block_q, 1), jnp.float32),   # m (running max)
                pltpu.VMEM((heads, block_q, 1), jnp.float32),   # l (running sum)
                pltpu.VMEM((heads, block_q, Dh), jnp.float32),  # acc (running ctx)
            ],
            compiler_params=pltpu.CompilerParams(
                dimension_semantics=("parallel", "parallel", "arbitrary"),
                vmem_limit_bytes=tuning["vmem_limit"]),
        )(mask_i8, q4, k4, v4, w3, b2)

    try:
        return run(True)
    except Exception:
        # Fallback for jax versions without BlockSpec(pipeline_mode=...).
        return run(False)


def _reference(values, keys, query, mask, w_fc, b_fc, heads):
    """Pure-JAX f32 transcription of the PyTorch forward for verification."""
    N, Lq, E = query.shape
    Dh = E // heads

    def split(x):
        n, l, _ = x.shape
        return x.reshape(n, l, heads, Dh).transpose(2, 0, 1, 3)  # (H, N, L, Dh)

    v, k, q = split(values), split(keys), split(query)
    energy = jnp.einsum("hnqd,hnkd->hnqk", q, k)
    energy = jnp.where(mask == 0, jnp.float32(-1e20), energy)
    attn = jax.nn.softmax(energy / math.sqrt(Dh), axis=-1)
    out = jnp.einsum("hnqk,hnkd->hnqd", attn, v)
    out = out.transpose(1, 2, 0, 3).reshape(N, Lq, E)
    return out @ w_fc.T + b_fc


if __name__ == "__main__":
    N, L, E, H = 2, 8, 32, 4

    key = jax.random.PRNGKey(0)
    k0, k1, k2, k3, k4 = jax.random.split(key, 5)
    values = jax.random.normal(k0, (N, L, E), jnp.float32)
    keys_in = jax.random.normal(k1, (N, L, E), jnp.float32)
    query = jax.random.normal(k2, (N, L, E), jnp.float32)

    # causal mask per batch; 1 = attend, 0 = masked
    mask = jnp.broadcast_to(jnp.tril(jnp.ones((L, L), jnp.float32)), (N, L, L))

    # deterministic fc_out parameters (torch Linear: weight (out, in), bias (out,))
    w_fc = jax.random.normal(k3, (E, E), jnp.float32) * (1.0 / math.sqrt(E))
    b_fc = jax.random.normal(k4, (E,), jnp.float32) * 0.01

    out = multi_head_attention(values, keys_in, query, mask, w_fc, b_fc, heads=H)
    out = jax.block_until_ready(out)

    ref = _reference(values, keys_in, query, mask, w_fc, b_fc, H)
    assert out.shape == (N, L, E)
    err = float(jnp.max(jnp.abs(out - ref)))
    # bf16 matmul operands dominate the residual error (softmax & recip are f32/exact).
    assert jnp.allclose(out, ref, atol=5e-2, rtol=5e-2), f"max abs err {err}"

    print("KERNEL_OK")
</pallas_src>

<mosaic_0001>
module attributes {stable_mosaic.version = 11 : i64} {
  func.func @_mha_flash_kernel(%arg0: i32, %arg1: i32, %arg2: i32, %arg3: memref<1x8x8xi8, #tpu.memory_space<vmem>>, %arg4: memref<1x4x8x8xbf16, #tpu.memory_space<vmem>>, %arg5: memref<1x4x8x8xbf16, #tpu.memory_space<vmem>>, %arg6: memref<1x4x8x8xbf16, #tpu.memory_space<vmem>>, %arg7: memref<4x8x32xbf16, #tpu.memory_space<vmem>>, %arg8: memref<1x32xf32, #tpu.memory_space<vmem>>, %arg9: memref<1x8x32xf32, #tpu.memory_space<vmem>>, %arg10: memref<4x8x1xf32, #tpu.memory_space<vmem>>, %arg11: memref<4x8x1xf32, #tpu.memory_space<vmem>>, %arg12: memref<4x8x8xf32, #tpu.memory_space<vmem>>) attributes {dimension_semantics = [#tpu.dimension_semantics<parallel>, #tpu.dimension_semantics<parallel>, #tpu.dimension_semantics<arbitrary>], iteration_bounds = array<i64: 2, 1, 1>, scalar_prefetch = 0 : i64, scratch_operands = 3 : i64, tpu.core_type = #tpu.core_type<tc>, window_params = [{transform_indices = @transform_0, window_bounds = array<i64: 1, 8, 8>}, {transform_indices = @transform_1, window_bounds = array<i64: 1, 4, 8, 8>}, {transform_indices = @transform_2, window_bounds = array<i64: 1, 4, 8, 8>}, {transform_indices = @transform_3, window_bounds = array<i64: 1, 4, 8, 8>}, {pipeline_mode = #tpu.pipeline_mode<synchronous>, transform_indices = @transform_4, window_bounds = array<i64: 4, 8, 32>}, {pipeline_mode = #tpu.pipeline_mode<synchronous>, transform_indices = @transform_5, window_bounds = array<i64: 1, 32>}, {transform_indices = @transform_6, window_bounds = array<i64: 1, 8, 32>}]} {
    %c0_i32 = arith.constant 0 : i32
    %0 = arith.cmpi eq, %arg2, %c0_i32 : i32
    %1 = arith.extui %0 : i1 to i32
    %c0_i32_0 = arith.constant 0 : i32
    %2 = arith.cmpi ne, %1, %c0_i32_0 : i32
    scf.if %2 {
      %cst_40 = arith.constant 0xFF800000 : f32
      %47 = vector.broadcast %cst_40 : f32 to vector<4x8x1xf32>
      %c0_41 = arith.constant 0 : index
      %c0_42 = arith.constant 0 : index
      %c0_43 = arith.constant 0 : index
      %48 = vector.load %arg10[%c0_41, %c0_42, %c0_43] : memref<4x8x1xf32, #tpu.memory_space<vmem>>, vector<4x8x1xf32>
      tpu.vector_store %arg10[%c0_41, %c0_42, %c0_43], %47 {strides = array<i32>} : memref<4x8x1xf32, #tpu.memory_space<vmem>>, vector<4x8x1xf32>,
      %cst_44 = arith.constant 0.000000e+00 : f32
      %49 = vector.broadcast %cst_44 : f32 to vector<4x8x1xf32>
      %c0_45 = arith.constant 0 : index
      %c0_46 = arith.constant 0 : index
      %c0_47 = arith.constant 0 : index
      %50 = vector.load %arg11[%c0_45, %c0_46, %c0_47] : memref<4x8x1xf32, #tpu.memory_space<vmem>>, vector<4x8x1xf32>
      tpu.vector_store %arg11[%c0_45, %c0_46, %c0_47], %49 {strides = array<i32>} : memref<4x8x1xf32, #tpu.memory_space<vmem>>, vector<4x8x1xf32>,
      %cst_48 = arith.constant 0.000000e+00 : f32
      %51 = vector.broadcast %cst_48 : f32 to vector<4x8x8xf32>
      %c0_49 = arith.constant 0 : index
      %c0_50 = arith.constant 0 : index
      %c0_51 = arith.constant 0 : index
      %52 = vector.load %arg12[%c0_49, %c0_50, %c0_51] : memref<4x8x8xf32, #tpu.memory_space<vmem>>, vector<4x8x8xf32>
      tpu.vector_store %arg12[%c0_49, %c0_50, %c0_51], %51 {strides = array<i32>} : memref<4x8x8xf32, #tpu.memory_space<vmem>>, vector<4x8x8xf32>,
    } else {
    }
    %c0 = arith.constant 0 : index
    %c0_1 = arith.constant 0 : index
    %c0_2 = arith.constant 0 : index
    %c0_3 = arith.constant 0 : index
    %3 = vector.load %arg4[%c0, %c0_1, %c0_2, %c0_3] : memref<1x4x8x8xbf16, #tpu.memory_space<vmem>>, vector<1x4x8x8xbf16>
    %4 = vector.shape_cast %3 : vector<1x4x8x8xbf16> to vector<4x8x8xbf16>
    %cst = arith.constant 3.535160e-01 : bf16
    %5 = vector.broadcast %cst : bf16 to vector<4x8x8xbf16>
    %6 = arith.mulf %4, %5 : vector<4x8x8xbf16>
    %c0_4 = arith.constant 0 : index
    %c0_5 = arith.constant 0 : index
    %c0_6 = arith.constant 0 : index
    %c0_7 = arith.constant 0 : index
    %7 = vector.load %arg5[%c0_4, %c0_5, %c0_6, %c0_7] : memref<1x4x8x8xbf16, #tpu.memory_space<vmem>>, vector<1x4x8x8xbf16>
    %8 = vector.shape_cast %7 : vector<1x4x8x8xbf16> to vector<4x8x8xbf16>
    "tpu.trace_start"() <{level = 10 : i32, message = "hqd,hkd->hqk"}> : () -> ()
    %cst_8 = arith.constant dense<0.000000e+00> : vector<4x8x8xf32>
    %9 = tpu.matmul %6, %8, %cst_8 {dimension_numbers = #tpu.dot_dimension_numbers<[2], [2], [1], [1], [0, 0, 0, 1, 1, 1], [0], [0]>} : vector<4x8x8xbf16>, vector<4x8x8xbf16>, vector<4x8x8xf32> -> vector<4x8x8xf32>
    "tpu.trace_stop"() : () -> ()
    %c0_9 = arith.constant 0 : index
    %c0_10 = arith.constant 0 : index
    %c0_11 = arith.constant 0 : index
    %10 = vector.load %arg3[%c0_9, %c0_10, %c0_11] : memref<1x8x8xi8, #tpu.memory_space<vmem>>, vector<1x8x8xi8>
    %11 = vector.shape_cast %10 : vector<1x8x8xi8> to vector<8x8xi8>
    %c0_i8 = arith.constant 0 : i8
    %12 = vector.broadcast %c0_i8 : i8 to vector<8x8xi8>
    %13 = arith.cmpi ne, %11, %12 : vector<8x8xi8>
    %14 = vector.shape_cast %13 : vector<8x8xi1> to vector<1x8x8xi1>
    %cst_12 = arith.constant -1.000000e+30 : f32
    %15 = vector.shape_cast %14 : vector<1x8x8xi1> to vector<1x8x8xi1>
    %16 = vector.broadcast %15 : vector<1x8x8xi1> to vector<4x8x8xi1>
    %17 = vector.broadcast %cst_12 : f32 to vector<4x8x8xf32>
    %18 = arith.select %16, %9, %17 : vector<4x8x8xi1>, vector<4x8x8xf32>
    %c0_13 = arith.constant 0 : index
    %c0_14 = arith.constant 0 : index
    %c0_15 = arith.constant 0 : index
    %19 = vector.load %arg10[%c0_13, %c0_14, %c0_15] : memref<4x8x1xf32, #tpu.memory_space<vmem>>, vector<4x8x1xf32>
    %cst_16 = arith.constant dense<0xFF800000> : vector<4x8xf32>
    %20 = vector.multi_reduction <maximumf>, %18, %cst_16 [2] : vector<4x8x8xf32> to vector<4x8xf32>
    %21 = vector.shape_cast %20 : vector<4x8xf32> to vector<4x8x1xf32>
    %22 = arith.maximumf %19, %21 : vector<4x8x1xf32>
    %23 = arith.subf %19, %22 : vector<4x8x1xf32>
    %24 = math.exp %23 : vector<4x8x1xf32>
    %25 = vector.broadcast %22 : vector<4x8x1xf32> to vector<4x8x8xf32>
    %26 = arith.subf %18, %25 : vector<4x8x8xf32>
    %27 = math.exp %26 : vector<4x8x8xf32>
    %c0_17 = arith.constant 0 : index
    %c0_18 = arith.constant 0 : index
    %c0_19 = arith.constant 0 : index
    %28 = vector.load %arg11[%c0_17, %c0_18, %c0_19] : memref<4x8x1xf32, #tpu.memory_space<vmem>>, vector<4x8x1xf32>
    %29 = arith.mulf %24, %28 : vector<4x8x1xf32>
    %cst_20 = arith.constant dense<0.000000e+00> : vector<4x8xf32>
    %30 = vector.multi_reduction <add>, %27, %cst_20 [2] : vector<4x8x8xf32> to vector<4x8xf32>
    %31 = vector.shape_cast %30 : vector<4x8xf32> to vector<4x8x1xf32>
    %32 = arith.addf %29, %31 : vector<4x8x1xf32>
    %c0_21 = arith.constant 0 : index
    %c0_22 = arith.constant 0 : index
    %c0_23 = arith.constant 0 : index
    %33 = vector.load %arg11[%c0_21, %c0_22, %c0_23] : memref<4x8x1xf32, #tpu.memory_space<vmem>>, vector<4x8x1xf32>
    tpu.vector_store %arg11[%c0_21, %c0_22, %c0_23], %32 {strides = array<i32>} : memref<4x8x1xf32, #tpu.memory_space<vmem>>, vector<4x8x1xf32>,
    %c0_24 = arith.constant 0 : index
    %c0_25 = arith.constant 0 : index
    %c0_26 = arith.constant 0 : index
    %34 = vector.load %arg12[%c0_24, %c0_25, %c0_26] : memref<4x8x8xf32, #tpu.memory_space<vmem>>, vector<4x8x8xf32>
    %35 = vector.broadcast %24 : vector<4x8x1xf32> to vector<4x8x8xf32>
    %36 = arith.mulf %35, %34 : vector<4x8x8xf32>
    %37 = arith.truncf %27 : vector<4x8x8xf32> to vector<4x8x8xbf16>
    %c0_27 = arith.constant 0 : index
    %c0_28 = arith.constant 0 : index
    %c0_29 = arith.constant 0 : index
    %c0_30 = arith.constant 0 : index
    %38 = vector.load %arg6[%c0_27, %c0_28, %c0_29, %c0_30] : memref<1x4x8x8xbf16, #tpu.memory_space<vmem>>, vector<1x4x8x8xbf16>
    %39 = vector.shape_cast %38 : vector<1x4x8x8xbf16> to vector<4x8x8xbf16>
    "tpu.trace_start"() <{level = 10 : i32, message = "hqk,hkd->hqd"}> : () -> ()
    %cst_31 = arith.constant dense<0.000000e+00> : vector<4x8x8xf32>
    %40 = tpu.matmul %37, %39, %cst_31 {dimension_numbers = #tpu.dot_dimension_numbers<[2], [1], [1], [2], [0, 0, 0, 1, 1, 2], [0], [0]>} : vector<4x8x8xbf16>, vector<4x8x8xbf16>, vector<4x8x8xf32> -> vector<4x8x8xf32>
    "tpu.trace_stop"() : () -> ()
    %41 = arith.addf %36, %40 : vector<4x8x8xf32>
    %c0_32 = arith.constant 0 : index
    %c0_33 = arith.constant 0 : index
    %c0_34 = arith.constant 0 : index
    %42 = vector.load %arg12[%c0_32, %c0_33, %c0_34] : memref<4x8x8xf32, #tpu.memory_space<vmem>>, vector<4x8x8xf32>
    tpu.vector_store %arg12[%c0_32, %c0_33, %c0_34], %41 {strides = array<i32>} : memref<4x8x8xf32, #tpu.memory_space<vmem>>, vector<4x8x8xf32>,
    %c0_35 = arith.constant 0 : index
    %c0_36 = arith.constant 0 : index
    %c0_37 = arith.constant 0 : index
    %43 = vector.load %arg10[%c0_35, %c0_36, %c0_37] : memref<4x8x1xf32, #tpu.memory_space<vmem>>, vector<4x8x1xf32>
    tpu.vector_store %arg10[%c0_35, %c0_36, %c0_37], %22 {strides = array<i32>} : memref<4x8x1xf32, #tpu.memory_space<vmem>>, vector<4x8x1xf32>,
    %c0_i32_38 = arith.constant 0 : i32
    %44 = arith.cmpi eq, %arg2, %c0_i32_38 : i32
    %45 = arith.extui %44 : i1 to i32
    %c0_i32_39 = arith.constant 0 : i32
    %46 = arith.cmpi ne, %45, %c0_i32_39 : i32
    scf.if %46 {
      %c0_40 = arith.constant 0 : index
      %c0_41 = arith.constant 0 : index
      %c0_42 = arith.constant 0 : index
      %47 = vector.load %arg12[%c0_40, %c0_41, %c0_42] : memref<4x8x8xf32, #tpu.memory_space<vmem>>, vector<4x8x8xf32>
      %c0_43 = arith.constant 0 : index
      %c0_44 = arith.constant 0 : index
      %c0_45 = arith.constant 0 : index
      %48 = vector.load %arg11[%c0_43, %c0_44, %c0_45] : memref<4x8x1xf32, #tpu.memory_space<vmem>>, vector<4x8x1xf32>
      %49 = tpu.reciprocal %48 : vector<4x8x1xf32> -> vector<4x8x1xf32>
      %50 = vector.broadcast %49 : vector<4x8x1xf32> to vector<4x8x8xf32>
      %51 = arith.mulf %47, %50 : vector<4x8x8xf32>
      %52 = arith.truncf %51 : vector<4x8x8xf32> to vector<4x8x8xbf16>
      %cst_46 = arith.constant 0.000000e+00 : f32
      %53 = vector.broadcast %cst_46 : f32 to vector<8x32xf32>
      %54 = vector.extract_strided_slice %52 {offsets = [0, 0, 0], sizes = [1, 8, 8], strides = [1, 1, 1]} : vector<4x8x8xbf16> to vector<1x8x8xbf16>
      %55 = vector.shape_cast %54 : vector<1x8x8xbf16> to vector<8x8xbf16>
      %c0_47 = arith.constant 0 : index
      %c0_48 = arith.constant 0 : index
      %c0_49 = arith.constant 0 : index
      %56 = vector.load %arg7[%c0_47, %c0_48, %c0_49] : memref<4x8x32xbf16, #tpu.memory_space<vmem>>, vector<1x8x32xbf16>
      %57 = vector.shape_cast %56 : vector<1x8x32xbf16> to vector<8x32xbf16>
      %cst_50 = arith.constant dense<0.000000e+00> : vector<8x32xf32>
      %58 = tpu.matmul %55, %57, %cst_50 {dimension_numbers = #tpu.dot_dimension_numbers<[1], [0], [0], [1], [0, 0, 1, 1], [], []>} : vector<8x8xbf16>, vector<8x32xbf16>, vector<8x32xf32> -> vector<8x32xf32>
      %59 = arith.addf %53, %58 : vector<8x32xf32>
      %60 = vector.extract_strided_slice %52 {offsets = [1, 0, 0], sizes = [1, 8, 8], strides = [1, 1, 1]} : vector<4x8x8xbf16> to vector<1x8x8xbf16>
      %61 = vector.shape_cast %60 : vector<1x8x8xbf16> to vector<8x8xbf16>
      %c1 = arith.constant 1 : index
      %c0_51 = arith.constant 0 : index
      %c0_52 = arith.constant 0 : index
      %62 = vector.load %arg7[%c1, %c0_51, %c0_52] : memref<4x8x32xbf16, #tpu.memory_space<vmem>>, vector<1x8x32xbf16>
      %63 = vector.shape_cast %62 : vector<1x8x32xbf16> to vector<8x32xbf16>
      %cst_53 = arith.constant dense<0.000000e+00> : vector<8x32xf32>
      %64 = tpu.matmul %61, %63, %cst_53 {dimension_numbers = #tpu.dot_dimension_numbers<[1], [0], [0], [1], [0, 0, 1, 1], [], []>} : vector<8x8xbf16>, vector<8x32xbf16>, vector<8x32xf32> -> vector<8x32xf32>
      %65 = arith.addf %59, %64 : vector<8x32xf32>
      %66 = vector.extract_strided_slice %52 {offsets = [2, 0, 0], sizes = [1, 8, 8], strides = [1, 1, 1]} : vector<4x8x8xbf16> to vector<1x8x8xbf16>
      %67 = vector.shape_cast %66 : vector<1x8x8xbf16> to vector<8x8xbf16>
      %c2 = arith.constant 2 : index
      %c0_54 = arith.constant 0 : index
      %c0_55 = arith.constant 0 : index
      %68 = vector.load %arg7[%c2, %c0_54, %c0_55] : memref<4x8x32xbf16, #tpu.memory_space<vmem>>, vector<1x8x32xbf16>
      %69 = vector.shape_cast %68 : vector<1x8x32xbf16> to vector<8x32xbf16>
      %cst_56 = arith.constant dense<0.000000e+00> : vector<8x32xf32>
      %70 = tpu.matmul %67, %69, %cst_56 {dimension_numbers = #tpu.dot_dimension_numbers<[1], [0], [0], [1], [0, 0, 1, 1], [], []>} : vector<8x8xbf16>, vector<8x32xbf16>, vector<8x32xf32> -> vector<8x32xf32>
      %71 = arith.addf %65, %70 : vector<8x32xf32>
      %72 = vector.extract_strided_slice %52 {offsets = [3, 0, 0], sizes = [1, 8, 8], strides = [1, 1, 1]} : vector<4x8x8xbf16> to vector<1x8x8xbf16>
      %73 = vector.shape_cast %72 : vector<1x8x8xbf16> to vector<8x8xbf16>
      %c3 = arith.constant 3 : index
      %c0_57 = arith.constant 0 : index
      %c0_58 = arith.constant 0 : index
      %74 = vector.load %arg7[%c3, %c0_57, %c0_58] : memref<4x8x32xbf16, #tpu.memory_space<vmem>>, vector<1x8x32xbf16>
      %75 = vector.shape_cast %74 : vector<1x8x32xbf16> to vector<8x32xbf16>
      %cst_59 = arith.constant dense<0.000000e+00> : vector<8x32xf32>
      %76 = tpu.matmul %73, %75, %cst_59 {dimension_numbers = #tpu.dot_dimension_numbers<[1], [0], [0], [1], [0, 0, 1, 1], [], []>} : vector<8x8xbf16>, vector<8x32xbf16>, vector<8x32xf32> -> vector<8x32xf32>
      %77 = arith.addf %71, %76 : vector<8x32xf32>
      %c0_60 = arith.constant 0 : index
      %c0_61 = arith.constant 0 : index
      %78 = vector.load %arg8[%c0_60, %c0_61] : memref<1x32xf32, #tpu.memory_space<vmem>>, vector<1x32xf32>
      %79 = vector.broadcast %78 : vector<1x32xf32> to vector<8x32xf32>
      %80 = arith.addf %77, %79 : vector<8x32xf32>
      %c0_62 = arith.constant 0 : index
      %c0_63 = arith.constant 0 : index
      %c0_64 = arith.constant 0 : index
      %81 = vector.load %arg9[%c0_62, %c0_63, %c0_64] : memref<1x8x32xf32, #tpu.memory_space<vmem>>, vector<1x8x32xf32>
      %82 = vector.shape_cast %81 : vector<1x8x32xf32> to vector<8x32xf32>
      %83 = vector.shape_cast %80 : vector<8x32xf32> to vector<1x8x32xf32>
      tpu.vector_store %arg9[%c0_62, %c0_63, %c0_64], %83 {strides = array<i32>} : memref<1x8x32xf32, #tpu.memory_space<vmem>>, vector<1x8x32xf32>,
    } else {
    }
    return
  }
  func.func @transform_0(%arg0: i32, %arg1: i32, %arg2: i32) -> (i32, i32, i32) {
    %c0_i32 = arith.constant 0 : i32
    return %arg0, %arg1, %arg2 : i32, i32, i32
  }
  func.func @transform_1(%arg0: i32, %arg1: i32, %arg2: i32) -> (i32, i32, i32, i32) {
    %c0_i32 = arith.constant 0 : i32
    %c0_i32_0 = arith.constant 0 : i32
    %c0_i32_1 = arith.constant 0 : i32
    return %arg0, %c0_i32, %arg1, %c0_i32_0 : i32, i32, i32, i32
  }
  func.func @transform_2(%arg0: i32, %arg1: i32, %arg2: i32) -> (i32, i32, i32, i32) {
    %c0_i32 = arith.constant 0 : i32
    %c0_i32_0 = arith.constant 0 : i32
    %c0_i32_1 = arith.constant 0 : i32
    return %arg0, %c0_i32, %arg2, %c0_i32_0 : i32, i32, i32, i32
  }
  func.func @transform_3(%arg0: i32, %arg1: i32, %arg2: i32) -> (i32, i32, i32, i32) {
    %c0_i32 = arith.constant 0 : i32
    %c0_i32_0 = arith.constant 0 : i32
    %c0_i32_1 = arith.constant 0 : i32
    return %arg0, %c0_i32, %arg2, %c0_i32_0 : i32, i32, i32, i32
  }
  func.func @transform_4(%arg0: i32, %arg1: i32, %arg2: i32) -> (i32, i32, i32) {
    %c0_i32 = arith.constant 0 : i32
    %c0_i32_0 = arith.constant 0 : i32
    %c0_i32_1 = arith.constant 0 : i32
    %c0_i32_2 = arith.constant 0 : i32
    return %c0_i32, %c0_i32_0, %c0_i32_1 : i32, i32, i32
  }
  func.func @transform_5(%arg0: i32, %arg1: i32, %arg2: i32) -> (i32, i32) {
    %c0_i32 = arith.constant 0 : i32
    %c0_i32_0 = arith.constant 0 : i32
    %c0_i32_1 = arith.constant 0 : i32
    return %c0_i32, %c0_i32_0 : i32, i32
  }
  func.func @transform_6(%arg0: i32, %arg1: i32, %arg2: i32) -> (i32, i32, i32) {
    %c0_i32 = arith.constant 0 : i32
    %c0_i32_0 = arith.constant 0 : i32
    return %arg0, %arg1, %c0_i32 : i32, i32, i32
  }
}

module attributes {stable_mosaic.version = 11 : i64} {
  func.func @_mha_flash_kernel(%arg0: i32, %arg1: i32, %arg2: i32, %arg3: memref<1x8x8xi8, #tpu.memory_space<vmem>>, %arg4: memref<1x4x8x8xbf16, #tpu.memory_space<vmem>>, %arg5: memref<1x4x8x8xbf16, #tpu.memory_space<vmem>>, %arg6: memref<1x4x8x8xbf16, #tpu.memory_space<vmem>>, %arg7: memref<4x8x32xbf16, #tpu.memory_space<vmem>>, %arg8: memref<1x32xf32, #tpu.memory_space<vmem>>, %arg9: memref<1x8x32xf32, #tpu.memory_space<vmem>>, %arg10: memref<4x8x1xf32, #tpu.memory_space<vmem>>, %arg11: memref<4x8x1xf32, #tpu.memory_space<vmem>>, %arg12: memref<4x8x8xf32, #tpu.memory_space<vmem>>) attributes {dimension_semantics = [#tpu.dimension_semantics<parallel>, #tpu.dimension_semantics<parallel>, #tpu.dimension_semantics<arbitrary>], iteration_bounds = array<i64: 2, 1, 1>, scalar_prefetch = 0 : i64, scratch_operands = 3 : i64, tpu.core_type = #tpu.core_type<tc>, window_params = [{transform_indices = @transform_0, window_bounds = array<i64: 1, 8, 8>}, {transform_indices = @transform_1, window_bounds = array<i64: 1, 4, 8, 8>}, {transform_indices = @transform_2, window_bounds = array<i64: 1, 4, 8, 8>}, {transform_indices = @transform_3, window_bounds = array<i64: 1, 4, 8, 8>}, {pipeline_mode = #tpu.pipeline_mode<synchronous>, transform_indices = @transform_4, window_bounds = array<i64: 4, 8, 32>}, {pipeline_mode = #tpu.pipeline_mode<synchronous>, transform_indices = @transform_5, window_bounds = array<i64: 1, 32>}, {transform_indices = @transform_6, window_bounds = array<i64: 1, 8, 32>}]} {
    %c0_i32 = arith.constant 0 : i32
    %0 = arith.cmpi eq, %arg2, %c0_i32 : i32
    %1 = arith.extui %0 : i1 to i32
    %c0_i32_0 = arith.constant 0 : i32
    %2 = arith.cmpi ne, %1, %c0_i32_0 : i32
    scf.if %2 {
      %cst_40 = arith.constant 0xFF800000 : f32
      %47 = vector.broadcast %cst_40 : f32 to vector<4x8x1xf32>
      %c0_41 = arith.constant 0 : index
      %c0_42 = arith.constant 0 : index
      %c0_43 = arith.constant 0 : index
      %48 = vector.load %arg10[%c0_41, %c0_42, %c0_43] : memref<4x8x1xf32, #tpu.memory_space<vmem>>, vector<4x8x1xf32>
      tpu.vector_store %arg10[%c0_41, %c0_42, %c0_43], %47 {strides = array<i32>} : memref<4x8x1xf32, #tpu.memory_space<vmem>>, vector<4x8x1xf32>,
      %cst_44 = arith.constant 0.000000e+00 : f32
      %49 = vector.broadcast %cst_44 : f32 to vector<4x8x1xf32>
      %c0_45 = arith.constant 0 : index
      %c0_46 = arith.constant 0 : index
      %c0_47 = arith.constant 0 : index
      %50 = vector.load %arg11[%c0_45, %c0_46, %c0_47] : memref<4x8x1xf32, #tpu.memory_space<vmem>>, vector<4x8x1xf32>
      tpu.vector_store %arg11[%c0_45, %c0_46, %c0_47], %49 {strides = array<i32>} : memref<4x8x1xf32, #tpu.memory_space<vmem>>, vector<4x8x1xf32>,
      %cst_48 = arith.constant 0.000000e+00 : f32
      %51 = vector.broadcast %cst_48 : f32 to vector<4x8x8xf32>
      %c0_49 = arith.constant 0 : index
      %c0_50 = arith.constant 0 : index
      %c0_51 = arith.constant 0 : index
      %52 = vector.load %arg12[%c0_49, %c0_50, %c0_51] : memref<4x8x8xf32, #tpu.memory_space<vmem>>, vector<4x8x8xf32>
      tpu.vector_store %arg12[%c0_49, %c0_50, %c0_51], %51 {strides = array<i32>} : memref<4x8x8xf32, #tpu.memory_space<vmem>>, vector<4x8x8xf32>,
    } else {
    }
    %c0 = arith.constant 0 : index
    %c0_1 = arith.constant 0 : index
    %c0_2 = arith.constant 0 : index
    %c0_3 = arith.constant 0 : index
    %3 = vector.load %arg4[%c0, %c0_1, %c0_2, %c0_3] : memref<1x4x8x8xbf16, #tpu.memory_space<vmem>>, vector<1x4x8x8xbf16>
    %4 = vector.shape_cast %3 : vector<1x4x8x8xbf16> to vector<4x8x8xbf16>
    %cst = arith.constant 3.535160e-01 : bf16
    %5 = vector.broadcast %cst : bf16 to vector<4x8x8xbf16>
    %6 = arith.mulf %4, %5 : vector<4x8x8xbf16>
    %c0_4 = arith.constant 0 : index
    %c0_5 = arith.constant 0 : index
    %c0_6 = arith.constant 0 : index
    %c0_7 = arith.constant 0 : index
    %7 = vector.load %arg5[%c0_4, %c0_5, %c0_6, %c0_7] : memref<1x4x8x8xbf16, #tpu.memory_space<vmem>>, vector<1x4x8x8xbf16>
    %8 = vector.shape_cast %7 : vector<1x4x8x8xbf16> to vector<4x8x8xbf16>
    "tpu.trace_start"() <{level = 10 : i32, message = "hqd,hkd->hqk"}> : () -> ()
    %cst_8 = arith.constant dense<0.000000e+00> : vector<4x8x8xf32>
    %9 = tpu.matmul %6, %8, %cst_8 {dimension_numbers = #tpu.dot_dimension_numbers<[2], [2], [1], [1], [0, 0, 0, 1, 1, 1], [0], [0]>} : vector<4x8x8xbf16>, vector<4x8x8xbf16>, vector<4x8x8xf32> -> vector<4x8x8xf32>
    "tpu.trace_stop"() : () -> ()
    %c0_9 = arith.constant 0 : index
    %c0_10 = arith.constant 0 : index
    %c0_11 = arith.constant 0 : index
    %10 = vector.load %arg3[%c0_9, %c0_10, %c0_11] : memref<1x8x8xi8, #tpu.memory_space<vmem>>, vector<1x8x8xi8>
    %11 = vector.shape_cast %10 : vector<1x8x8xi8> to vector<8x8xi8>
    %c0_i8 = arith.constant 0 : i8
    %12 = vector.broadcast %c0_i8 : i8 to vector<8x8xi8>
    %13 = arith.cmpi ne, %11, %12 : vector<8x8xi8>
    %14 = vector.shape_cast %13 : vector<8x8xi1> to vector<1x8x8xi1>
    %cst_12 = arith.constant -1.000000e+30 : f32
    %15 = vector.shape_cast %14 : vector<1x8x8xi1> to vector<1x8x8xi1>
    %16 = vector.broadcast %15 : vector<1x8x8xi1> to vector<4x8x8xi1>
    %17 = vector.broadcast %cst_12 : f32 to vector<4x8x8xf32>
    %18 = arith.select %16, %9, %17 : vector<4x8x8xi1>, vector<4x8x8xf32>
    %c0_13 = arith.constant 0 : index
    %c0_14 = arith.constant 0 : index
    %c0_15 = arith.constant 0 : index
    %19 = vector.load %arg10[%c0_13, %c0_14, %c0_15] : memref<4x8x1xf32, #tpu.memory_space<vmem>>, vector<4x8x1xf32>
    %cst_16 = arith.constant dense<0xFF800000> : vector<4x8xf32>
    %20 = vector.multi_reduction <maximumf>, %18, %cst_16 [2] : vector<4x8x8xf32> to vector<4x8xf32>
    %21 = vector.shape_cast %20 : vector<4x8xf32> to vector<4x8x1xf32>
    %22 = arith.maximumf %19, %21 : vector<4x8x1xf32>
    %23 = arith.subf %19, %22 : vector<4x8x1xf32>
    %24 = math.exp %23 : vector<4x8x1xf32>
    %25 = vector.broadcast %22 : vector<4x8x1xf32> to vector<4x8x8xf32>
    %26 = arith.subf %18, %25 : vector<4x8x8xf32>
    %27 = math.exp %26 : vector<4x8x8xf32>
    %c0_17 = arith.constant 0 : index
    %c0_18 = arith.constant 0 : index
    %c0_19 = arith.constant 0 : index
    %28 = vector.load %arg11[%c0_17, %c0_18, %c0_19] : memref<4x8x1xf32, #tpu.memory_space<vmem>>, vector<4x8x1xf32>
    %29 = arith.mulf %24, %28 : vector<4x8x1xf32>
    %cst_20 = arith.constant dense<0.000000e+00> : vector<4x8xf32>
    %30 = vector.multi_reduction <add>, %27, %cst_20 [2] : vector<4x8x8xf32> to vector<4x8xf32>
    %31 = vector.shape_cast %30 : vector<4x8xf32> to vector<4x8x1xf32>
    %32 = arith.addf %29, %31 : vector<4x8x1xf32>
    %c0_21 = arith.constant 0 : index
    %c0_22 = arith.constant 0 : index
    %c0_23 = arith.constant 0 : index
    %33 = vector.load %arg11[%c0_21, %c0_22, %c0_23] : memref<4x8x1xf32, #tpu.memory_space<vmem>>, vector<4x8x1xf32>
    tpu.vector_store %arg11[%c0_21, %c0_22, %c0_23], %32 {strides = array<i32>} : memref<4x8x1xf32, #tpu.memory_space<vmem>>, vector<4x8x1xf32>,
    %c0_24 = arith.constant 0 : index
    %c0_25 = arith.constant 0 : index
    %c0_26 = arith.constant 0 : index
    %34 = vector.load %arg12[%c0_24, %c0_25, %c0_26] : memref<4x8x8xf32, #tpu.memory_space<vmem>>, vector<4x8x8xf32>
    %35 = vector.broadcast %24 : vector<4x8x1xf32> to vector<4x8x8xf32>
    %36 = arith.mulf %35, %34 : vector<4x8x8xf32>
    %37 = arith.truncf %27 : vector<4x8x8xf32> to vector<4x8x8xbf16>
    %c0_27 = arith.constant 0 : index
    %c0_28 = arith.constant 0 : index
    %c0_29 = arith.constant 0 : index
    %c0_30 = arith.constant 0 : index
    %38 = vector.load %arg6[%c0_27, %c0_28, %c0_29, %c0_30] : memref<1x4x8x8xbf16, #tpu.memory_space<vmem>>, vector<1x4x8x8xbf16>
    %39 = vector.shape_cast %38 : vector<1x4x8x8xbf16> to vector<4x8x8xbf16>
    "tpu.trace_start"() <{level = 10 : i32, message = "hqk,hkd->hqd"}> : () -> ()
    %cst_31 = arith.constant dense<0.000000e+00> : vector<4x8x8xf32>
    %40 = tpu.matmul %37, %39, %cst_31 {dimension_numbers = #tpu.dot_dimension_numbers<[2], [1], [1], [2], [0, 0, 0, 1, 1, 2], [0], [0]>} : vector<4x8x8xbf16>, vector<4x8x8xbf16>, vector<4x8x8xf32> -> vector<4x8x8xf32>
    "tpu.trace_stop"() : () -> ()
    %41 = arith.addf %36, %40 : vector<4x8x8xf32>
    %c0_32 = arith.constant 0 : index
    %c0_33 = arith.constant 0 : index
    %c0_34 = arith.constant 0 : index
    %42 = vector.load %arg12[%c0_32, %c0_33, %c0_34] : memref<4x8x8xf32, #tpu.memory_space<vmem>>, vector<4x8x8xf32>
    tpu.vector_store %arg12[%c0_32, %c0_33, %c0_34], %41 {strides = array<i32>} : memref<4x8x8xf32, #tpu.memory_space<vmem>>, vector<4x8x8xf32>,
    %c0_35 = arith.constant 0 : index
    %c0_36 = arith.constant 0 : index
    %c0_37 = arith.constant 0 : index
    %43 = vector.load %arg10[%c0_35, %c0_36, %c0_37] : memref<4x8x1xf32, #tpu.memory_space<vmem>>, vector<4x8x1xf32>
    tpu.vector_store %arg10[%c0_35, %c0_36, %c0_37], %22 {strides = array<i32>} : memref<4x8x1xf32, #tpu.memory_space<vmem>>, vector<4x8x1xf32>,
    %c0_i32_38 = arith.constant 0 : i32
    %44 = arith.cmpi eq, %arg2, %c0_i32_38 : i32
    %45 = arith.extui %44 : i1 to i32
    %c0_i32_39 = arith.constant 0 : i32
    %46 = arith.cmpi ne, %45, %c0_i32_39 : i32
    scf.if %46 {
      %c0_40 = arith.constant 0 : index
      %c0_41 = arith.constant 0 : index
      %c0_42 = arith.constant 0 : index
      %47 = vector.load %arg12[%c0_40, %c0_41, %c0_42] : memref<4x8x8xf32, #tpu.memory_space<vmem>>, vector<4x8x8xf32>
      %c0_43 = arith.constant 0 : index
      %c0_44 = arith.constant 0 : index
      %c0_45 = arith.constant 0 : index
      %48 = vector.load %arg11[%c0_43, %c0_44, %c0_45] : memref<4x8x1xf32, #tpu.memory_space<vmem>>, vector<4x8x1xf32>
      %49 = tpu.reciprocal %48 : vector<4x8x1xf32> -> vector<4x8x1xf32>
      %50 = vector.broadcast %49 : vector<4x8x1xf32> to vector<4x8x8xf32>
      %51 = arith.mulf %47, %50 : vector<4x8x8xf32>
      %52 = arith.truncf %51 : vector<4x8x8xf32> to vector<4x8x8xbf16>
      %cst_46 = arith.constant 0.000000e+00 : f32
      %53 = vector.broadcast %cst_46 : f32 to vector<8x32xf32>
      %54 = vector.extract_strided_slice %52 {offsets = [0, 0, 0], sizes = [1, 8, 8], strides = [1, 1, 1]} : vector<4x8x8xbf16> to vector<1x8x8xbf16>
      %55 = vector.shape_cast %54 : vector<1x8x8xbf16> to vector<8x8xbf16>
      %c0_47 = arith.constant 0 : index
      %c0_48 = arith.constant 0 : index
      %c0_49 = arith.constant 0 : index
      %56 = vector.load %arg7[%c0_47, %c0_48, %c0_49] : memref<4x8x32xbf16, #tpu.memory_space<vmem>>, vector<1x8x32xbf16>
      %57 = vector.shape_cast %56 : vector<1x8x32xbf16> to vector<8x32xbf16>
      %cst_50 = arith.constant dense<0.000000e+00> : vector<8x32xf32>
      %58 = tpu.matmul %55, %57, %cst_50 {dimension_numbers = #tpu.dot_dimension_numbers<[1], [0], [0], [1], [0, 0, 1, 1], [], []>} : vector<8x8xbf16>, vector<8x32xbf16>, vector<8x32xf32> -> vector<8x32xf32>
      %59 = arith.addf %53, %58 : vector<8x32xf32>
      %60 = vector.extract_strided_slice %52 {offsets = [1, 0, 0], sizes = [1, 8, 8], strides = [1, 1, 1]} : vector<4x8x8xbf16> to vector<1x8x8xbf16>
      %61 = vector.shape_cast %60 : vector<1x8x8xbf16> to vector<8x8xbf16>
      %c1 = arith.constant 1 : index
      %c0_51 = arith.constant 0 : index
      %c0_52 = arith.constant 0 : index
      %62 = vector.load %arg7[%c1, %c0_51, %c0_52] : memref<4x8x32xbf16, #tpu.memory_space<vmem>>, vector<1x8x32xbf16>
      %63 = vector.shape_cast %62 : vector<1x8x32xbf16> to vector<8x32xbf16>
      %cst_53 = arith.constant dense<0.000000e+00> : vector<8x32xf32>
      %64 = tpu.matmul %61, %63, %cst_53 {dimension_numbers = #tpu.dot_dimension_numbers<[1], [0], [0], [1], [0, 0, 1, 1], [], []>} : vector<8x8xbf16>, vector<8x32xbf16>, vector<8x32xf32> -> vector<8x32xf32>
      %65 = arith.addf %59, %64 : vector<8x32xf32>
      %66 = vector.extract_strided_slice %52 {offsets = [2, 0, 0], sizes = [1, 8, 8], strides = [1, 1, 1]} : vector<4x8x8xbf16> to vector<1x8x8xbf16>
      %67 = vector.shape_cast %66 : vector<1x8x8xbf16> to vector<8x8xbf16>
      %c2 = arith.constant 2 : index
      %c0_54 = arith.constant 0 : index
      %c0_55 = arith.constant 0 : index
      %68 = vector.load %arg7[%c2, %c0_54, %c0_55] : memref<4x8x32xbf16, #tpu.memory_space<vmem>>, vector<1x8x32xbf16>
      %69 = vector.shape_cast %68 : vector<1x8x32xbf16> to vector<8x32xbf16>
      %cst_56 = arith.constant dense<0.000000e+00> : vector<8x32xf32>
      %70 = tpu.matmul %67, %69, %cst_56 {dimension_numbers = #tpu.dot_dimension_numbers<[1], [0], [0], [1], [0, 0, 1, 1], [], []>} : vector<8x8xbf16>, vector<8x32xbf16>, vector<8x32xf32> -> vector<8x32xf32>
      %71 = arith.addf %65, %70 : vector<8x32xf32>
      %72 = vector.extract_strided_slice %52 {offsets = [3, 0, 0], sizes = [1, 8, 8], strides = [1, 1, 1]} : vector<4x8x8xbf16> to vector<1x8x8xbf16>
      %73 = vector.shape_cast %72 : vector<1x8x8xbf16> to vector<8x8xbf16>
      %c3 = arith.constant 3 : index
      %c0_57 = arith.constant 0 : index
      %c0_58 = arith.constant 0 : index
      %74 = vector.load %arg7[%c3, %c0_57, %c0_58] : memref<4x8x32xbf16, #tpu.memory_space<vmem>>, vector<1x8x32xbf16>
      %75 = vector.shape_cast %74 : vector<1x8x32xbf16> to vector<8x32xbf16>
      %cst_59 = arith.constant dense<0.000000e+00> : vector<8x32xf32>
      %76 = tpu.matmul %73, %75, %cst_59 {dimension_numbers = #tpu.dot_dimension_numbers<[1], [0], [0], [1], [0, 0, 1, 1], [], []>} : vector<8x8xbf16>, vector<8x32xbf16>, vector<8x32xf32> -> vector<8x32xf32>
      %77 = arith.addf %71, %76 : vector<8x32xf32>
      %c0_60 = arith.constant 0 : index
      %c0_61 = arith.constant 0 : index
      %78 = vector.load %arg8[%c0_60, %c0_61] : memref<1x32xf32, #tpu.memory_space<vmem>>, vector<1x32xf32>
      %79 = vector.broadcast %78 : vector<1x32xf32> to vector<8x32xf32>
      %80 = arith.addf %77, %79 : vector<8x32xf32>
      %c0_62 = arith.constant 0 : index
      %c0_63 = arith.constant 0 : index
      %c0_64 = arith.constant 0 : index
      %81 = vector.load %arg9[%c0_62, %c0_63, %c0_64] : memref<1x8x32xf32, #tpu.memory_space<vmem>>, vector<1x8x32xf32>
      %82 = vector.shape_cast %81 : vector<1x8x32xf32> to vector<8x32xf32>
      %83 = vector.shape_cast %80 : vector<8x32xf32> to vector<1x8x32xf32>
      tpu.vector_store %arg9[%c0_62, %c0_63, %c0_64], %83 {strides = array<i32>} : memref<1x8x32xf32, #tpu.memory_space<vmem>>, vector<1x8x32xf32>,
    } else {
    }
    return
  }
  func.func @transform_0(%arg0: i32, %arg1: i32, %arg2: i32) -> (i32, i32, i32) {
    %c0_i32 = arith.constant 0 : i32
    return %arg0, %arg1, %arg2 : i32, i32, i32
  }
  func.func @transform_1(%arg0: i32, %arg1: i32, %arg2: i32) -> (i32, i32, i32, i32) {
    %c0_i32 = arith.constant 0 : i32
    %c0_i32_0 = arith.constant 0 : i32
    %c0_i32_1 = arith.constant 0 : i32
    return %arg0, %c0_i32, %arg1, %c0_i32_0 : i32, i32, i32, i32
  }
  func.func @transform_2(%arg0: i32, %arg1: i32, %arg2: i32) -> (i32, i32, i32, i32) {
    %c0_i32 = arith.constant 0 : i32
    %c0_i32_0 = arith.constant 0 : i32
    %c0_i32_1 = arith.constant 0 : i32
    return %arg0, %c0_i32, %arg2, %c0_i32_0 : i32, i32, i32, i32
  }
  func.func @transform_3(%arg0: i32, %arg1: i32, %arg2: i32) -> (i32, i32, i32, i32) {
    %c0_i32 = arith.constant 0 : i32
    %c0_i32_0 = arith.constant 0 : i32
    %c0_i32_1 = arith.constant 0 : i32
    return %arg0, %c0_i32, %arg2, %c0_i32_0 : i32, i32, i32, i32
  }
  func.func @transform_4(%arg0: i32, %arg1: i32, %arg2: i32) -> (i32, i32, i32) {
    %c0_i32 = arith.constant 0 : i32
    %c0_i32_0 = arith.constant 0 : i32
    %c0_i32_1 = arith.constant 0 : i32
    %c0_i32_2 = arith.constant 0 : i32
    return %c0_i32, %c0_i32_0, %c0_i32_1 : i32, i32, i32
  }
  func.func @transform_5(%arg0: i32, %arg1: i32, %arg2: i32) -> (i32, i32) {
    %c0_i32 = arith.constant 0 : i32
    %c0_i32_0 = arith.constant 0 : i32
    %c0_i32_1 = arith.constant 0 : i32
    return %c0_i32, %c0_i32_0 : i32, i32
  }
  func.func @transform_6(%arg0: i32, %arg1: i32, %arg2: i32) -> (i32, i32, i32) {
    %c0_i32 = arith.constant 0 : i32
    %c0_i32_0 = arith.constant 0 : i32
    return %arg0, %arg1, %c0_i32 : i32, i32, i32
  }
}

</mosaic_0001>

<llo_original>
// kernel: tpu_custom_call.1
$region0: #{tpu_custom_call.1}
  #allocation0 [shape = 'u32[]', space=smem, size = 0x4, offset = 0x4, fixed_abs, tag = 'smem constant byte address 0x4 - core index']
  #allocation1 [shape = 'u32[144,128]{1,0:T(1,128)}', space=vmem, size = 0x12000, scoped, tag = 'internal scratch']
  #allocation2 [shape = 'f32[4,8,1]{2,1,0:T(8,128)}', space=vmem, size = 0x4000, scoped, tag = 'scratch operand']
  #allocation3 [shape = 'f32[4,8,1]{2,1,0:T(8,128)}', space=vmem, size = 0x4000, scoped, tag = 'scratch operand']
  #allocation4 [shape = 'f32[4,8,8]{2,1,0:T(8,128)}', space=vmem, size = 0x4000, scoped, tag = 'scratch operand']
  %s0 = inlined_call_operand.hbm [shape: s8[2,8,8], index: 0, kind: input, shape index: {}]
  %s1 = inlined_call_operand.hbm [shape: bf16[2,4,8,8], index: 1, kind: input, shape index: {}]
  %s2 = inlined_call_operand.hbm [shape: bf16[2,4,8,8], index: 2, kind: input, shape index: {}]
  %s3 = inlined_call_operand.hbm [shape: bf16[2,4,8,8], index: 3, kind: input, shape index: {}]
  %s4 = inlined_call_operand.hbm [shape: bf16[4,8,32], index: 4, kind: input, shape index: {}]
  %s5 = inlined_call_operand.vmem [shape: f32[1,32], index: 5, kind: input, shape index: {}]
  %s6 = inlined_call_operand.hbm [shape: f32[2,8,32], index: 6, kind: output, shape index: {}]
  %s7 = sld [smem:[#allocation0]]
  $region85: #{tpu_custom_call.1} parent=0
    _
  %s9 = ssub.s32 1, %s7
  %s10 = scalar_select 0, %s9, %s7
  $region1: #{tpu_custom_call.1} parent=0
    #allocation5 [shape = 'u8[2048]{0}', space=vmem, size = 0x800, scoped, tag = 'input window, operand 0']
    #allocation6 [shape = 's32[2]{0}', space=sflag, size = 0x8, scoped, tag = 'scoped memory for tpu_custom_call.1']
    #allocation7 [shape = 's32[2]{0}', space=sflag, size = 0x8, scoped, tag = 'scoped memory for tpu_custom_call.1']
    #allocation8 [shape = 'u8[16384]{0}', space=vmem, size = 0x4000, scoped, tag = 'input window, operand 1']
    #allocation9 [shape = 's32[2]{0}', space=sflag, size = 0x8, scoped, tag = 'scoped memory for tpu_custom_call.1']
    #allocation10 [shape = 'u8[16384]{0}', space=vmem, size = 0x4000, scoped, tag = 'input window, operand 2']
    #allocation11 [shape = 'u8[16384]{0}', space=vmem, size = 0x4000, scoped, tag = 'input window, operand 3']
    #allocation12 [shape = 's32[2]{0}', space=sflag, size = 0x8, scoped, tag = 'scoped memory for tpu_custom_call.1']
    #allocation13 [shape = 'u8[8192]{0}', space=vmem, size = 0x2000, scoped, tag = 'input window, operand 4, single buffered']
    #allocation14 [shape = 'u8[8192]{0}', space=vmem, size = 0x2000, scoped, tag = 'output window, operand 0']
    %11 = vsyncpa [#allocation6], 0
    %s12 = scalar_lea.sflag [#allocation6], 1
    %13 = vsyncpa %s12, 0
    %14 = vsyncpa [#allocation9], 0
    %s15 = scalar_lea.sflag [#allocation9], 1
    %16 = vsyncpa %s15, 0
    %17 = vsyncpa [#allocation12], 0
    %s18 = scalar_lea.sflag [#allocation12], 1
    %19 = vsyncpa %s18, 0
    %20 = vsyncpa [#allocation7], 0
    %s21 = scalar_lea.sflag [#allocation7], 1
    %22 = vsyncpa %s21, 0
    loop: start=0, step=1, limit=4
    $region2: #{tpu_custom_call.1} parent=1 // loop_pre_header
      _
    $region3: #{tpu_custom_call.1} parent=1 // loop_header
      %s24 = sphi 0, %s28
      %p25 = scmp.ge.s32.totalorder %s24, 4
      %s31 = sphi 0, %s50
      %s32 = sphi 0, %s46
      %s33 = sphi 0, %s42
      %s34 = sphi 0, %s31
      %s35 = sphi 0, %s32
      %s36 = sphi 0, %s33
      %s37 = sphi 0, %s34
      %s38 = sphi 0, %s35
      %s39 = sphi 0, %s36
      %s57 = sphi 0, %s59
      %s60 = sphi 0, %s57
      %s61 = sphi 0, %s60
      %s77 = sphi 0, %s61
      %s85 = sphi 0, %s87
      %s88 = sphi 0, %s85
      %s89 = sphi 0, %s88
      %s105 = sphi 0, %s89
      %s113 = sphi 0, %s115
      %s116 = sphi 0, %s113
      %s117 = sphi 0, %s116
      %s133 = sphi 0, %s117
      %s141 = sphi 0, %s143
      %s144 = sphi 0, %s141
      %s145 = sphi 0, %s144
      %s161 = sphi 0, %s145
      %s165 = sphi 0, %s165
      %s167 = sphi 0, %s165
      %s168 = sphi 0, %s167
      %s182 = sphi 0, %s168
      %s186 = sphi 0, %s186
      %s188 = sphi 0, %s186
      %s189 = sphi 0, %s188
      %s203 = sphi 0, %s189
      %s211 = sphi 0, %s213
      %s214 = sphi 0, %s211
      %s215 = sphi 0, %s214
      %s231 = sphi 0, %s215
    $region4: #{tpu_custom_call.1} parent=1 // loop_header_branch
      %27 = sbr.rel (%p25) target = $region8
    $region5: #{tpu_custom_call.1} parent=1 // loop_body
      %s29 = ssub.s32 %s24, 1
      %s30 = ssub.s32 %s24, 2
      %s40 = sadd.s32 1, %s33
      %p41 = scmp.ge.s32.totalorder %s40, 1
      %s42 = scalar_select %p41, 0, %s40
      %s43 = sadd.s32 1, %s32
      %s44 = scalar_select %p41, %s43, %s32
      %p45 = scmp.ge.s32.totalorder %s44, 1
      %s46 = scalar_select %p45, 0, %s44
      %s47 = sadd.s32 1, %s31
      %s48 = scalar_select %p45, %s47, %s31
      %p49 = scmp.ge.s32.totalorder %s48, 2
      %s50 = scalar_select %p49, 0, %s48
      %s51 = ssub.s32 %s31, %s50
      %s52 = ssub.s32 %s32, %s46
      %s53 = sor.u32 %s51, %s52
      %s54 = ssub.s32 %s33, %s42
      %s55 = sor.u32 %s53, %s54
      %p56 = scmp.eq.s32.totalorder %s55, 0
      %s58 = sadd.s32 %s57, 1
      %s59 = scalar_select %p56, %s57, %s58
      %p62 = pneg %p56
      %p63 = scmp.eq.s32.totalorder %s24, 1
      %p64 = por %p62, %p63
      %p65 = scmp.ne.s32.totalorder %s57, %s60
      %p66 = scmp.eq.s32.totalorder %s24, 0
      %p67 = por %p65, %p66
      %p68 = scmp.ne.s32.totalorder %s57, %s60
      %p69 = scmp.eq.s32.totalorder %s29, 1
      %p70 = por %p68, %p69
      %p71 = scmp.ne.s32.totalorder %s60, %s61
      %p72 = scmp.eq.s32.totalorder %s29, 0
      %p73 = por %p71, %p72
      %p74 = scmp.ne.s32.totalorder %s60, %s61
      %p75 = scmp.eq.s32.totalorder %s30, 1
      %p76 = por %p74, %p75
      %p78 = scmp.ne.s32.totalorder %s61, %s77
      %p79 = scmp.eq.s32.totalorder %s30, 0
      %p80 = por %p78, %p79
      %s81 = ssub.s32 %s31, %s50
      %s82 = ssub.s32 %s32, %s46
      %s83 = sor.u32 %s81, %s82
      %p84 = scmp.eq.s32.totalorder %s83, 0
      %s86 = sadd.s32 %s85, 1
      %s87 = scalar_select %p84, %s85, %s86
      %p90 = pneg %p84
      %p91 = scmp.eq.s32.totalorder %s24, 1
      %p92 = por %p90, %p91
      %p93 = scmp.ne.s32.totalorder %s85, %s88
      %p94 = scmp.eq.s32.totalorder %s24, 0
      %p95 = por %p93, %p94
      %p96 = scmp.ne.s32.totalorder %s85, %s88
      %p97 = scmp.eq.s32.totalorder %s29, 1
      %p98 = por %p96, %p97
      %p99 = scmp.ne.s32.totalorder %s88, %s89
      %p100 = scmp.eq.s32.totalorder %s29, 0
      %p101 = por %p99, %p100
      %p102 = scmp.ne.s32.totalorder %s88, %s89
      %p103 = scmp.eq.s32.totalorder %s30, 1
      %p104 = por %p102, %p103
      %p106 = scmp.ne.s32.totalorder %s89, %s105
      %p107 = scmp.eq.s32.totalorder %s30, 0
      %p108 = por %p106, %p107
      %s109 = ssub.s32 %s31, %s50
      %s110 = ssub.s32 %s33, %s42
      %s111 = sor.u32 %s109, %s110
      %p112 = scmp.eq.s32.totalorder %s111, 0
      %s114 = sadd.s32 %s113, 1
      %s115 = scalar_select %p112, %s113, %s114
      %p118 = pneg %p112
      %p119 = scmp.eq.s32.totalorder %s24, 1
      %p120 = por %p118, %p119
      %p121 = scmp.ne.s32.totalorder %s113, %s116
      %p122 = scmp.eq.s32.totalorder %s24, 0
      %p123 = por %p121, %p122
      %p124 = scmp.ne.s32.totalorder %s113, %s116
      %p125 = scmp.eq.s32.totalorder %s29, 1
      %p126 = por %p124, %p125
      %p127 = scmp.ne.s32.totalorder %s116, %s117
      %p128 = scmp.eq.s32.totalorder %s29, 0
      %p129 = por %p127, %p128
      %p130 = scmp.ne.s32.totalorder %s116, %s117
      %p131 = scmp.eq.s32.totalorder %s30, 1
      %p132 = por %p130, %p131
      %p134 = scmp.ne.s32.totalorder %s117, %s133
      %p135 = scmp.eq.s32.totalorder %s30, 0
      %p136 = por %p134, %p135
      %s137 = ssub.s32 %s31, %s50
      %s138 = ssub.s32 %s33, %s42
      %s139 = sor.u32 %s137, %s138
      %p140 = scmp.eq.s32.totalorder %s139, 0
      %s142 = sadd.s32 %s141, 1
      %s143 = scalar_select %p140, %s141, %s142
      %p146 = pneg %p140
      %p147 = scmp.eq.s32.totalorder %s24, 1
      %p148 = por %p146, %p147
      %p149 = scmp.ne.s32.totalorder %s141, %s144
      %p150 = scmp.eq.s32.totalorder %s24, 0
      %p151 = por %p149, %p150
      %p152 = scmp.ne.s32.totalorder %s141, %s144
      %p153 = scmp.eq.s32.totalorder %s29, 1
      %p154 = por %p152, %p153
      %p155 = scmp.ne.s32.totalorder %s144, %s145
      %p156 = scmp.eq.s32.totalorder %s29, 0
      %p157 = por %p155, %p156
      %p158 = scmp.ne.s32.totalorder %s144, %s145
      %p159 = scmp.eq.s32.totalorder %s30, 1
      %p160 = por %p158, %p159
      %p162 = scmp.ne.s32.totalorder %s145, %s161
      %p163 = scmp.eq.s32.totalorder %s30, 0
      %p164 = por %p162, %p163
      %s166 = sadd.s32 %s165, 1
      %p169 = scmp.eq.s32.totalorder %s24, 1
      %p170 = scmp.ne.s32.totalorder %s165, %s167
      %p171 = scmp.eq.s32.totalorder %s24, 0
      %p172 = por %p170, %p171
      %p173 = scmp.ne.s32.totalorder %s165, %s167
      %p174 = scmp.eq.s32.totalorder %s29, 1
      %p175 = por %p173, %p174
      %p176 = scmp.ne.s32.totalorder %s167, %s168
      %p177 = scmp.eq.s32.totalorder %s29, 0
      %p178 = por %p176, %p177
      %p179 = scmp.ne.s32.totalorder %s167, %s168
      %p180 = scmp.eq.s32.totalorder %s30, 1
      %p181 = por %p179, %p180
      %p183 = scmp.ne.s32.totalorder %s168, %s182
      %p184 = scmp.eq.s32.totalorder %s30, 0
      %p185 = por %p183, %p184
      %s187 = sadd.s32 %s186, 1
      %p190 = scmp.eq.s32.totalorder %s24, 1
      %p191 = scmp.ne.s32.totalorder %s186, %s188
      %p192 = scmp.eq.s32.totalorder %s24, 0
      %p193 = por %p191, %p192
      %p194 = scmp.ne.s32.totalorder %s186, %s188
      %p195 = scmp.eq.s32.totalorder %s29, 1
      %p196 = por %p194, %p195
      %p197 = scmp.ne.s32.totalorder %s188, %s189
      %p198 = scmp.eq.s32.totalorder %s29, 0
      %p199 = por %p197, %p198
      %p200 = scmp.ne.s32.totalorder %s188, %s189
      %p201 = scmp.eq.s32.totalorder %s30, 1
      %p202 = por %p200, %p201
      %p204 = scmp.ne.s32.totalorder %s189, %s203
      %p205 = scmp.eq.s32.totalorder %s30, 0
      %p206 = por %p204, %p205
      %s207 = ssub.s32 %s31, %s50
      %s208 = ssub.s32 %s32, %s46
      %s209 = sor.u32 %s207, %s208
      %p210 = scmp.eq.s32.totalorder %s209, 0
      %s212 = sadd.s32 %s211, 1
      %s213 = scalar_select %p210, %s211, %s212
      %p216 = pneg %p210
      %p217 = scmp.eq.s32.totalorder %s24, 1
      %p218 = por %p216, %p217
      %p219 = scmp.ne.s32.totalorder %s211, %s214
      %p220 = scmp.eq.s32.totalorder %s24, 0
      %p221 = por %p219, %p220
      %p222 = scmp.ne.s32.totalorder %s211, %s214
      %p223 = scmp.eq.s32.totalorder %s29, 1
      %p224 = por %p222, %p223
      %p225 = scmp.ne.s32.totalorder %s214, %s215
      %p226 = scmp.eq.s32.totalorder %s29, 0
      %p227 = por %p225, %p226
      %p228 = scmp.ne.s32.totalorder %s214, %s215
      %p229 = scmp.eq.s32.totalorder %s30, 1
      %p230 = por %p228, %p229
      %p232 = scmp.ne.s32.totalorder %s215, %s231
      %p233 = scmp.eq.s32.totalorder %s30, 0
      %p234 = por %p232, %p233
      %p235 = scmp.le.s32.totalorder 1, %s24
      %p236 = scmp.lt.s32.totalorder %s24, 3
      %p237 = pnand %p235, %p236
      %p238 = pneg %p237
      // Predicated region
      $region9: #{tpu_custom_call.1} parent=5 // pred_check
        _
      $region10: #{tpu_custom_call.1} parent=5 // pred_check_branch
        %240 = sbr.rel (%p237) target = $region12
      $region11: #{tpu_custom_call.1} parent=5 // pred_region
        %s241 = ssub.s32 %s24, 1
        // Predicated region
        $region13: #{tpu_custom_call.1} parent=11 // pred_check
          %p242 = pneg %p178
        $region14: #{tpu_custom_call.1} parent=11 // pred_check_branch
          %244 = sbr.rel (%p242) target = $region16
        $region15: #{tpu_custom_call.1} parent=11 // pred_region
          %s246 = ssub.s32 256, 256
          %247 = vsyncadd [#allocation12], %s246
          %s248 = sshll.u32 [#allocation13], 4
          %s249 = int_to_ptr.vmem [resolvable:$true] %s248
          %254 = dma.hbm_to_vmem [thread:$0]  %s4, 256, %s249, [#allocation12], 64, 64, 4
        $region16: #{tpu_custom_call.1} parent=11 // pred_fallthru
          _
        // Predicated region
        $region17: #{tpu_custom_call.1} parent=11 // pred_check
          %p255 = pneg %p199
        $region18: #{tpu_custom_call.1} parent=11 // pred_check_branch
          %257 = sbr.rel (%p255) target = $region20
        $region19: #{tpu_custom_call.1} parent=11 // pred_region
          _
        $region20: #{tpu_custom_call.1} parent=11 // pred_fallthru
          _
      $region12: #{tpu_custom_call.1} parent=5 // pred_fallthru
        _
      %p258 = scmp.lt.s32.totalorder %s24, 2
      // Predicated region
      $region21: #{tpu_custom_call.1} parent=5 // pred_check
        %p259 = pneg %p258
      $region22: #{tpu_custom_call.1} parent=5 // pred_check_branch
        %261 = sbr.rel (%p259) target = $region24
      $region23: #{tpu_custom_call.1} parent=5 // pred_region
        // Predicated region
        $region25: #{tpu_custom_call.1} parent=23 // pred_check
          %p262 = pneg %p67
        $region26: #{tpu_custom_call.1} parent=23 // pred_check_branch
          %264 = sbr.rel (%p262) target = $region28
        $region27: #{tpu_custom_call.1} parent=23 // pred_region
          %s265 = sand.u32 %s57, 1
          %s266 = scalar_lea.sflag [#allocation6], %s265
          %s267 = sand.u32 %s57, 1
          %s268 = smul.addr %s267, 2
          %s269 = scalar_lea.vmem [#allocation5], %s268
          %s271 = ssub.s32 32, 32
          %272 = vsyncadd %s266, %s271
          %s273 = sadd.s32 %s33, %s32
          %s274 = sadd.s32 %s273, %s31
          %s275 = smul.addr %s274, 32
          %s276 = scalar_lea.hbm %s0, %s275
          %s278 = sshll.u32 %s269, 4
          %s279 = int_to_ptr.vmem [resolvable:$true] %s278
          %281 = dma.hbm_to_vmem [thread:$0]  %s276, 32, %s279, %s266
        $region28: #{tpu_custom_call.1} parent=23 // pred_fallthru
          _
        // Predicated region
        $region29: #{tpu_custom_call.1} parent=23 // pred_check
          %p282 = pneg %p95
        $region30: #{tpu_custom_call.1} parent=23 // pred_check_branch
          %284 = sbr.rel (%p282) target = $region32
        $region31: #{tpu_custom_call.1} parent=23 // pred_region
          %s285 = sand.u32 %s24, 1
          %s286 = scalar_lea.sflag [#allocation9], %s285
          %s287 = sand.u32 %s85, 1
          %s288 = smul.addr %s287, 16
          %s289 = scalar_lea.vmem [#allocation8], %s288
          %s291 = ssub.s32 256, 256
          %292 = vsyncadd %s286, %s291
          %s293 = smul.addr %s31, 4
          %s294 = sadd.s32 %s32, %s293
          %s295 = smul.addr %s294, 64
          %s296 = scalar_lea.hbm %s1, %s295
          %s297 = sshll.u32 %s289, 4
          %s298 = int_to_ptr.vmem [resolvable:$true] %s297
          %303 = dma.hbm_to_vmem [thread:$0]  %s296, 256, %s298, %s286, 64, 64, 4
        $region32: #{tpu_custom_call.1} parent=23 // pred_fallthru
          _
        // Predicated region
        $region33: #{tpu_custom_call.1} parent=23 // pred_check
          %p304 = pneg %p123
        $region34: #{tpu_custom_call.1} parent=23 // pred_check_branch
          %306 = sbr.rel (%p304) target = $region36
        $region35: #{tpu_custom_call.1} parent=23 // pred_region
          %s307 = sand.u32 %s24, 1
          %s308 = scalar_lea.sflag [#allocation9], %s307
          %s309 = sand.u32 %s113, 1
          %s310 = smul.addr %s309, 16
          %s311 = scalar_lea.vmem [#allocation10], %s310
          %s313 = ssub.s32 256, 256
          %314 = vsyncadd %s308, %s313
          %s315 = smul.addr %s31, 4
          %s316 = sadd.s32 %s33, %s315
          %s317 = smul.addr %s316, 64
          %s318 = scalar_lea.hbm %s2, %s317
          %s319 = sshll.u32 %s311, 4
          %s320 = int_to_ptr.vmem [resolvable:$true] %s319
          %325 = dma.hbm_to_vmem [thread:$0]  %s318, 256, %s320, %s308, 64, 64, 4
        $region36: #{tpu_custom_call.1} parent=23 // pred_fallthru
          _
        // Predicated region
        $region37: #{tpu_custom_call.1} parent=23 // pred_check
          %p326 = pneg %p151
        $region38: #{tpu_custom_call.1} parent=23 // pred_check_branch
          %328 = sbr.rel (%p326) target = $region40
        $region39: #{tpu_custom_call.1} parent=23 // pred_region
          %s329 = sand.u32 %s24, 1
          %s330 = scalar_lea.sflag [#allocation12], %s329
          %s331 = sand.u32 %s141, 1
          %s332 = smul.addr %s331, 16
          %s333 = scalar_lea.vmem [#allocation11], %s332
          %s335 = ssub.s32 256, 256
          %336 = vsyncadd %s330, %s335
          %s337 = smul.addr %s31, 4
          %s338 = sadd.s32 %s33, %s337
          %s339 = smul.addr %s338, 64
          %s340 = scalar_lea.hbm %s3, %s339
          %s341 = sshll.u32 %s333, 4
          %s342 = int_to_ptr.vmem [resolvable:$true] %s341
          %347 = dma.hbm_to_vmem [thread:$0]  %s340, 256, %s342, %s330, 64, 64, 4
        $region40: #{tpu_custom_call.1} parent=23 // pred_fallthru
          _
      $region24: #{tpu_custom_call.1} parent=5 // pred_fallthru
        _
      %p348 = scmp.le.s32.totalorder 1, %s24
      %p349 = scmp.lt.s32.totalorder %s24, 3
      %p350 = pnand %p348, %p349
      %p351 = pneg %p350
      // Predicated region
      $region41: #{tpu_custom_call.1} parent=5 // pred_check
        _
      $region42: #{tpu_custom_call.1} parent=5 // pred_check_branch
        %353 = sbr.rel (%p350) target = $region44
      $region43: #{tpu_custom_call.1} parent=5 // pred_region
        %s354 = ssub.s32 %s24, 1
        %s355 = sand.u32 %s60, 1
        %s356 = scalar_lea.sflag [#allocation6], %s355
        %s357 = sand.u32 %s60, 1
        %s358 = smul.addr %s357, 2
        %s359 = scalar_lea.vmem [#allocation5], %s358
        // Predicated region
        $region45: #{tpu_custom_call.1} parent=43 // pred_check
          %p360 = pneg %p73
        $region46: #{tpu_custom_call.1} parent=43 // pred_check_branch
          %362 = sbr.rel (%p360) target = $region48
        $region47: #{tpu_custom_call.1} parent=43 // pred_region
          %363 = dma.done %s356, 32
        $region48: #{tpu_custom_call.1} parent=43 // pred_fallthru
          _
        %s364 = sand.u32 %s29, 1
        %s365 = scalar_lea.sflag [#allocation9], %s364
        %s366 = sand.u32 %s88, 1
        %s367 = smul.addr %s366, 16
        %s368 = scalar_lea.vmem [#allocation8], %s367
        // Predicated region
        $region49: #{tpu_custom_call.1} parent=43 // pred_check
          %p369 = pneg %p101
        $region50: #{tpu_custom_call.1} parent=43 // pred_check_branch
          %371 = sbr.rel (%p369) target = $region52
        $region51: #{tpu_custom_call.1} parent=43 // pred_region
          %372 = dma.done %s365, 256
        $region52: #{tpu_custom_call.1} parent=43 // pred_fallthru
          _
        %s373 = sand.u32 %s29, 1
        %s374 = scalar_lea.sflag [#allocation9], %s373
        %s375 = sand.u32 %s116, 1
        %s376 = smul.addr %s375, 16
        %s377 = scalar_lea.vmem [#allocation10], %s376
        // Predicated region
        $region53: #{tpu_custom_call.1} parent=43 // pred_check
          %p378 = pneg %p129
        $region54: #{tpu_custom_call.1} parent=43 // pred_check_branch
          %380 = sbr.rel (%p378) target = $region56
        $region55: #{tpu_custom_call.1} parent=43 // pred_region
          %381 = dma.done %s374, 256
        $region56: #{tpu_custom_call.1} parent=43 // pred_fallthru
          _
        %s382 = sand.u32 %s29, 1
        %s383 = scalar_lea.sflag [#allocation12], %s382
        %s384 = sand.u32 %s144, 1
        %s385 = smul.addr %s384, 16
        %s386 = scalar_lea.vmem [#allocation11], %s385
        // Predicated region
        $region57: #{tpu_custom_call.1} parent=43 // pred_check
          %p387 = pneg %p157
        $region58: #{tpu_custom_call.1} parent=43 // pred_check_branch
          %389 = sbr.rel (%p387) target = $region60
        $region59: #{tpu_custom_call.1} parent=43 // pred_region
          %390 = dma.done %s383, 256
        $region60: #{tpu_custom_call.1} parent=43 // pred_fallthru
          _
        // Predicated region
        $region61: #{tpu_custom_call.1} parent=43 // pred_check
          %p391 = pneg %p178
        $region62: #{tpu_custom_call.1} parent=43 // pred_check_branch
          %393 = sbr.rel (%p391) target = $region64
        $region63: #{tpu_custom_call.1} parent=43 // pred_region
          %394 = dma.done [#allocation12], 256
        $region64: #{tpu_custom_call.1} parent=43 // pred_fallthru
          _
        %s395 = sand.u32 %s60, 1
        %s396 = scalar_lea.sflag [#allocation6], %s395
        %s397 = sand.u32 %s60, 1
        %s398 = smul.addr %s397, 2
        %s399 = scalar_lea.vmem [#allocation5], %s398
        %p400 = pneg %p73
        %p401 = pneg %p70
        %s402 = sand.u32 %s29, 1
        %s403 = scalar_lea.sflag [#allocation9], %s402
        %s404 = sand.u32 %s88, 1
        %s405 = smul.addr %s404, 16
        %s406 = scalar_lea.vmem [#allocation8], %s405
        %p407 = pneg %p101
        %p408 = pneg %p98
        %s409 = sand.u32 %s29, 1
        %s410 = scalar_lea.sflag [#allocation9], %s409
        %s411 = sand.u32 %s116, 1
        %s412 = smul.addr %s411, 16
        %s413 = scalar_lea.vmem [#allocation10], %s412
        %p414 = pneg %p129
        %p415 = pneg %p126
        %s416 = sand.u32 %s29, 1
        %s417 = scalar_lea.sflag [#allocation12], %s416
        %s418 = sand.u32 %s144, 1
        %s419 = smul.addr %s418, 16
        %s420 = scalar_lea.vmem [#allocation11], %s419
        %p421 = pneg %p157
        %p422 = pneg %p154
        %p423 = pneg %p178
        %p424 = pneg %p175
        %p425 = pneg %p199
        %p426 = pneg %p196
        %p427 = pneg %p227
        %p428 = pneg %p224
        %s429 = sand.u32 %s214, 1
        %s430 = scalar_lea.sflag [#allocation7], %s429
        %s431 = sand.u32 %s214, 1
        %s432 = smul.addr %s431, 8
        %s433 = scalar_lea.vmem [#allocation14], %s432
        %p438 = scmp.eq.s32.totalorder %s36, 0
        // Predicated region
        $region65: #{tpu_custom_call.1} parent=43 // pred_check
          %p439 = pneg %p438
        $region66: #{tpu_custom_call.1} parent=43 // pred_check_branch
          %441 = sbr.rel (%p439) target = $region68
        $region67: #{tpu_custom_call.1} parent=43 // pred_region
          %vm442 = vcmask 7168
          %443 = vst.msk [vmem:[#allocation2] sm:$0xff] %vm442, -inf
          %444 = vst.msk [vmem:[#allocation2 + $0x8] sm:$0xff] %vm442, -inf
          %445 = vst.msk [vmem:[#allocation2 + $0x10] sm:$0xff] %vm442, -inf
          %446 = vst.msk [vmem:[#allocation2 + $0x18] sm:$0xff] %vm442, -inf
          %447 = vst.msk [vmem:[#allocation3] sm:$0xff] %vm442, 0.0
          %448 = vst.msk [vmem:[#allocation3 + $0x8] sm:$0xff] %vm442, 0.0
          %449 = vst.msk [vmem:[#allocation3 + $0x10] sm:$0xff] %vm442, 0.0
          %450 = vst.msk [vmem:[#allocation3 + $0x18] sm:$0xff] %vm442, 0.0
          %vm451 = vcmask 64512
          %452 = vst.msk [vmem:[#allocation4] sm:$0xff] %vm451, 0.0
          %453 = vst.msk [vmem:[#allocation4 + $0x8] sm:$0xff] %vm451, 0.0
          %454 = vst.msk [vmem:[#allocation4 + $0x10] sm:$0xff] %vm451, 0.0
          %455 = vst.msk [vmem:[#allocation4 + $0x18] sm:$0xff] %vm451, 0.0
        $region68: #{tpu_custom_call.1} parent=43 // pred_fallthru
          _
        %v456 = vld [vmem:[%s368] sm:$0xf]
        %v457 = vld [vmem:[%s368 + $0x4] sm:$0xf]
        %v458 = vld [vmem:[%s368 + $0x8] sm:$0xf]
        %v459 = vld [vmem:[%s368 + $0xc] sm:$0xf]
        %v460 = vmul.bf16 %v456, 1052065461
        %v461 = vmul.bf16 %v457, 1052065461
        %v462 = vmul.bf16 %v458, 1052065461
        %v463 = vmul.bf16 %v459, 1052065461
        %v464 = vld [vmem:[%s377] sm:$0xf]
        %v465 = vld [vmem:[%s377 + $0x4] sm:$0xf]
        %v466 = vld [vmem:[%s377 + $0x8] sm:$0xf]
        %v467 = vld [vmem:[%s377 + $0xc] sm:$0xf]
        %vm468 = vcmask 64512
        %v470 = vsel %vm468, %v460, 0
        %v473 = vsel %vm468, %v464, 0
        %475 = vmatprep.subr.bf16.mxu0 0
        %476 = vmatpush1.bf16.xpose.msra.mxu0 0
        %477 = vmatprep.subr.bf16.mxu0 0
        %478 = vmatpush1.bf16.xpose.msra.mxu0 0
        %479 = vmatprep.subr.bf16.mxu0 0
        %480 = vmatpush1.bf16.xpose.msra.mxu0 0
        %481 = vmatprep.subr.bf16.mxu0 0
        %482 = vmatpush1.bf16.xpose.msra.mxu0 0
        %483 = vmatprep.subr.bf16.mxu0 0
        %484 = vmatpush1.bf16.xpose.msra.mxu0 0
        %485 = vmatprep.subr.bf16.mxu0 0
        %486 = vmatpush1.bf16.xpose.msra.mxu0 0
        %487 = vmatprep.subr.bf16.mxu0 0
        %488 = vmatpush1.bf16.xpose.msra.mxu0 0
        %489 = vmatprep.subr.bf16.mxu0 0
        %490 = vmatpush1.bf16.xpose.msra.mxu0 %v473
        %491 = vmatprep.subr.bf16.mxu0 0
        %492 = vmatpush2.bf16.xpose.msra.mxu0 0
        %493 = vmatprep.subr.bf16.mxu0 0
        %494 = vmatpush2.bf16.xpose.msra.mxu0 0
        %495 = vmatprep.subr.bf16.mxu0 0
        %496 = vmatpush2.bf16.xpose.msra.mxu0 0
        %497 = vmatprep.subr.bf16.mxu0 0
        %498 = vmatpush2.bf16.xpose.msra.mxu0 0
        %499 = vmatprep.subr.bf16.mxu0 0
        %500 = vmatpush2.bf16.xpose.msra.mxu0 0
        %501 = vmatprep.subr.bf16.mxu0 0
        %502 = vmatpush2.bf16.xpose.msra.mxu0 0
        %503 = vmatprep.subr.bf16.mxu0 0
        %504 = vmatpush2.bf16.xpose.msra.mxu0 0
        %505 = vmatprep.subr.bf16.mxu0 0
        %506 = vmatpush2.bf16.xpose.msra.mxu0 0
        %507 = vmatprep.mubr.bf16.mxu0 0
        %508 = vmatmul.mubr.bf16.gmra.mxu0 %v470
        %v509 = vpop.f32.mrf.mxu0
        %v510 = vadd.f32 0.0, %v509
        %v511 = vpop.f32.mrf.mxu0
        %v512 = vpop.f32.mrf.mxu0
        %v513 = vpop.f32.mrf.mxu0
        %514 = vdwg.mxu0
        %v516 = vsel %vm468, %v461, 0
        %v519 = vsel %vm468, %v465, 0
        %521 = vmatprep.subr.bf16.mxu0 0
        %522 = vmatpush1.bf16.xpose.msra.mxu0 0
        %523 = vmatprep.subr.bf16.mxu0 0
        %524 = vmatpush1.bf16.xpose.msra.mxu0 0
        %525 = vmatprep.subr.bf16.mxu0 0
        %526 = vmatpush1.bf16.xpose.msra.mxu0 0
        %527 = vmatprep.subr.bf16.mxu0 0
        %528 = vmatpush1.bf16.xpose.msra.mxu0 0
        %529 = vmatprep.subr.bf16.mxu0 0
        %530 = vmatpush1.bf16.xpose.msra.mxu0 0
        %531 = vmatprep.subr.bf16.mxu0 0
        %532 = vmatpush1.bf16.xpose.msra.mxu0 0
        %533 = vmatprep.subr.bf16.mxu0 0
        %534 = vmatpush1.bf16.xpose.msra.mxu0 0
        %535 = vmatprep.subr.bf16.mxu0 0
        %536 = vmatpush1.bf16.xpose.msra.mxu0 %v519
        %537 = vmatprep.subr.bf16.mxu0 0
        %538 = vmatpush2.bf16.xpose.msra.mxu0 0
        %539 = vmatprep.subr.bf16.mxu0 0
        %540 = vmatpush2.bf16.xpose.msra.mxu0 0
        %541 = vmatprep.subr.bf16.mxu0 0
        %542 = vmatpush2.bf16.xpose.msra.mxu0 0
        %543 = vmatprep.subr.bf16.mxu0 0
        %544 = vmatpush2.bf16.xpose.msra.mxu0 0
        %545 = vmatprep.subr.bf16.mxu0 0
        %546 = vmatpush2.bf16.xpose.msra.mxu0 0
        %547 = vmatprep.subr.bf16.mxu0 0
        %548 = vmatpush2.bf16.xpose.msra.mxu0 0
        %549 = vmatprep.subr.bf16.mxu0 0
        %550 = vmatpush2.bf16.xpose.msra.mxu0 0
        %551 = vmatprep.subr.bf16.mxu0 0
        %552 = vmatpush2.bf16.xpose.msra.mxu0 0
        %553 = vmatprep.mubr.bf16.mxu0 0
        %554 = vmatmul.mubr.bf16.gmra.mxu0 %v516
        %v555 = vpop.f32.mrf.mxu0
        %v556 = vadd.f32 0.0, %v555
        %v557 = vpop.f32.mrf.mxu0
        %v558 = vpop.f32.mrf.mxu0
        %v559 = vpop.f32.mrf.mxu0
        %560 = vdwg.mxu0
        %v562 = vsel %vm468, %v462, 0
        %v565 = vsel %vm468, %v466, 0
        %567 = vmatprep.subr.bf16.mxu0 0
        %568 = vmatpush1.bf16.xpose.msra.mxu0 0
        %569 = vmatprep.subr.bf16.mxu0 0
        %570 = vmatpush1.bf16.xpose.msra.mxu0 0
        %571 = vmatprep.subr.bf16.mxu0 0
        %572 = vmatpush1.bf16.xpose.msra.mxu0 0
        %573 = vmatprep.subr.bf16.mxu0 0
        %574 = vmatpush1.bf16.xpose.msra.mxu0 0
        %575 = vmatprep.subr.bf16.mxu0 0
        %576 = vmatpush1.bf16.xpose.msra.mxu0 0
        %577 = vmatprep.subr.bf16.mxu0 0
        %578 = vmatpush1.bf16.xpose.msra.mxu0 0
        %579 = vmatprep.subr.bf16.mxu0 0
        %580 = vmatpush1.bf16.xpose.msra.mxu0 0
        %581 = vmatprep.subr.bf16.mxu0 0
        %582 = vmatpush1.bf16.xpose.msra.mxu0 %v565
        %583 = vmatprep.subr.bf16.mxu0 0
        %584 = vmatpush2.bf16.xpose.msra.mxu0 0
        %585 = vmatprep.subr.bf16.mxu0 0
        %586 = vmatpush2.bf16.xpose.msra.mxu0 0
        %587 = vmatprep.subr.bf16.mxu0 0
        %588 = vmatpush2.bf16.xpose.msra.mxu0 0
        %589 = vmatprep.subr.bf16.mxu0 0
        %590 = vmatpush2.bf16.xpose.msra.mxu0 0
        %591 = vmatprep.subr.bf16.mxu0 0
        %592 = vmatpush2.bf16.xpose.msra.mxu0 0
        %593 = vmatprep.subr.bf16.mxu0 0
        %594 = vmatpush2.bf16.xpose.msra.mxu0 0
        %595 = vmatprep.subr.bf16.mxu0 0
        %596 = vmatpush2.bf16.xpose.msra.mxu0 0
        %597 = vmatprep.subr.bf16.mxu0 0
        %598 = vmatpush2.bf16.xpose.msra.mxu0 0
        %599 = vmatprep.mubr.bf16.mxu0 0
        %600 = vmatmul.mubr.bf16.gmra.mxu0 %v562
        %v601 = vpop.f32.mrf.mxu0
        %v602 = vadd.f32 0.0, %v601
        %v603 = vpop.f32.mrf.mxu0
        %v604 = vpop.f32.mrf.mxu0
        %v605 = vpop.f32.mrf.mxu0
        %606 = vdwg.mxu0
        %v608 = vsel %vm468, %v463, 0
        %v611 = vsel %vm468, %v467, 0
        %613 = vmatprep.subr.bf16.mxu0 0
        %614 = vmatpush1.bf16.xpose.msra.mxu0 0
        %615 = vmatprep.subr.bf16.mxu0 0
        %616 = vmatpush1.bf16.xpose.msra.mxu0 0
        %617 = vmatprep.subr.bf16.mxu0 0
        %618 = vmatpush1.bf16.xpose.msra.mxu0 0
        %619 = vmatprep.subr.bf16.mxu0 0
        %620 = vmatpush1.bf16.xpose.msra.mxu0 0
        %621 = vmatprep.subr.bf16.mxu0 0
        %622 = vmatpush1.bf16.xpose.msra.mxu0 0
        %623 = vmatprep.subr.bf16.mxu0 0
        %624 = vmatpush1.bf16.xpose.msra.mxu0 0
        %625 = vmatprep.subr.bf16.mxu0 0
        %626 = vmatpush1.bf16.xpose.msra.mxu0 0
        %627 = vmatprep.subr.bf16.mxu0 0
        %628 = vmatpush1.bf16.xpose.msra.mxu0 %v611
        %629 = vmatprep.subr.bf16.mxu0 0
        %630 = vmatpush2.bf16.xpose.msra.mxu0 0
        %631 = vmatprep.subr.bf16.mxu0 0
        %632 = vmatpush2.bf16.xpose.msra.mxu0 0
        %633 = vmatprep.subr.bf16.mxu0 0
        %634 = vmatpush2.bf16.xpose.msra.mxu0 0
        %635 = vmatprep.subr.bf16.mxu0 0
        %636 = vmatpush2.bf16.xpose.msra.mxu0 0
        %637 = vmatprep.subr.bf16.mxu0 0
        %638 = vmatpush2.bf16.xpose.msra.mxu0 0
        %639 = vmatprep.subr.bf16.mxu0 0
        %640 = vmatpush2.bf16.xpose.msra.mxu0 0
        %641 = vmatprep.subr.bf16.mxu0 0
        %642 = vmatpush2.bf16.xpose.msra.mxu0 0
        %643 = vmatprep.subr.bf16.mxu0 0
        %644 = vmatpush2.bf16.xpose.msra.mxu0 0
        %645 = vmatprep.mubr.bf16.mxu0 0
        %646 = vmatmul.mubr.bf16.gmra.mxu0 %v608
        %v647 = vpop.f32.mrf.mxu0
        %v648 = vadd.f32 0.0, %v647
        %v649 = vpop.f32.mrf.mxu0
        %v650 = vpop.f32.mrf.mxu0
        %v651 = vpop.f32.mrf.mxu0
        %652 = vdwg.mxu0
        %v653 = vld [vmem:[%s359] sm:$0x3]
        %vm654 = vnez %v653
        %v655 = vsel %vm654, 16843009, 0
        %v656 = vunpack.c.0.s8 %v655
        %vm657 = vcmp.ne.s32.totalorder %v656, 0
        %v658 = vsel %vm657, 1, 0
        %vm659 = vcmp.eq.s32.totalorder %v658, 1
        %v660 = vsel %vm659, %v510, -1e+30
        %v661 = vsel %vm659, %v556, -1e+30
        %v662 = vsel %vm659, %v602, -1e+30
        %v663 = vsel %vm659, %v648, -1e+30
        %v664 = vld [vmem:[#allocation2] sm:$0xff]
        %v665 = vld [vmem:[#allocation2 + $0x8] sm:$0xff]
        %v666 = vld [vmem:[#allocation2 + $0x10] sm:$0xff]
        %v667 = vld [vmem:[#allocation2 + $0x18] sm:$0xff]
        %v668 = vsel %vm468, %v660, -inf
        %669 = vmax.xlane.f32.xlu0 %v668
        %v670 = vpop.xlane.xlu0 %669
        %v671 = vsel %vm468, %v661, -inf
        %672 = vmax.xlane.f32.xlu0 %v671
        %v673 = vpop.xlane.xlu0 %672
        %v674 = vsel %vm468, %v662, -inf
        %675 = vmax.xlane.f32.xlu0 %v674
        %v676 = vpop.xlane.xlu0 %675
        %v677 = vsel %vm468, %v663, -inf
        %678 = vmax.xlane.f32.xlu0 %v677
        %v679 = vpop.xlane.xlu0 %678
        %v680 = vmax.f32 %v664, %v670
        %v681 = vmax.f32 %v665, %v673
        %v682 = vmax.f32 %v666, %v676
        %v683 = vmax.f32 %v667, %v679
        %v684 = vsub.f32 %v664, %v680
        %v685 = vsub.f32 %v665, %v681
        %v686 = vsub.f32 %v666, %v682
        %v687 = vsub.f32 %v667, %v683
        %v688 = vmul.f32 %v684, 1.442695
        %v689 = vpow.pop %v688
        %v690 = vmul.f32 %v685, 1.442695
        %v691 = vpow.pop %v690
        %v692 = vmul.f32 %v686, 1.442695
        %v693 = vpow.pop %v692
        %v694 = vmul.f32 %v687, 1.442695
        %v695 = vpow.pop %v694
        %697 = vset.pattern.permute.xlu0 0
        %698 = vperm.xlu0 %697, %v680
        %v699 = vpop.permute.xlu0 %698
        %702 = vset.pattern.permute.xlu0 0
        %703 = vperm.xlu0 %702, %v681
        %v704 = vpop.permute.xlu0 %703
        %707 = vset.pattern.permute.xlu0 0
        %708 = vperm.xlu0 %707, %v682
        %v709 = vpop.permute.xlu0 %708
        %712 = vset.pattern.permute.xlu0 0
        %713 = vperm.xlu0 %712, %v683
        %v714 = vpop.permute.xlu0 %713
        %v716 = vsub.f32 %v660, %v699
        %v717 = vsub.f32 %v661, %v704
        %v718 = vsub.f32 %v662, %v709
        %v719 = vsub.f32 %v663, %v714
        %v720 = vmul.f32 %v716, 1.442695
        %v721 = vpow.pop %v720
        %v722 = vmul.f32 %v717, 1.442695
        %v723 = vpow.pop %v722
        %v724 = vmul.f32 %v718, 1.442695
        %v725 = vpow.pop %v724
        %v726 = vmul.f32 %v719, 1.442695
        %v727 = vpow.pop %v726
        %v728 = vld [vmem:[#allocation3] sm:$0xff]
        %v729 = vld [vmem:[#allocation3 + $0x8] sm:$0xff]
        %v730 = vld [vmem:[#allocation3 + $0x10] sm:$0xff]
        %v731 = vld [vmem:[#allocation3 + $0x18] sm:$0xff]
        %v732 = vmul.f32 %v689, %v728
        %v733 = vmul.f32 %v691, %v729
        %v734 = vmul.f32 %v693, %v730
        %v735 = vmul.f32 %v695, %v731
        %v736 = vsel %vm468, %v721, 0.0
        %737 = vadd.xlane.f32.xlu0 %v736
        %v738 = vpop.xlane.xlu0 %737
        %v739 = vsel %vm468, %v723, 0.0
        %740 = vadd.xlane.f32.xlu0 %v739
        %v741 = vpop.xlane.xlu0 %740
        %v742 = vsel %vm468, %v725, 0.0
        %743 = vadd.xlane.f32.xlu0 %v742
        %v744 = vpop.xlane.xlu0 %743
        %v745 = vsel %vm468, %v727, 0.0
        %746 = vadd.xlane.f32.xlu0 %v745
        %v747 = vpop.xlane.xlu0 %746
        %v748 = vadd.f32 %v732, %v738
        %v749 = vadd.f32 %v733, %v741
        %v750 = vadd.f32 %v734, %v744
        %v751 = vadd.f32 %v735, %v747
        %vm752 = vcmask 7168
        %753 = vst.msk [vmem:[#allocation3] sm:$0xff] %vm752, %v748
        %754 = vst.msk [vmem:[#allocation3 + $0x8] sm:$0xff] %vm752, %v749
        %755 = vst.msk [vmem:[#allocation3 + $0x10] sm:$0xff] %vm752, %v750
        %756 = vst.msk [vmem:[#allocation3 + $0x18] sm:$0xff] %vm752, %v751
        %v757 = vld [vmem:[#allocation4] sm:$0xff]
        %v758 = vld [vmem:[#allocation4 + $0x8] sm:$0xff]
        %v759 = vld [vmem:[#allocation4 + $0x10] sm:$0xff]
        %v760 = vld [vmem:[#allocation4 + $0x18] sm:$0xff]
        %762 = vset.pattern.permute.xlu0 0
        %763 = vperm.xlu0 %762, %v689
        %v764 = vpop.permute.xlu0 %763
        %767 = vset.pattern.permute.xlu0 0
        %768 = vperm.xlu0 %767, %v691
        %v769 = vpop.permute.xlu0 %768
        %772 = vset.pattern.permute.xlu0 0
        %773 = vperm.xlu0 %772, %v693
        %v774 = vpop.permute.xlu0 %773
        %777 = vset.pattern.permute.xlu0 0
        %778 = vperm.xlu0 %777, %v695
        %v779 = vpop.permute.xlu0 %778
        %v781 = vmul.f32 %v764, %v757
        %v782 = vmul.f32 %v769, %v758
        %v783 = vmul.f32 %v774, %v759
        %v784 = vmul.f32 %v779, %v760
        %v785 = vpack.c.bf16 %v721, %v721
        %v786 = vpack.c.bf16 %v723, %v723
        %v787 = vpack.c.bf16 %v725, %v725
        %v788 = vpack.c.bf16 %v727, %v727
        %v789 = vld [vmem:[%s386] sm:$0xf]
        %v790 = vld [vmem:[%s386 + $0x4] sm:$0xf]
        %v791 = vld [vmem:[%s386 + $0x8] sm:$0xf]
        %v792 = vld [vmem:[%s386 + $0xc] sm:$0xf]
        %v794 = vsel %vm468, %v785, 0
        %vm796 = vcmask 1043456
        %v798 = vsel %vm796, %v789, 0
        %800 = vmatprep.subr.bf16.mxu0 0
        %801 = vmatpush1.bf16.msra.mxu0 0
        %802 = vmatprep.subr.bf16.mxu0 0
        %803 = vmatpush1.bf16.msra.mxu0 0
        %804 = vmatprep.subr.bf16.mxu0 0
        %805 = vmatpush1.bf16.msra.mxu0 0
        %806 = vmatprep.subr.bf16.mxu0 0
        %807 = vmatpush1.bf16.msra.mxu0 0
        %808 = vmatprep.subr.bf16.mxu0 0
        %809 = vmatpush1.bf16.msra.mxu0 0
        %810 = vmatprep.subr.bf16.mxu0 0
        %811 = vmatpush1.bf16.msra.mxu0 0
        %812 = vmatprep.subr.bf16.mxu0 0
        %813 = vmatpush1.bf16.msra.mxu0 0
        %814 = vmatprep.subr.bf16.mxu0 0
        %815 = vmatpush1.bf16.msra.mxu0 %v798
        %816 = vmatprep.subr.bf16.mxu0 0
        %817 = vmatpush2.bf16.msra.mxu0 0
        %818 = vmatprep.subr.bf16.mxu0 0
        %819 = vmatpush2.bf16.msra.mxu0 0
        %820 = vmatprep.subr.bf16.mxu0 0
        %821 = vmatpush2.bf16.msra.mxu0 0
        %822 = vmatprep.subr.bf16.mxu0 0
        %823 = vmatpush2.bf16.msra.mxu0 0
        %824 = vmatprep.subr.bf16.mxu0 0
        %825 = vmatpush2.bf16.msra.mxu0 0
        %826 = vmatprep.subr.bf16.mxu0 0
        %827 = vmatpush2.bf16.msra.mxu0 0
        %828 = vmatprep.subr.bf16.mxu0 0
        %829 = vmatpush2.bf16.msra.mxu0 0
        %830 = vmatprep.subr.bf16.mxu0 0
        %831 = vmatpush2.bf16.msra.mxu0 0
        %832 = vmatprep.mubr.bf16.mxu0 0
        %833 = vmatmul.mubr.bf16.gmra.mxu0 %v794
        %v834 = vpop.f32.mrf.mxu0
        %v835 = vadd.f32 0.0, %v834
        %v836 = vpop.f32.mrf.mxu0
        %v837 = vpop.f32.mrf.mxu0
        %v838 = vpop.f32.mrf.mxu0
        %839 = vdwg.mxu0
        %v841 = vsel %vm468, %v786, 0
        %v844 = vsel %vm796, %v790, 0
        %846 = vmatprep.subr.bf16.mxu0 0
        %847 = vmatpush1.bf16.msra.mxu0 0
        %848 = vmatprep.subr.bf16.mxu0 0
        %849 = vmatpush1.bf16.msra.mxu0 0
        %850 = vmatprep.subr.bf16.mxu0 0
        %851 = vmatpush1.bf16.msra.mxu0 0
        %852 = vmatprep.subr.bf16.mxu0 0
        %853 = vmatpush1.bf16.msra.mxu0 0
        %854 = vmatprep.subr.bf16.mxu0 0
        %855 = vmatpush1.bf16.msra.mxu0 0
        %856 = vmatprep.subr.bf16.mxu0 0
        %857 = vmatpush1.bf16.msra.mxu0 0
        %858 = vmatprep.subr.bf16.mxu0 0
        %859 = vmatpush1.bf16.msra.mxu0 0
        %860 = vmatprep.subr.bf16.mxu0 0
        %861 = vmatpush1.bf16.msra.mxu0 %v844
        %862 = vmatprep.subr.bf16.mxu0 0
        %863 = vmatpush2.bf16.msra.mxu0 0
        %864 = vmatprep.subr.bf16.mxu0 0
        %865 = vmatpush2.bf16.msra.mxu0 0
        %866 = vmatprep.subr.bf16.mxu0 0
        %867 = vmatpush2.bf16.msra.mxu0 0
        %868 = vmatprep.subr.bf16.mxu0 0
        %869 = vmatpush2.bf16.msra.mxu0 0
        %870 = vmatprep.subr.bf16.mxu0 0
        %871 = vmatpush2.bf16.msra.mxu0 0
        %872 = vmatprep.subr.bf16.mxu0 0
        %873 = vmatpush2.bf16.msra.mxu0 0
        %874 = vmatprep.subr.bf16.mxu0 0
        %875 = vmatpush2.bf16.msra.mxu0 0
        %876 = vmatprep.subr.bf16.mxu0 0
        %877 = vmatpush2.bf16.msra.mxu0 0
        %878 = vmatprep.mubr.bf16.mxu0 0
        %879 = vmatmul.mubr.bf16.gmra.mxu0 %v841
        %v880 = vpop.f32.mrf.mxu0
        %v881 = vadd.f32 0.0, %v880
        %v882 = vpop.f32.mrf.mxu0
        %v883 = vpop.f32.mrf.mxu0
        %v884 = vpop.f32.mrf.mxu0
        %885 = vdwg.mxu0
        %v887 = vsel %vm468, %v787, 0
        %v890 = vsel %vm796, %v791, 0
        %892 = vmatprep.subr.bf16.mxu0 0
        %893 = vmatpush1.bf16.msra.mxu0 0
        %894 = vmatprep.subr.bf16.mxu0 0
        %895 = vmatpush1.bf16.msra.mxu0 0
        %896 = vmatprep.subr.bf16.mxu0 0
        %897 = vmatpush1.bf16.msra.mxu0 0
        %898 = vmatprep.subr.bf16.mxu0 0
        %899 = vmatpush1.bf16.msra.mxu0 0
        %900 = vmatprep.subr.bf16.mxu0 0
        %901 = vmatpush1.bf16.msra.mxu0 0
        %902 = vmatprep.subr.bf16.mxu0 0
        %903 = vmatpush1.bf16.msra.mxu0 0
        %904 = vmatprep.subr.bf16.mxu0 0
        %905 = vmatpush1.bf16.msra.mxu0 0
        %906 = vmatprep.subr.bf16.mxu0 0
        %907 = vmatpush1.bf16.msra.mxu0 %v890
        %908 = vmatprep.subr.bf16.mxu0 0
        %909 = vmatpush2.bf16.msra.mxu0 0
        %910 = vmatprep.subr.bf16.mxu0 0
        %911 = vmatpush2.bf16.msra.mxu0 0
        %912 = vmatprep.subr.bf16.mxu0 0
        %913 = vmatpush2.bf16.msra.mxu0 0
        %914 = vmatprep.subr.bf16.mxu0 0
        %915 = vmatpush2.bf16.msra.mxu0 0
        %916 = vmatprep.subr.bf16.mxu0 0
        %917 = vmatpush2.bf16.msra.mxu0 0
        %918 = vmatprep.subr.bf16.mxu0 0
        %919 = vmatpush2.bf16.msra.mxu0 0
        %920 = vmatprep.subr.bf16.mxu0 0
        %921 = vmatpush2.bf16.msra.mxu0 0
        %922 = vmatprep.subr.bf16.mxu0 0
        %923 = vmatpush2.bf16.msra.mxu0 0
        %924 = vmatprep.mubr.bf16.mxu0 0
        %925 = vmatmul.mubr.bf16.gmra.mxu0 %v887
        %v926 = vpop.f32.mrf.mxu0
        %v927 = vadd.f32 0.0, %v926
        %v928 = vpop.f32.mrf.mxu0
        %v929 = vpop.f32.mrf.mxu0
        %v930 = vpop.f32.mrf.mxu0
        %931 = vdwg.mxu0
        %v933 = vsel %vm468, %v788, 0
        %v936 = vsel %vm796, %v792, 0
        %938 = vmatprep.subr.bf16.mxu0 0
        %939 = vmatpush1.bf16.msra.mxu0 0
        %940 = vmatprep.subr.bf16.mxu0 0
        %941 = vmatpush1.bf16.msra.mxu0 0
        %942 = vmatprep.subr.bf16.mxu0 0
        %943 = vmatpush1.bf16.msra.mxu0 0
        %944 = vmatprep.subr.bf16.mxu0 0
        %945 = vmatpush1.bf16.msra.mxu0 0
        %946 = vmatprep.subr.bf16.mxu0 0
        %947 = vmatpush1.bf16.msra.mxu0 0
        %948 = vmatprep.subr.bf16.mxu0 0
        %949 = vmatpush1.bf16.msra.mxu0 0
        %950 = vmatprep.subr.bf16.mxu0 0
        %951 = vmatpush1.bf16.msra.mxu0 0
        %952 = vmatprep.subr.bf16.mxu0 0
        %953 = vmatpush1.bf16.msra.mxu0 %v936
        %954 = vmatprep.subr.bf16.mxu0 0
        %955 = vmatpush2.bf16.msra.mxu0 0
        %956 = vmatprep.subr.bf16.mxu0 0
        %957 = vmatpush2.bf16.msra.mxu0 0
        %958 = vmatprep.subr.bf16.mxu0 0
        %959 = vmatpush2.bf16.msra.mxu0 0
        %960 = vmatprep.subr.bf16.mxu0 0
        %961 = vmatpush2.bf16.msra.mxu0 0
        %962 = vmatprep.subr.bf16.mxu0 0
        %963 = vmatpush2.bf16.msra.mxu0 0
        %964 = vmatprep.subr.bf16.mxu0 0
        %965 = vmatpush2.bf16.msra.mxu0 0
        %966 = vmatprep.subr.bf16.mxu0 0
        %967 = vmatpush2.bf16.msra.mxu0 0
        %968 = vmatprep.subr.bf16.mxu0 0
        %969 = vmatpush2.bf16.msra.mxu0 0
        %970 = vmatprep.mubr.bf16.mxu0 0
        %971 = vmatmul.mubr.bf16.gmra.mxu0 %v933
        %v972 = vpop.f32.mrf.mxu0
        %v973 = vadd.f32 0.0, %v972
        %v974 = vpop.f32.mrf.mxu0
        %v975 = vpop.f32.mrf.mxu0
        %v976 = vpop.f32.mrf.mxu0
        %977 = vdwg.mxu0
        %v978 = vadd.f32 %v781, %v835
        %v979 = vadd.f32 %v782, %v881
        %v980 = vadd.f32 %v783, %v927
        %v981 = vadd.f32 %v784, %v973
        %982 = vst.msk [vmem:[#allocation4] sm:$0xff] %vm468, %v978
        %983 = vst.msk [vmem:[#allocation4 + $0x8] sm:$0xff] %vm468, %v979
        %984 = vst.msk [vmem:[#allocation4 + $0x10] sm:$0xff] %vm468, %v980
        %985 = vst.msk [vmem:[#allocation4 + $0x18] sm:$0xff] %vm468, %v981
        %986 = vst.msk [vmem:[#allocation2] sm:$0xff] %vm752, %v680
        %987 = vst.msk [vmem:[#allocation2 + $0x8] sm:$0xff] %vm752, %v681
        %988 = vst.msk [vmem:[#allocation2 + $0x10] sm:$0xff] %vm752, %v682
        %989 = vst.msk [vmem:[#allocation2 + $0x18] sm:$0xff] %vm752, %v683
        // Predicated region
        $region69: #{tpu_custom_call.1} parent=43 // pred_check
          %p990 = pneg %p438
        $region70: #{tpu_custom_call.1} parent=43 // pred_check_branch
          %992 = sbr.rel (%p990) target = $region72
        $region71: #{tpu_custom_call.1} parent=43 // pred_region
          %v993 = vld [vmem:[#allocation4] sm:$0xff]
          %v994 = vld [vmem:[#allocation4 + $0x8] sm:$0xff]
          %v995 = vld [vmem:[#allocation4 + $0x10] sm:$0xff]
          %v996 = vld [vmem:[#allocation4 + $0x18] sm:$0xff]
          %v997 = vld [vmem:[#allocation3] sm:$0xff]
          %v998 = vld [vmem:[#allocation3 + $0x8] sm:$0xff]
          %v999 = vld [vmem:[#allocation3 + $0x10] sm:$0xff]
          %v1000 = vld [vmem:[#allocation3 + $0x18] sm:$0xff]
          %v1001 = vrcp.pop %v997
          %v1002 = vrcp.pop %v998
          %v1003 = vrcp.pop %v999
          %v1004 = vrcp.pop %v1000
          %1006 = vset.pattern.permute.xlu0 0
          %1007 = vperm.xlu0 %1006, %v1001
          %v1008 = vpop.permute.xlu0 %1007
          %1011 = vset.pattern.permute.xlu0 0
          %1012 = vperm.xlu0 %1011, %v1002
          %v1013 = vpop.permute.xlu0 %1012
          %1016 = vset.pattern.permute.xlu0 0
          %1017 = vperm.xlu0 %1016, %v1003
          %v1018 = vpop.permute.xlu0 %1017
          %1021 = vset.pattern.permute.xlu0 0
          %1022 = vperm.xlu0 %1021, %v1004
          %v1023 = vpop.permute.xlu0 %1022
          %v1025 = vmul.f32 %v993, %v1008
          %v1026 = vmul.f32 %v994, %v1013
          %v1027 = vmul.f32 %v995, %v1018
          %v1028 = vmul.f32 %v996, %v1023
          %v1029 = vpack.c.bf16 %v1025, %v1025
          %v1030 = vpack.c.bf16 %v1026, %v1026
          %v1031 = vpack.c.bf16 %v1027, %v1027
          %v1032 = vpack.c.bf16 %v1028, %v1028
          %v1033 = vld [vmem:[#allocation13] sm:$0xf]
          %s1034 = scalar_lea.vmem [#allocation13], 4
          %v1035 = vld [vmem:[%s1034] sm:$0xf]
          %v1037 = vsel %vm468, %v1030, 0
          %v1040 = vsel %vm796, %v1035, 0
          %1042 = vmatprep.subr.bf16.mxu0 0
          %1043 = vmatpush1.bf16.msra.mxu0 0
          %1044 = vmatprep.subr.bf16.mxu0 0
          %1045 = vmatpush1.bf16.msra.mxu0 0
          %1046 = vmatprep.subr.bf16.mxu0 0
          %1047 = vmatpush1.bf16.msra.mxu0 0
          %1048 = vmatprep.subr.bf16.mxu0 0
          %1049 = vmatpush1.bf16.msra.mxu0 0
          %1050 = vmatprep.subr.bf16.mxu0 0
          %1051 = vmatpush1.bf16.msra.mxu0 0
          %1052 = vmatprep.subr.bf16.mxu0 0
          %1053 = vmatpush1.bf16.msra.mxu0 0
          %1054 = vmatprep.subr.bf16.mxu0 0
          %1055 = vmatpush1.bf16.msra.mxu0 0
          %1056 = vmatprep.subr.bf16.mxu0 0
          %1057 = vmatpush1.bf16.msra.mxu0 %v1040
          %1058 = vmatprep.subr.bf16.mxu0 0
          %1059 = vmatpush2.bf16.msra.mxu0 0
          %1060 = vmatprep.subr.bf16.mxu0 0
          %1061 = vmatpush2.bf16.msra.mxu0 0
          %1062 = vmatprep.subr.bf16.mxu0 0
          %1063 = vmatpush2.bf16.msra.mxu0 0
          %1064 = vmatprep.subr.bf16.mxu0 0
          %1065 = vmatpush2.bf16.msra.mxu0 0
          %1066 = vmatprep.subr.bf16.mxu0 0
          %1067 = vmatpush2.bf16.msra.mxu0 0
          %1068 = vmatprep.subr.bf16.mxu0 0
          %1069 = vmatpush2.bf16.msra.mxu0 0
          %1070 = vmatprep.subr.bf16.mxu0 0
          %1071 = vmatpush2.bf16.msra.mxu0 0
          %1072 = vmatprep.subr.bf16.mxu0 0
          %1073 = vmatpush2.bf16.msra.mxu0 0
          %1074 = vmatprep.mubr.bf16.mxu0 0
          %1075 = vmatmul.mubr.bf16.gmra.mxu0 %v1037
          %v1076 = vpop.f32.mrf.mxu0
          %v1077 = vadd.f32 0.0, %v1076
          %v1078 = vpop.f32.mrf.mxu0
          %v1079 = vpop.f32.mrf.mxu0
          %v1080 = vpop.f32.mrf.mxu0
          %1081 = vdwg.mxu0
          %v1083 = vsel %vm468, %v1029, 0
          %v1086 = vsel %vm796, %v1033, 0
          %1088 = vmatprep.subr.bf16.mxu0 0
          %1089 = vmatpush1.bf16.msra.mxu0 0
          %1090 = vmatprep.subr.bf16.mxu0 0
          %1091 = vmatpush1.bf16.msra.mxu0 0
          %1092 = vmatprep.subr.bf16.mxu0 0
          %1093 = vmatpush1.bf16.msra.mxu0 0
          %1094 = vmatprep.subr.bf16.mxu0 0
          %1095 = vmatpush1.bf16.msra.mxu0 0
          %1096 = vmatprep.subr.bf16.mxu0 0
          %1097 = vmatpush1.bf16.msra.mxu0 0
          %1098 = vmatprep.subr.bf16.mxu0 0
          %1099 = vmatpush1.bf16.msra.mxu0 0
          %1100 = vmatprep.subr.bf16.mxu0 0
          %1101 = vmatpush1.bf16.msra.mxu0 0
          %1102 = vmatprep.subr.bf16.mxu0 0
          %1103 = vmatpush1.bf16.msra.mxu0 %v1086
          %1104 = vmatprep.subr.bf16.mxu0 0
          %1105 = vmatpush2.bf16.msra.mxu0 0
          %1106 = vmatprep.subr.bf16.mxu0 0
          %1107 = vmatpush2.bf16.msra.mxu0 0
          %1108 = vmatprep.subr.bf16.mxu0 0
          %1109 = vmatpush2.bf16.msra.mxu0 0
          %1110 = vmatprep.subr.bf16.mxu0 0
          %1111 = vmatpush2.bf16.msra.mxu0 0
          %1112 = vmatprep.subr.bf16.mxu0 0
          %1113 = vmatpush2.bf16.msra.mxu0 0
          %1114 = vmatprep.subr.bf16.mxu0 0
          %1115 = vmatpush2.bf16.msra.mxu0 0
          %1116 = vmatprep.subr.bf16.mxu0 0
          %1117 = vmatpush2.bf16.msra.mxu0 0
          %1118 = vmatprep.subr.bf16.mxu0 0
          %1119 = vmatpush2.bf16.msra.mxu0 0
          %1120 = vmatprep.mubr.bf16.mxu0 0
          %1121 = vmatmul.mubr.bf16.gmra.mxu0 %v1083
          %v1122 = vpop.f32.mrf.mxu0
          %v1123 = vadd.f32 %v1077, %v1122
          %v1124 = vpop.f32.mrf.mxu0
          %v1125 = vpop.f32.mrf.mxu0
          %v1126 = vpop.f32.mrf.mxu0
          %1127 = vdwg.mxu0
          %s1128 = scalar_lea.vmem [#allocation13], 8
          %v1129 = vld [vmem:[%s1128] sm:$0xf]
          %v1131 = vsel %vm468, %v1031, 0
          %v1134 = vsel %vm796, %v1129, 0
          %1136 = vmatprep.subr.bf16.mxu0 0
          %1137 = vmatpush1.bf16.msra.mxu0 0
          %1138 = vmatprep.subr.bf16.mxu0 0
          %1139 = vmatpush1.bf16.msra.mxu0 0
          %1140 = vmatprep.subr.bf16.mxu0 0
          %1141 = vmatpush1.bf16.msra.mxu0 0
          %1142 = vmatprep.subr.bf16.mxu0 0
          %1143 = vmatpush1.bf16.msra.mxu0 0
          %1144 = vmatprep.subr.bf16.mxu0 0
          %1145 = vmatpush1.bf16.msra.mxu0 0
          %1146 = vmatprep.subr.bf16.mxu0 0
          %1147 = vmatpush1.bf16.msra.mxu0 0
          %1148 = vmatprep.subr.bf16.mxu0 0
          %1149 = vmatpush1.bf16.msra.mxu0 0
          %1150 = vmatprep.subr.bf16.mxu0 0
          %1151 = vmatpush1.bf16.msra.mxu0 %v1134
          %1152 = vmatprep.subr.bf16.mxu0 0
          %1153 = vmatpush2.bf16.msra.mxu0 0
          %1154 = vmatprep.subr.bf16.mxu0 0
          %1155 = vmatpush2.bf16.msra.mxu0 0
          %1156 = vmatprep.subr.bf16.mxu0 0
          %1157 = vmatpush2.bf16.msra.mxu0 0
          %1158 = vmatprep.subr.bf16.mxu0 0
          %1159 = vmatpush2.bf16.msra.mxu0 0
          %1160 = vmatprep.subr.bf16.mxu0 0
          %1161 = vmatpush2.bf16.msra.mxu0 0
          %1162 = vmatprep.subr.bf16.mxu0 0
          %1163 = vmatpush2.bf16.msra.mxu0 0
          %1164 = vmatprep.subr.bf16.mxu0 0
          %1165 = vmatpush2.bf16.msra.mxu0 0
          %1166 = vmatprep.subr.bf16.mxu0 0
          %1167 = vmatpush2.bf16.msra.mxu0 0
          %1168 = vmatprep.mubr.bf16.mxu0 0
          %1169 = vmatmul.mubr.bf16.gmra.mxu0 %v1131
          %v1170 = vpop.f32.mrf.mxu0
          %v1171 = vadd.f32 0.0, %v1170
          %v1172 = vpop.f32.mrf.mxu0
          %v1173 = vpop.f32.mrf.mxu0
          %v1174 = vpop.f32.mrf.mxu0
          %1175 = vdwg.mxu0
          %v1176 = vadd.f32 %v1123, %v1171
          %s1177 = scalar_lea.vmem [#allocation13], 12
          %v1178 = vld [vmem:[%s1177] sm:$0xf]
          %v1180 = vsel %vm468, %v1032, 0
          %v1183 = vsel %vm796, %v1178, 0
          %1185 = vmatprep.subr.bf16.mxu0 0
          %1186 = vmatpush1.bf16.msra.mxu0 0
          %1187 = vmatprep.subr.bf16.mxu0 0
          %1188 = vmatpush1.bf16.msra.mxu0 0
          %1189 = vmatprep.subr.bf16.mxu0 0
          %1190 = vmatpush1.bf16.msra.mxu0 0
          %1191 = vmatprep.subr.bf16.mxu0 0
          %1192 = vmatpush1.bf16.msra.mxu0 0
          %1193 = vmatprep.subr.bf16.mxu0 0
          %1194 = vmatpush1.bf16.msra.mxu0 0
          %1195 = vmatprep.subr.bf16.mxu0 0
          %1196 = vmatpush1.bf16.msra.mxu0 0
          %1197 = vmatprep.subr.bf16.mxu0 0
          %1198 = vmatpush1.bf16.msra.mxu0 0
          %1199 = vmatprep.subr.bf16.mxu0 0
          %1200 = vmatpush1.bf16.msra.mxu0 %v1183
          %1201 = vmatprep.subr.bf16.mxu0 0
          %1202 = vmatpush2.bf16.msra.mxu0 0
          %1203 = vmatprep.subr.bf16.mxu0 0
          %1204 = vmatpush2.bf16.msra.mxu0 0
          %1205 = vmatprep.subr.bf16.mxu0 0
          %1206 = vmatpush2.bf16.msra.mxu0 0
          %1207 = vmatprep.subr.bf16.mxu0 0
          %1208 = vmatpush2.bf16.msra.mxu0 0
          %1209 = vmatprep.subr.bf16.mxu0 0
          %1210 = vmatpush2.bf16.msra.mxu0 0
          %1211 = vmatprep.subr.bf16.mxu0 0
          %1212 = vmatpush2.bf16.msra.mxu0 0
          %1213 = vmatprep.subr.bf16.mxu0 0
          %1214 = vmatpush2.bf16.msra.mxu0 0
          %1215 = vmatprep.subr.bf16.mxu0 0
          %1216 = vmatpush2.bf16.msra.mxu0 0
          %1217 = vmatprep.mubr.bf16.mxu0 0
          %1218 = vmatmul.mubr.bf16.gmra.mxu0 %v1180
          %v1219 = vpop.f32.mrf.mxu0
          %v1220 = vadd.f32 0.0, %v1219
          %v1221 = vpop.f32.mrf.mxu0
          %v1222 = vpop.f32.mrf.mxu0
          %v1223 = vpop.f32.mrf.mxu0
          %1224 = vdwg.mxu0
          %v1225 = vadd.f32 %v1176, %v1220
          %v1226 = vld [vmem:[%s5] sm:$0x1]
          %v1228 = vlaneseq
          %v1229 = vshrl.u32 %v1228, 7
          %v1230 = vsub.s32 0, %v1229
          %v1231 = vrot.slane %v1226, %v1230
          %v1233 = vadd.f32 %v1225, %v1231
          %vm1234 = vcmask 261120
          %1235 = vst.msk [vmem:[%s433] sm:$0xff] %vm1234, %v1233
        $region72: #{tpu_custom_call.1} parent=43 // pred_fallthru
          _
        %s1236 = sand.u32 %s214, 1
        %s1237 = scalar_lea.sflag [#allocation7], %s1236
        %s1238 = sand.u32 %s214, 1
        %s1239 = smul.addr %s1238, 8
        %s1240 = scalar_lea.vmem [#allocation14], %s1239
        // Predicated region
        $region73: #{tpu_custom_call.1} parent=43 // pred_check
          %p1241 = pneg %p224
        $region74: #{tpu_custom_call.1} parent=43 // pred_check_branch
          %1243 = sbr.rel (%p1241) target = $region76
        $region75: #{tpu_custom_call.1} parent=43 // pred_region
          %s1245 = ssub.s32 128, 128
          %1246 = vsyncadd %s1237, %s1245
          %s1247 = sadd.s32 %s35, %s34
          %s1248 = smul.addr %s1247, 128
          %s1249 = scalar_lea.hbm %s6, %s1248
          %s1251 = sshll.u32 %s1240, 4
          %s1252 = int_to_ptr.vmem [resolvable:$true] %s1251
          %1254 = dma.vmem_to_hbm [thread:$0]  %s1252, 128, %s1249, %s1237
        $region76: #{tpu_custom_call.1} parent=43 // pred_fallthru
          _
      $region44: #{tpu_custom_call.1} parent=5 // pred_fallthru
        _
      %p1255 = scmp.le.s32.totalorder 2, %s24
      // Predicated region
      $region77: #{tpu_custom_call.1} parent=5 // pred_check
        %p1256 = pneg %p1255
      $region78: #{tpu_custom_call.1} parent=5 // pred_check_branch
        %1258 = sbr.rel (%p1256) target = $region80
      $region79: #{tpu_custom_call.1} parent=5 // pred_region
        %s1259 = ssub.s32 %s24, 2
        // Predicated region
        $region81: #{tpu_custom_call.1} parent=79 // pred_check
          %p1260 = pneg %p230
        $region82: #{tpu_custom_call.1} parent=79 // pred_check_branch
          %1262 = sbr.rel (%p1260) target = $region84
        $region83: #{tpu_custom_call.1} parent=79 // pred_region
          %s1263 = sand.u32 %s215, 1
          %s1264 = scalar_lea.sflag [#allocation7], %s1263
          %s1265 = sand.u32 %s215, 1
          %s1266 = smul.addr %s1265, 8
          %s1267 = scalar_lea.vmem [#allocation14], %s1266
          %1268 = dma.done %s1264, 128
        $region84: #{tpu_custom_call.1} parent=79 // pred_fallthru
          _
      $region80: #{tpu_custom_call.1} parent=5 // pred_fallthru
        _
    $region6: #{tpu_custom_call.1} parent=1 // loop_footer
      %s28 = sadd.s32 1, %s24
    $region7: #{tpu_custom_call.1} parent=1 // loop_footer_branch
      %23 = sbr.rel target = $region3
    $region8: #{tpu_custom_call.1} parent=1 // loop_exit
      _
    %1269 = vsyncpa [#allocation6], 1
    %s1270 = scalar_lea.sflag [#allocation6], 1
    %1271 = vsyncpa %s1270, 1
    %1272 = vsyncpa [#allocation9], 1
    %s1273 = scalar_lea.sflag [#allocation9], 1
    %1274 = vsyncpa %s1273, 1
    %1275 = vsyncpa [#allocation12], 1
    %s1276 = scalar_lea.sflag [#allocation12], 1
    %1277 = vsyncpa %s1276, 1
    %1278 = vsyncpa [#allocation7], 1
    %s1279 = scalar_lea.sflag [#allocation7], 1
    %1280 = vsyncpa %s1279, 1

// kernel: tpu_custom_call.1
$region0: #{tpu_custom_call.1}
  #allocation0 [shape = 'u32[]', space=smem, size = 0x4, offset = 0x4, fixed_abs, tag = 'smem constant byte address 0x4 - core index']
  #allocation1 [shape = 'u32[144,128]{1,0:T(1,128)}', space=vmem, size = 0x12000, scoped, tag = 'internal scratch']
  #allocation2 [shape = 'f32[4,8,1]{2,1,0:T(8,128)}', space=vmem, size = 0x4000, scoped, tag = 'scratch operand']
  #allocation3 [shape = 'f32[4,8,1]{2,1,0:T(8,128)}', space=vmem, size = 0x4000, scoped, tag = 'scratch operand']
  #allocation4 [shape = 'f32[4,8,8]{2,1,0:T(8,128)}', space=vmem, size = 0x4000, scoped, tag = 'scratch operand']
  %s0 = inlined_call_operand.hbm [shape: s8[2,8,8], index: 0, kind: input, shape index: {}]
  %s1 = inlined_call_operand.hbm [shape: bf16[2,4,8,8], index: 1, kind: input, shape index: {}]
  %s2 = inlined_call_operand.hbm [shape: bf16[2,4,8,8], index: 2, kind: input, shape index: {}]
  %s3 = inlined_call_operand.hbm [shape: bf16[2,4,8,8], index: 3, kind: input, shape index: {}]
  %s4 = inlined_call_operand.hbm [shape: bf16[4,8,32], index: 4, kind: input, shape index: {}]
  %s5 = inlined_call_operand.vmem [shape: f32[1,32], index: 5, kind: input, shape index: {}]
  %s6 = inlined_call_operand.hbm [shape: f32[2,8,32], index: 6, kind: output, shape index: {}]
  %s7 = sld [smem:[#allocation0]]
  $region85: #{tpu_custom_call.1} parent=0
    _
  %s9 = ssub.s32 1, %s7
  %s10 = scalar_select 0, %s9, %s7
  $region1: #{tpu_custom_call.1} parent=0
    #allocation5 [shape = 'u8[2048]{0}', space=vmem, size = 0x800, scoped, tag = 'input window, operand 0']
    #allocation6 [shape = 's32[2]{0}', space=sflag, size = 0x8, scoped, tag = 'scoped memory for tpu_custom_call.1']
    #allocation7 [shape = 's32[2]{0}', space=sflag, size = 0x8, scoped, tag = 'scoped memory for tpu_custom_call.1']
    #allocation8 [shape = 'u8[16384]{0}', space=vmem, size = 0x4000, scoped, tag = 'input window, operand 1']
    #allocation9 [shape = 's32[2]{0}', space=sflag, size = 0x8, scoped, tag = 'scoped memory for tpu_custom_call.1']
    #allocation10 [shape = 'u8[16384]{0}', space=vmem, size = 0x4000, scoped, tag = 'input window, operand 2']
    #allocation11 [shape = 'u8[16384]{0}', space=vmem, size = 0x4000, scoped, tag = 'input window, operand 3']
    #allocation12 [shape = 's32[2]{0}', space=sflag, size = 0x8, scoped, tag = 'scoped memory for tpu_custom_call.1']
    #allocation13 [shape = 'u8[8192]{0}', space=vmem, size = 0x2000, scoped, tag = 'input window, operand 4, single buffered']
    #allocation14 [shape = 'u8[8192]{0}', space=vmem, size = 0x2000, scoped, tag = 'output window, operand 0']
    %11 = vsyncpa [#allocation6], 0
    %s12 = scalar_lea.sflag [#allocation6], 1
    %13 = vsyncpa %s12, 0
    %14 = vsyncpa [#allocation9], 0
    %s15 = scalar_lea.sflag [#allocation9], 1
    %16 = vsyncpa %s15, 0
    %17 = vsyncpa [#allocation12], 0
    %s18 = scalar_lea.sflag [#allocation12], 1
    %19 = vsyncpa %s18, 0
    %20 = vsyncpa [#allocation7], 0
    %s21 = scalar_lea.sflag [#allocation7], 1
    %22 = vsyncpa %s21, 0
    loop: start=0, step=1, limit=4
    $region2: #{tpu_custom_call.1} parent=1 // loop_pre_header
      _
    $region3: #{tpu_custom_call.1} parent=1 // loop_header
      %s24 = sphi 0, %s28
      %p25 = scmp.ge.s32.totalorder %s24, 4
      %s31 = sphi 0, %s50
      %s32 = sphi 0, %s46
      %s33 = sphi 0, %s42
      %s34 = sphi 0, %s31
      %s35 = sphi 0, %s32
      %s36 = sphi 0, %s33
      %s37 = sphi 0, %s34
      %s38 = sphi 0, %s35
      %s39 = sphi 0, %s36
      %s57 = sphi 0, %s59
      %s60 = sphi 0, %s57
      %s61 = sphi 0, %s60
      %s77 = sphi 0, %s61
      %s85 = sphi 0, %s87
      %s88 = sphi 0, %s85
      %s89 = sphi 0, %s88
      %s105 = sphi 0, %s89
      %s113 = sphi 0, %s115
      %s116 = sphi 0, %s113
      %s117 = sphi 0, %s116
      %s133 = sphi 0, %s117
      %s141 = sphi 0, %s143
      %s144 = sphi 0, %s141
      %s145 = sphi 0, %s144
      %s161 = sphi 0, %s145
      %s165 = sphi 0, %s165
      %s167 = sphi 0, %s165
      %s168 = sphi 0, %s167
      %s182 = sphi 0, %s168
      %s186 = sphi 0, %s186
      %s188 = sphi 0, %s186
      %s189 = sphi 0, %s188
      %s203 = sphi 0, %s189
      %s211 = sphi 0, %s213
      %s214 = sphi 0, %s211
      %s215 = sphi 0, %s214
      %s231 = sphi 0, %s215
    $region4: #{tpu_custom_call.1} parent=1 // loop_header_branch
      %27 = sbr.rel (%p25) target = $region8
    $region5: #{tpu_custom_call.1} parent=1 // loop_body
      %s29 = ssub.s32 %s24, 1
      %s30 = ssub.s32 %s24, 2
      %s40 = sadd.s32 1, %s33
      %p41 = scmp.ge.s32.totalorder %s40, 1
      %s42 = scalar_select %p41, 0, %s40
      %s43 = sadd.s32 1, %s32
      %s44 = scalar_select %p41, %s43, %s32
      %p45 = scmp.ge.s32.totalorder %s44, 1
      %s46 = scalar_select %p45, 0, %s44
      %s47 = sadd.s32 1, %s31
      %s48 = scalar_select %p45, %s47, %s31
      %p49 = scmp.ge.s32.totalorder %s48, 2
      %s50 = scalar_select %p49, 0, %s48
      %s51 = ssub.s32 %s31, %s50
      %s52 = ssub.s32 %s32, %s46
      %s53 = sor.u32 %s51, %s52
      %s54 = ssub.s32 %s33, %s42
      %s55 = sor.u32 %s53, %s54
      %p56 = scmp.eq.s32.totalorder %s55, 0
      %s58 = sadd.s32 %s57, 1
      %s59 = scalar_select %p56, %s57, %s58
      %p62 = pneg %p56
      %p63 = scmp.eq.s32.totalorder %s24, 1
      %p64 = por %p62, %p63
      %p65 = scmp.ne.s32.totalorder %s57, %s60
      %p66 = scmp.eq.s32.totalorder %s24, 0
      %p67 = por %p65, %p66
      %p68 = scmp.ne.s32.totalorder %s57, %s60
      %p69 = scmp.eq.s32.totalorder %s29, 1
      %p70 = por %p68, %p69
      %p71 = scmp.ne.s32.totalorder %s60, %s61
      %p72 = scmp.eq.s32.totalorder %s29, 0
      %p73 = por %p71, %p72
      %p74 = scmp.ne.s32.totalorder %s60, %s61
      %p75 = scmp.eq.s32.totalorder %s30, 1
      %p76 = por %p74, %p75
      %p78 = scmp.ne.s32.totalorder %s61, %s77
      %p79 = scmp.eq.s32.totalorder %s30, 0
      %p80 = por %p78, %p79
      %s81 = ssub.s32 %s31, %s50
      %s82 = ssub.s32 %s32, %s46
      %s83 = sor.u32 %s81, %s82
      %p84 = scmp.eq.s32.totalorder %s83, 0
      %s86 = sadd.s32 %s85, 1
      %s87 = scalar_select %p84, %s85, %s86
      %p90 = pneg %p84
      %p91 = scmp.eq.s32.totalorder %s24, 1
      %p92 = por %p90, %p91
      %p93 = scmp.ne.s32.totalorder %s85, %s88
      %p94 = scmp.eq.s32.totalorder %s24, 0
      %p95 = por %p93, %p94
      %p96 = scmp.ne.s32.totalorder %s85, %s88
      %p97 = scmp.eq.s32.totalorder %s29, 1
      %p98 = por %p96, %p97
      %p99 = scmp.ne.s32.totalorder %s88, %s89
      %p100 = scmp.eq.s32.totalorder %s29, 0
      %p101 = por %p99, %p100
      %p102 = scmp.ne.s32.totalorder %s88, %s89
      %p103 = scmp.eq.s32.totalorder %s30, 1
      %p104 = por %p102, %p103
      %p106 = scmp.ne.s32.totalorder %s89, %s105
      %p107 = scmp.eq.s32.totalorder %s30, 0
      %p108 = por %p106, %p107
      %s109 = ssub.s32 %s31, %s50
      %s110 = ssub.s32 %s33, %s42
      %s111 = sor.u32 %s109, %s110
      %p112 = scmp.eq.s32.totalorder %s111, 0
      %s114 = sadd.s32 %s113, 1
      %s115 = scalar_select %p112, %s113, %s114
      %p118 = pneg %p112
      %p119 = scmp.eq.s32.totalorder %s24, 1
      %p120 = por %p118, %p119
      %p121 = scmp.ne.s32.totalorder %s113, %s116
      %p122 = scmp.eq.s32.totalorder %s24, 0
      %p123 = por %p121, %p122
      %p124 = scmp.ne.s32.totalorder %s113, %s116
      %p125 = scmp.eq.s32.totalorder %s29, 1
      %p126 = por %p124, %p125
      %p127 = scmp.ne.s32.totalorder %s116, %s117
      %p128 = scmp.eq.s32.totalorder %s29, 0
      %p129 = por %p127, %p128
      %p130 = scmp.ne.s32.totalorder %s116, %s117
      %p131 = scmp.eq.s32.totalorder %s30, 1
      %p132 = por %p130, %p131
      %p134 = scmp.ne.s32.totalorder %s117, %s133
      %p135 = scmp.eq.s32.totalorder %s30, 0
      %p136 = por %p134, %p135
      %s137 = ssub.s32 %s31, %s50
      %s138 = ssub.s32 %s33, %s42
      %s139 = sor.u32 %s137, %s138
      %p140 = scmp.eq.s32.totalorder %s139, 0
      %s142 = sadd.s32 %s141, 1
      %s143 = scalar_select %p140, %s141, %s142
      %p146 = pneg %p140
      %p147 = scmp.eq.s32.totalorder %s24, 1
      %p148 = por %p146, %p147
      %p149 = scmp.ne.s32.totalorder %s141, %s144
      %p150 = scmp.eq.s32.totalorder %s24, 0
      %p151 = por %p149, %p150
      %p152 = scmp.ne.s32.totalorder %s141, %s144
      %p153 = scmp.eq.s32.totalorder %s29, 1
      %p154 = por %p152, %p153
      %p155 = scmp.ne.s32.totalorder %s144, %s145
      %p156 = scmp.eq.s32.totalorder %s29, 0
      %p157 = por %p155, %p156
      %p158 = scmp.ne.s32.totalorder %s144, %s145
      %p159 = scmp.eq.s32.totalorder %s30, 1
      %p160 = por %p158, %p159
      %p162 = scmp.ne.s32.totalorder %s145, %s161
      %p163 = scmp.eq.s32.totalorder %s30, 0
      %p164 = por %p162, %p163
      %s166 = sadd.s32 %s165, 1
      %p169 = scmp.eq.s32.totalorder %s24, 1
      %p170 = scmp.ne.s32.totalorder %s165, %s167
      %p171 = scmp.eq.s32.totalorder %s24, 0
      %p172 = por %p170, %p171
      %p173 = scmp.ne.s32.totalorder %s165, %s167
      %p174 = scmp.eq.s32.totalorder %s29, 1
      %p175 = por %p173, %p174
      %p176 = scmp.ne.s32.totalorder %s167, %s168
      %p177 = scmp.eq.s32.totalorder %s29, 0
      %p178 = por %p176, %p177
      %p179 = scmp.ne.s32.totalorder %s167, %s168
      %p180 = scmp.eq.s32.totalorder %s30, 1
      %p181 = por %p179, %p180
      %p183 = scmp.ne.s32.totalorder %s168, %s182
      %p184 = scmp.eq.s32.totalorder %s30, 0
      %p185 = por %p183, %p184
      %s187 = sadd.s32 %s186, 1
      %p190 = scmp.eq.s32.totalorder %s24, 1
      %p191 = scmp.ne.s32.totalorder %s186, %s188
      %p192 = scmp.eq.s32.totalorder %s24, 0
      %p193 = por %p191, %p192
      %p194 = scmp.ne.s32.totalorder %s186, %s188
      %p195 = scmp.eq.s32.totalorder %s29, 1
      %p196 = por %p194, %p195
      %p197 = scmp.ne.s32.totalorder %s188, %s189
      %p198 = scmp.eq.s32.totalorder %s29, 0
      %p199 = por %p197, %p198
      %p200 = scmp.ne.s32.totalorder %s188, %s189
      %p201 = scmp.eq.s32.totalorder %s30, 1
      %p202 = por %p200, %p201
      %p204 = scmp.ne.s32.totalorder %s189, %s203
      %p205 = scmp.eq.s32.totalorder %s30, 0
      %p206 = por %p204, %p205
      %s207 = ssub.s32 %s31, %s50
      %s208 = ssub.s32 %s32, %s46
      %s209 = sor.u32 %s207, %s208
      %p210 = scmp.eq.s32.totalorder %s209, 0
      %s212 = sadd.s32 %s211, 1
      %s213 = scalar_select %p210, %s211, %s212
      %p216 = pneg %p210
      %p217 = scmp.eq.s32.totalorder %s24, 1
      %p218 = por %p216, %p217
      %p219 = scmp.ne.s32.totalorder %s211, %s214
      %p220 = scmp.eq.s32.totalorder %s24, 0
      %p221 = por %p219, %p220
      %p222 = scmp.ne.s32.totalorder %s211, %s214
      %p223 = scmp.eq.s32.totalorder %s29, 1
      %p224 = por %p222, %p223
      %p225 = scmp.ne.s32.totalorder %s214, %s215
      %p226 = scmp.eq.s32.totalorder %s29, 0
      %p227 = por %p225, %p226
      %p228 = scmp.ne.s32.totalorder %s214, %s215
      %p229 = scmp.eq.s32.totalorder %s30, 1
      %p230 = por %p228, %p229
      %p232 = scmp.ne.s32.totalorder %s215, %s231
      %p233 = scmp.eq.s32.totalorder %s30, 0
      %p234 = por %p232, %p233
      %p235 = scmp.le.s32.totalorder 1, %s24
      %p236 = scmp.lt.s32.totalorder %s24, 3
      %p237 = pnand %p235, %p236
      %p238 = pneg %p237
      // Predicated region
      $region9: #{tpu_custom_call.1} parent=5 // pred_check
        _
      $region10: #{tpu_custom_call.1} parent=5 // pred_check_branch
        %240 = sbr.rel (%p237) target = $region12
      $region11: #{tpu_custom_call.1} parent=5 // pred_region
        %s241 = ssub.s32 %s24, 1
        // Predicated region
        $region13: #{tpu_custom_call.1} parent=11 // pred_check
          %p242 = pneg %p178
        $region14: #{tpu_custom_call.1} parent=11 // pred_check_branch
          %244 = sbr.rel (%p242) target = $region16
        $region15: #{tpu_custom_call.1} parent=11 // pred_region
          %s246 = ssub.s32 256, 256
          %247 = vsyncadd [#allocation12], %s246
          %s248 = sshll.u32 [#allocation13], 4
          %s249 = int_to_ptr.vmem [resolvable:$true] %s248
          %254 = dma.hbm_to_vmem [thread:$0]  %s4, 256, %s249, [#allocation12], 64, 64, 4
        $region16: #{tpu_custom_call.1} parent=11 // pred_fallthru
          _
        // Predicated region
        $region17: #{tpu_custom_call.1} parent=11 // pred_check
          %p255 = pneg %p199
        $region18: #{tpu_custom_call.1} parent=11 // pred_check_branch
          %257 = sbr.rel (%p255) target = $region20
        $region19: #{tpu_custom_call.1} parent=11 // pred_region
          _
        $region20: #{tpu_custom_call.1} parent=11 // pred_fallthru
          _
      $region12: #{tpu_custom_call.1} parent=5 // pred_fallthru
        _
      %p258 = scmp.lt.s32.totalorder %s24, 2
      // Predicated region
      $region21: #{tpu_custom_call.1} parent=5 // pred_check
        %p259 = pneg %p258
      $region22: #{tpu_custom_call.1} parent=5 // pred_check_branch
        %261 = sbr.rel (%p259) target = $region24
      $region23: #{tpu_custom_call.1} parent=5 // pred_region
        // Predicated region
        $region25: #{tpu_custom_call.1} parent=23 // pred_check
          %p262 = pneg %p67
        $region26: #{tpu_custom_call.1} parent=23 // pred_check_branch
          %264 = sbr.rel (%p262) target = $region28
        $region27: #{tpu_custom_call.1} parent=23 // pred_region
          %s265 = sand.u32 %s57, 1
          %s266 = scalar_lea.sflag [#allocation6], %s265
          %s267 = sand.u32 %s57, 1
          %s268 = smul.addr %s267, 2
          %s269 = scalar_lea.vmem [#allocation5], %s268
          %s271 = ssub.s32 32, 32
          %272 = vsyncadd %s266, %s271
          %s273 = sadd.s32 %s33, %s32
          %s274 = sadd.s32 %s273, %s31
          %s275 = smul.addr %s274, 32
          %s276 = scalar_lea.hbm %s0, %s275
          %s278 = sshll.u32 %s269, 4
          %s279 = int_to_ptr.vmem [resolvable:$true] %s278
          %281 = dma.hbm_to_vmem [thread:$0]  %s276, 32, %s279, %s266
        $region28: #{tpu_custom_call.1} parent=23 // pred_fallthru
          _
        // Predicated region
        $region29: #{tpu_custom_call.1} parent=23 // pred_check
          %p282 = pneg %p95
        $region30: #{tpu_custom_call.1} parent=23 // pred_check_branch
          %284 = sbr.rel (%p282) target = $region32
        $region31: #{tpu_custom_call.1} parent=23 // pred_region
          %s285 = sand.u32 %s24, 1
          %s286 = scalar_lea.sflag [#allocation9], %s285
          %s287 = sand.u32 %s85, 1
          %s288 = smul.addr %s287, 16
          %s289 = scalar_lea.vmem [#allocation8], %s288
          %s291 = ssub.s32 256, 256
          %292 = vsyncadd %s286, %s291
          %s293 = smul.addr %s31, 4
          %s294 = sadd.s32 %s32, %s293
          %s295 = smul.addr %s294, 64
          %s296 = scalar_lea.hbm %s1, %s295
          %s297 = sshll.u32 %s289, 4
          %s298 = int_to_ptr.vmem [resolvable:$true] %s297
          %303 = dma.hbm_to_vmem [thread:$0]  %s296, 256, %s298, %s286, 64, 64, 4
        $region32: #{tpu_custom_call.1} parent=23 // pred_fallthru
          _
        // Predicated region
        $region33: #{tpu_custom_call.1} parent=23 // pred_check
          %p304 = pneg %p123
        $region34: #{tpu_custom_call.1} parent=23 // pred_check_branch
          %306 = sbr.rel (%p304) target = $region36
        $region35: #{tpu_custom_call.1} parent=23 // pred_region
          %s307 = sand.u32 %s24, 1
          %s308 = scalar_lea.sflag [#allocation9], %s307
          %s309 = sand.u32 %s113, 1
          %s310 = smul.addr %s309, 16
          %s311 = scalar_lea.vmem [#allocation10], %s310
          %s313 = ssub.s32 256, 256
          %314 = vsyncadd %s308, %s313
          %s315 = smul.addr %s31, 4
          %s316 = sadd.s32 %s33, %s315
          %s317 = smul.addr %s316, 64
          %s318 = scalar_lea.hbm %s2, %s317
          %s319 = sshll.u32 %s311, 4
          %s320 = int_to_ptr.vmem [resolvable:$true] %s319
          %325 = dma.hbm_to_vmem [thread:$0]  %s318, 256, %s320, %s308, 64, 64, 4
        $region36: #{tpu_custom_call.1} parent=23 // pred_fallthru
          _
        // Predicated region
        $region37: #{tpu_custom_call.1} parent=23 // pred_check
          %p326 = pneg %p151
        $region38: #{tpu_custom_call.1} parent=23 // pred_check_branch
          %328 = sbr.rel (%p326) target = $region40
        $region39: #{tpu_custom_call.1} parent=23 // pred_region
          %s329 = sand.u32 %s24, 1
          %s330 = scalar_lea.sflag [#allocation12], %s329
          %s331 = sand.u32 %s141, 1
          %s332 = smul.addr %s331, 16
          %s333 = scalar_lea.vmem [#allocation11], %s332
          %s335 = ssub.s32 256, 256
          %336 = vsyncadd %s330, %s335
          %s337 = smul.addr %s31, 4
          %s338 = sadd.s32 %s33, %s337
          %s339 = smul.addr %s338, 64
          %s340 = scalar_lea.hbm %s3, %s339
          %s341 = sshll.u32 %s333, 4
          %s342 = int_to_ptr.vmem [resolvable:$true] %s341
          %347 = dma.hbm_to_vmem [thread:$0]  %s340, 256, %s342, %s330, 64, 64, 4
        $region40: #{tpu_custom_call.1} parent=23 // pred_fallthru
          _
      $region24: #{tpu_custom_call.1} parent=5 // pred_fallthru
        _
      %p348 = scmp.le.s32.totalorder 1, %s24
      %p349 = scmp.lt.s32.totalorder %s24, 3
      %p350 = pnand %p348, %p349
      %p351 = pneg %p350
      // Predicated region
      $region41: #{tpu_custom_call.1} parent=5 // pred_check
        _
      $region42: #{tpu_custom_call.1} parent=5 // pred_check_branch
        %353 = sbr.rel (%p350) target = $region44
      $region43: #{tpu_custom_call.1} parent=5 // pred_region
        %s354 = ssub.s32 %s24, 1
        %s355 = sand.u32 %s60, 1
        %s356 = scalar_lea.sflag [#allocation6], %s355
        %s357 = sand.u32 %s60, 1
        %s358 = smul.addr %s357, 2
        %s359 = scalar_lea.vmem [#allocation5], %s358
        // Predicated region
        $region45: #{tpu_custom_call.1} parent=43 // pred_check
          %p360 = pneg %p73
        $region46: #{tpu_custom_call.1} parent=43 // pred_check_branch
          %362 = sbr.rel (%p360) target = $region48
        $region47: #{tpu_custom_call.1} parent=43 // pred_region
          %363 = dma.done %s356, 32
        $region48: #{tpu_custom_call.1} parent=43 // pred_fallthru
          _
        %s364 = sand.u32 %s29, 1
        %s365 = scalar_lea.sflag [#allocation9], %s364
        %s366 = sand.u32 %s88, 1
        %s367 = smul.addr %s366, 16
        %s368 = scalar_lea.vmem [#allocation8], %s367
        // Predicated region
        $region49: #{tpu_custom_call.1} parent=43 // pred_check
          %p369 = pneg %p101
        $region50: #{tpu_custom_call.1} parent=43 // pred_check_branch
          %371 = sbr.rel (%p369) target = $region52
        $region51: #{tpu_custom_call.1} parent=43 // pred_region
          %372 = dma.done %s365, 256
        $region52: #{tpu_custom_call.1} parent=43 // pred_fallthru
          _
        %s373 = sand.u32 %s29, 1
        %s374 = scalar_lea.sflag [#allocation9], %s373
        %s375 = sand.u32 %s116, 1
        %s376 = smul.addr %s375, 16
        %s377 = scalar_lea.vmem [#allocation10], %s376
        // Predicated region
        $region53: #{tpu_custom_call.1} parent=43 // pred_check
          %p378 = pneg %p129
        $region54: #{tpu_custom_call.1} parent=43 // pred_check_branch
          %380 = sbr.rel (%p378) target = $region56
        $region55: #{tpu_custom_call.1} parent=43 // pred_region
          %381 = dma.done %s374, 256
        $region56: #{tpu_custom_call.1} parent=43 // pred_fallthru
          _
        %s382 = sand.u32 %s29, 1
        %s383 = scalar_lea.sflag [#allocation12], %s382
        %s384 = sand.u32 %s144, 1
        %s385 = smul.addr %s384, 16
        %s386 = scalar_lea.vmem [#allocation11], %s385
        // Predicated region
        $region57: #{tpu_custom_call.1} parent=43 // pred_check
          %p387 = pneg %p157
        $region58: #{tpu_custom_call.1} parent=43 // pred_check_branch
          %389 = sbr.rel (%p387) target = $region60
        $region59: #{tpu_custom_call.1} parent=43 // pred_region
          %390 = dma.done %s383, 256
        $region60: #{tpu_custom_call.1} parent=43 // pred_fallthru
          _
        // Predicated region
        $region61: #{tpu_custom_call.1} parent=43 // pred_check
          %p391 = pneg %p178
        $region62: #{tpu_custom_call.1} parent=43 // pred_check_branch
          %393 = sbr.rel (%p391) target = $region64
        $region63: #{tpu_custom_call.1} parent=43 // pred_region
          %394 = dma.done [#allocation12], 256
        $region64: #{tpu_custom_call.1} parent=43 // pred_fallthru
          _
        %s395 = sand.u32 %s60, 1
        %s396 = scalar_lea.sflag [#allocation6], %s395
        %s397 = sand.u32 %s60, 1
        %s398 = smul.addr %s397, 2
        %s399 = scalar_lea.vmem [#allocation5], %s398
        %p400 = pneg %p73
        %p401 = pneg %p70
        %s402 = sand.u32 %s29, 1
        %s403 = scalar_lea.sflag [#allocation9], %s402
        %s404 = sand.u32 %s88, 1
        %s405 = smul.addr %s404, 16
        %s406 = scalar_lea.vmem [#allocation8], %s405
        %p407 = pneg %p101
        %p408 = pneg %p98
        %s409 = sand.u32 %s29, 1
        %s410 = scalar_lea.sflag [#allocation9], %s409
        %s411 = sand.u32 %s116, 1
        %s412 = smul.addr %s411, 16
        %s413 = scalar_lea.vmem [#allocation10], %s412
        %p414 = pneg %p129
        %p415 = pneg %p126
        %s416 = sand.u32 %s29, 1
        %s417 = scalar_lea.sflag [#allocation12], %s416
        %s418 = sand.u32 %s144, 1
        %s419 = smul.addr %s418, 16
        %s420 = scalar_lea.vmem [#allocation11], %s419
        %p421 = pneg %p157
        %p422 = pneg %p154
        %p423 = pneg %p178
        %p424 = pneg %p175
        %p425 = pneg %p199
        %p426 = pneg %p196
        %p427 = pneg %p227
        %p428 = pneg %p224
        %s429 = sand.u32 %s214, 1
        %s430 = scalar_lea.sflag [#allocation7], %s429
        %s431 = sand.u32 %s214, 1
        %s432 = smul.addr %s431, 8
        %s433 = scalar_lea.vmem [#allocation14], %s432
        %p438 = scmp.eq.s32.totalorder %s36, 0
        // Predicated region
        $region65: #{tpu_custom_call.1} parent=43 // pred_check
          %p439 = pneg %p438
        $region66: #{tpu_custom_call.1} parent=43 // pred_check_branch
          %441 = sbr.rel (%p439) target = $region68
        $region67: #{tpu_custom_call.1} parent=43 // pred_region
          %vm442 = vcmask 7168
          %443 = vst.msk [vmem:[#allocation2] sm:$0xff] %vm442, -inf
          %444 = vst.msk [vmem:[#allocation2 + $0x8] sm:$0xff] %vm442, -inf
          %445 = vst.msk [vmem:[#allocation2 + $0x10] sm:$0xff] %vm442, -inf
          %446 = vst.msk [vmem:[#allocation2 + $0x18] sm:$0xff] %vm442, -inf
          %447 = vst.msk [vmem:[#allocation3] sm:$0xff] %vm442, 0.0
          %448 = vst.msk [vmem:[#allocation3 + $0x8] sm:$0xff] %vm442, 0.0
          %449 = vst.msk [vmem:[#allocation3 + $0x10] sm:$0xff] %vm442, 0.0
          %450 = vst.msk [vmem:[#allocation3 + $0x18] sm:$0xff] %vm442, 0.0
          %vm451 = vcmask 64512
          %452 = vst.msk [vmem:[#allocation4] sm:$0xff] %vm451, 0.0
          %453 = vst.msk [vmem:[#allocation4 + $0x8] sm:$0xff] %vm451, 0.0
          %454 = vst.msk [vmem:[#allocation4 + $0x10] sm:$0xff] %vm451, 0.0
          %455 = vst.msk [vmem:[#allocation4 + $0x18] sm:$0xff] %vm451, 0.0
        $region68: #{tpu_custom_call.1} parent=43 // pred_fallthru
          _
        %v456 = vld [vmem:[%s368] sm:$0xf]
        %v457 = vld [vmem:[%s368 + $0x4] sm:$0xf]
        %v458 = vld [vmem:[%s368 + $0x8] sm:$0xf]
        %v459 = vld [vmem:[%s368 + $0xc] sm:$0xf]
        %v460 = vmul.bf16 %v456, 1052065461
        %v461 = vmul.bf16 %v457, 1052065461
        %v462 = vmul.bf16 %v458, 1052065461
        %v463 = vmul.bf16 %v459, 1052065461
        %v464 = vld [vmem:[%s377] sm:$0xf]
        %v465 = vld [vmem:[%s377 + $0x4] sm:$0xf]
        %v466 = vld [vmem:[%s377 + $0x8] sm:$0xf]
        %v467 = vld [vmem:[%s377 + $0xc] sm:$0xf]
        %vm468 = vcmask 64512
        %v470 = vsel %vm468, %v460, 0
        %v473 = vsel %vm468, %v464, 0
        %475 = vmatprep.subr.bf16.mxu0 0
        %476 = vmatpush1.bf16.xpose.msra.mxu0 0
        %477 = vmatprep.subr.bf16.mxu0 0
        %478 = vmatpush1.bf16.xpose.msra.mxu0 0
        %479 = vmatprep.subr.bf16.mxu0 0
        %480 = vmatpush1.bf16.xpose.msra.mxu0 0
        %481 = vmatprep.subr.bf16.mxu0 0
        %482 = vmatpush1.bf16.xpose.msra.mxu0 0
        %483 = vmatprep.subr.bf16.mxu0 0
        %484 = vmatpush1.bf16.xpose.msra.mxu0 0
        %485 = vmatprep.subr.bf16.mxu0 0
        %486 = vmatpush1.bf16.xpose.msra.mxu0 0
        %487 = vmatprep.subr.bf16.mxu0 0
        %488 = vmatpush1.bf16.xpose.msra.mxu0 0
        %489 = vmatprep.subr.bf16.mxu0 0
        %490 = vmatpush1.bf16.xpose.msra.mxu0 %v473
        %491 = vmatprep.subr.bf16.mxu0 0
        %492 = vmatpush2.bf16.xpose.msra.mxu0 0
        %493 = vmatprep.subr.bf16.mxu0 0
        %494 = vmatpush2.bf16.xpose.msra.mxu0 0
        %495 = vmatprep.subr.bf16.mxu0 0
        %496 = vmatpush2.bf16.xpose.msra.mxu0 0
        %497 = vmatprep.subr.bf16.mxu0 0
        %498 = vmatpush2.bf16.xpose.msra.mxu0 0
        %499 = vmatprep.subr.bf16.mxu0 0
        %500 = vmatpush2.bf16.xpose.msra.mxu0 0
        %501 = vmatprep.subr.bf16.mxu0 0
        %502 = vmatpush2.bf16.xpose.msra.mxu0 0
        %503 = vmatprep.subr.bf16.mxu0 0
        %504 = vmatpush2.bf16.xpose.msra.mxu0 0
        %505 = vmatprep.subr.bf16.mxu0 0
        %506 = vmatpush2.bf16.xpose.msra.mxu0 0
        %507 = vmatprep.mubr.bf16.mxu0 0
        %508 = vmatmul.mubr.bf16.gmra.mxu0 %v470
        %v509 = vpop.f32.mrf.mxu0
        %v510 = vadd.f32 0.0, %v509
        %v511 = vpop.f32.mrf.mxu0
        %v512 = vpop.f32.mrf.mxu0
        %v513 = vpop.f32.mrf.mxu0
        %514 = vdwg.mxu0
        %v516 = vsel %vm468, %v461, 0
        %v519 = vsel %vm468, %v465, 0
        %521 = vmatprep.subr.bf16.mxu0 0
        %522 = vmatpush1.bf16.xpose.msra.mxu0 0
        %523 = vmatprep.subr.bf16.mxu0 0
        %524 = vmatpush1.bf16.xpose.msra.mxu0 0
        %525 = vmatprep.subr.bf16.mxu0 0
        %526 = vmatpush1.bf16.xpose.msra.mxu0 0
        %527 = vmatprep.subr.bf16.mxu0 0
        %528 = vmatpush1.bf16.xpose.msra.mxu0 0
        %529 = vmatprep.subr.bf16.mxu0 0
        %530 = vmatpush1.bf16.xpose.msra.mxu0 0
        %531 = vmatprep.subr.bf16.mxu0 0
        %532 = vmatpush1.bf16.xpose.msra.mxu0 0
        %533 = vmatprep.subr.bf16.mxu0 0
        %534 = vmatpush1.bf16.xpose.msra.mxu0 0
        %535 = vmatprep.subr.bf16.mxu0 0
        %536 = vmatpush1.bf16.xpose.msra.mxu0 %v519
        %537 = vmatprep.subr.bf16.mxu0 0
        %538 = vmatpush2.bf16.xpose.msra.mxu0 0
        %539 = vmatprep.subr.bf16.mxu0 0
        %540 = vmatpush2.bf16.xpose.msra.mxu0 0
        %541 = vmatprep.subr.bf16.mxu0 0
        %542 = vmatpush2.bf16.xpose.msra.mxu0 0
        %543 = vmatprep.subr.bf16.mxu0 0
        %544 = vmatpush2.bf16.xpose.msra.mxu0 0
        %545 = vmatprep.subr.bf16.mxu0 0
        %546 = vmatpush2.bf16.xpose.msra.mxu0 0
        %547 = vmatprep.subr.bf16.mxu0 0
        %548 = vmatpush2.bf16.xpose.msra.mxu0 0
        %549 = vmatprep.subr.bf16.mxu0 0
        %550 = vmatpush2.bf16.xpose.msra.mxu0 0
        %551 = vmatprep.subr.bf16.mxu0 0
        %552 = vmatpush2.bf16.xpose.msra.mxu0 0
        %553 = vmatprep.mubr.bf16.mxu0 0
        %554 = vmatmul.mubr.bf16.gmra.mxu0 %v516
        %v555 = vpop.f32.mrf.mxu0
        %v556 = vadd.f32 0.0, %v555
        %v557 = vpop.f32.mrf.mxu0
        %v558 = vpop.f32.mrf.mxu0
        %v559 = vpop.f32.mrf.mxu0
        %560 = vdwg.mxu0
        %v562 = vsel %vm468, %v462, 0
        %v565 = vsel %vm468, %v466, 0
        %567 = vmatprep.subr.bf16.mxu0 0
        %568 = vmatpush1.bf16.xpose.msra.mxu0 0
        %569 = vmatprep.subr.bf16.mxu0 0
        %570 = vmatpush1.bf16.xpose.msra.mxu0 0
        %571 = vmatprep.subr.bf16.mxu0 0
        %572 = vmatpush1.bf16.xpose.msra.mxu0 0
        %573 = vmatprep.subr.bf16.mxu0 0
        %574 = vmatpush1.bf16.xpose.msra.mxu0 0
        %575 = vmatprep.subr.bf16.mxu0 0
        %576 = vmatpush1.bf16.xpose.msra.mxu0 0
        %577 = vmatprep.subr.bf16.mxu0 0
        %578 = vmatpush1.bf16.xpose.msra.mxu0 0
        %579 = vmatprep.subr.bf16.mxu0 0
        %580 = vmatpush1.bf16.xpose.msra.mxu0 0
        %581 = vmatprep.subr.bf16.mxu0 0
        %582 = vmatpush1.bf16.xpose.msra.mxu0 %v565
        %583 = vmatprep.subr.bf16.mxu0 0
        %584 = vmatpush2.bf16.xpose.msra.mxu0 0
        %585 = vmatprep.subr.bf16.mxu0 0
        %586 = vmatpush2.bf16.xpose.msra.mxu0 0
        %587 = vmatprep.subr.bf16.mxu0 0
        %588 = vmatpush2.bf16.xpose.msra.mxu0 0
        %589 = vmatprep.subr.bf16.mxu0 0
        %590 = vmatpush2.bf16.xpose.msra.mxu0 0
        %591 = vmatprep.subr.bf16.mxu0 0
        %592 = vmatpush2.bf16.xpose.msra.mxu0 0
        %593 = vmatprep.subr.bf16.mxu0 0
        %594 = vmatpush2.bf16.xpose.msra.mxu0 0
        %595 = vmatprep.subr.bf16.mxu0 0
        %596 = vmatpush2.bf16.xpose.msra.mxu0 0
        %597 = vmatprep.subr.bf16.mxu0 0
        %598 = vmatpush2.bf16.xpose.msra.mxu0 0
        %599 = vmatprep.mubr.bf16.mxu0 0
        %600 = vmatmul.mubr.bf16.gmra.mxu0 %v562
        %v601 = vpop.f32.mrf.mxu0
        %v602 = vadd.f32 0.0, %v601
        %v603 = vpop.f32.mrf.mxu0
        %v604 = vpop.f32.mrf.mxu0
        %v605 = vpop.f32.mrf.mxu0
        %606 = vdwg.mxu0
        %v608 = vsel %vm468, %v463, 0
        %v611 = vsel %vm468, %v467, 0
        %613 = vmatprep.subr.bf16.mxu0 0
        %614 = vmatpush1.bf16.xpose.msra.mxu0 0
        %615 = vmatprep.subr.bf16.mxu0 0
        %616 = vmatpush1.bf16.xpose.msra.mxu0 0
        %617 = vmatprep.subr.bf16.mxu0 0
        %618 = vmatpush1.bf16.xpose.msra.mxu0 0
        %619 = vmatprep.subr.bf16.mxu0 0
        %620 = vmatpush1.bf16.xpose.msra.mxu0 0
        %621 = vmatprep.subr.bf16.mxu0 0
        %622 = vmatpush1.bf16.xpose.msra.mxu0 0
        %623 = vmatprep.subr.bf16.mxu0 0
        %624 = vmatpush1.bf16.xpose.msra.mxu0 0
        %625 = vmatprep.subr.bf16.mxu0 0
        %626 = vmatpush1.bf16.xpose.msra.mxu0 0
        %627 = vmatprep.subr.bf16.mxu0 0
        %628 = vmatpush1.bf16.xpose.msra.mxu0 %v611
        %629 = vmatprep.subr.bf16.mxu0 0
        %630 = vmatpush2.bf16.xpose.msra.mxu0 0
        %631 = vmatprep.subr.bf16.mxu0 0
        %632 = vmatpush2.bf16.xpose.msra.mxu0 0
        %633 = vmatprep.subr.bf16.mxu0 0
        %634 = vmatpush2.bf16.xpose.msra.mxu0 0
        %635 = vmatprep.subr.bf16.mxu0 0
        %636 = vmatpush2.bf16.xpose.msra.mxu0 0
        %637 = vmatprep.subr.bf16.mxu0 0
        %638 = vmatpush2.bf16.xpose.msra.mxu0 0
        %639 = vmatprep.subr.bf16.mxu0 0
        %640 = vmatpush2.bf16.xpose.msra.mxu0 0
        %641 = vmatprep.subr.bf16.mxu0 0
        %642 = vmatpush2.bf16.xpose.msra.mxu0 0
        %643 = vmatprep.subr.bf16.mxu0 0
        %644 = vmatpush2.bf16.xpose.msra.mxu0 0
        %645 = vmatprep.mubr.bf16.mxu0 0
        %646 = vmatmul.mubr.bf16.gmra.mxu0 %v608
        %v647 = vpop.f32.mrf.mxu0
        %v648 = vadd.f32 0.0, %v647
        %v649 = vpop.f32.mrf.mxu0
        %v650 = vpop.f32.mrf.mxu0
        %v651 = vpop.f32.mrf.mxu0
        %652 = vdwg.mxu0
        %v653 = vld [vmem:[%s359] sm:$0x3]
        %vm654 = vnez %v653
        %v655 = vsel %vm654, 16843009, 0
        %v656 = vunpack.c.0.s8 %v655
        %vm657 = vcmp.ne.s32.totalorder %v656, 0
        %v658 = vsel %vm657, 1, 0
        %vm659 = vcmp.eq.s32.totalorder %v658, 1
        %v660 = vsel %vm659, %v510, -1e+30
        %v661 = vsel %vm659, %v556, -1e+30
        %v662 = vsel %vm659, %v602, -1e+30
        %v663 = vsel %vm659, %v648, -1e+30
        %v664 = vld [vmem:[#allocation2] sm:$0xff]
        %v665 = vld [vmem:[#allocation2 + $0x8] sm:$0xff]
        %v666 = vld [vmem:[#allocation2 + $0x10] sm:$0xff]
        %v667 = vld [vmem:[#allocation2 + $0x18] sm:$0xff]
        %v668 = vsel %vm468, %v660, -inf
        %669 = vmax.xlane.f32.xlu0 %v668
        %v670 = vpop.xlane.xlu0 %669
        %v671 = vsel %vm468, %v661, -inf
        %672 = vmax.xlane.f32.xlu0 %v671
        %v673 = vpop.xlane.xlu0 %672
        %v674 = vsel %vm468, %v662, -inf
        %675 = vmax.xlane.f32.xlu0 %v674
        %v676 = vpop.xlane.xlu0 %675
        %v677 = vsel %vm468, %v663, -inf
        %678 = vmax.xlane.f32.xlu0 %v677
        %v679 = vpop.xlane.xlu0 %678
        %v680 = vmax.f32 %v664, %v670
        %v681 = vmax.f32 %v665, %v673
        %v682 = vmax.f32 %v666, %v676
        %v683 = vmax.f32 %v667, %v679
        %v684 = vsub.f32 %v664, %v680
        %v685 = vsub.f32 %v665, %v681
        %v686 = vsub.f32 %v666, %v682
        %v687 = vsub.f32 %v667, %v683
        %v688 = vmul.f32 %v684, 1.442695
        %v689 = vpow.pop %v688
        %v690 = vmul.f32 %v685, 1.442695
        %v691 = vpow.pop %v690
        %v692 = vmul.f32 %v686, 1.442695
        %v693 = vpow.pop %v692
        %v694 = vmul.f32 %v687, 1.442695
        %v695 = vpow.pop %v694
        %697 = vset.pattern.permute.xlu0 0
        %698 = vperm.xlu0 %697, %v680
        %v699 = vpop.permute.xlu0 %698
        %702 = vset.pattern.permute.xlu0 0
        %703 = vperm.xlu0 %702, %v681
        %v704 = vpop.permute.xlu0 %703
        %707 = vset.pattern.permute.xlu0 0
        %708 = vperm.xlu0 %707, %v682
        %v709 = vpop.permute.xlu0 %708
        %712 = vset.pattern.permute.xlu0 0
        %713 = vperm.xlu0 %712, %v683
        %v714 = vpop.permute.xlu0 %713
        %v716 = vsub.f32 %v660, %v699
        %v717 = vsub.f32 %v661, %v704
        %v718 = vsub.f32 %v662, %v709
        %v719 = vsub.f32 %v663, %v714
        %v720 = vmul.f32 %v716, 1.442695
        %v721 = vpow.pop %v720
        %v722 = vmul.f32 %v717, 1.442695
        %v723 = vpow.pop %v722
        %v724 = vmul.f32 %v718, 1.442695
        %v725 = vpow.pop %v724
        %v726 = vmul.f32 %v719, 1.442695
        %v727 = vpow.pop %v726
        %v728 = vld [vmem:[#allocation3] sm:$0xff]
        %v729 = vld [vmem:[#allocation3 + $0x8] sm:$0xff]
        %v730 = vld [vmem:[#allocation3 + $0x10] sm:$0xff]
        %v731 = vld [vmem:[#allocation3 + $0x18] sm:$0xff]
        %v732 = vmul.f32 %v689, %v728
        %v733 = vmul.f32 %v691, %v729
        %v734 = vmul.f32 %v693, %v730
        %v735 = vmul.f32 %v695, %v731
        %v736 = vsel %vm468, %v721, 0.0
        %737 = vadd.xlane.f32.xlu0 %v736
        %v738 = vpop.xlane.xlu0 %737
        %v739 = vsel %vm468, %v723, 0.0
        %740 = vadd.xlane.f32.xlu0 %v739
        %v741 = vpop.xlane.xlu0 %740
        %v742 = vsel %vm468, %v725, 0.0
        %743 = vadd.xlane.f32.xlu0 %v742
        %v744 = vpop.xlane.xlu0 %743
        %v745 = vsel %vm468, %v727, 0.0
        %746 = vadd.xlane.f32.xlu0 %v745
        %v747 = vpop.xlane.xlu0 %746
        %v748 = vadd.f32 %v732, %v738
        %v749 = vadd.f32 %v733, %v741
        %v750 = vadd.f32 %v734, %v744
        %v751 = vadd.f32 %v735, %v747
        %vm752 = vcmask 7168
        %753 = vst.msk [vmem:[#allocation3] sm:$0xff] %vm752, %v748
        %754 = vst.msk [vmem:[#allocation3 + $0x8] sm:$0xff] %vm752, %v749
        %755 = vst.msk [vmem:[#allocation3 + $0x10] sm:$0xff] %vm752, %v750
        %756 = vst.msk [vmem:[#allocation3 + $0x18] sm:$0xff] %vm752, %v751
        %v757 = vld [vmem:[#allocation4] sm:$0xff]
        %v758 = vld [vmem:[#allocation4 + $0x8] sm:$0xff]
        %v759 = vld [vmem:[#allocation4 + $0x10] sm:$0xff]
        %v760 = vld [vmem:[#allocation4 + $0x18] sm:$0xff]
        %762 = vset.pattern.permute.xlu0 0
        %763 = vperm.xlu0 %762, %v689
        %v764 = vpop.permute.xlu0 %763
        %767 = vset.pattern.permute.xlu0 0
        %768 = vperm.xlu0 %767, %v691
        %v769 = vpop.permute.xlu0 %768
        %772 = vset.pattern.permute.xlu0 0
        %773 = vperm.xlu0 %772, %v693
        %v774 = vpop.permute.xlu0 %773
        %777 = vset.pattern.permute.xlu0 0
        %778 = vperm.xlu0 %777, %v695
        %v779 = vpop.permute.xlu0 %778
        %v781 = vmul.f32 %v764, %v757
        %v782 = vmul.f32 %v769, %v758
        %v783 = vmul.f32 %v774, %v759
        %v784 = vmul.f32 %v779, %v760
        %v785 = vpack.c.bf16 %v721, %v721
        %v786 = vpack.c.bf16 %v723, %v723
        %v787 = vpack.c.bf16 %v725, %v725
        %v788 = vpack.c.bf16 %v727, %v727
        %v789 = vld [vmem:[%s386] sm:$0xf]
        %v790 = vld [vmem:[%s386 + $0x4] sm:$0xf]
        %v791 = vld [vmem:[%s386 + $0x8] sm:$0xf]
        %v792 = vld [vmem:[%s386 + $0xc] sm:$0xf]
        %v794 = vsel %vm468, %v785, 0
        %vm796 = vcmask 1043456
        %v798 = vsel %vm796, %v789, 0
        %800 = vmatprep.subr.bf16.mxu0 0
        %801 = vmatpush1.bf16.msra.mxu0 0
        %802 = vmatprep.subr.bf16.mxu0 0
        %803 = vmatpush1.bf16.msra.mxu0 0
        %804 = vmatprep.subr.bf16.mxu0 0
        %805 = vmatpush1.bf16.msra.mxu0 0
        %806 = vmatprep.subr.bf16.mxu0 0
        %807 = vmatpush1.bf16.msra.mxu0 0
        %808 = vmatprep.subr.bf16.mxu0 0
        %809 = vmatpush1.bf16.msra.mxu0 0
        %810 = vmatprep.subr.bf16.mxu0 0
        %811 = vmatpush1.bf16.msra.mxu0 0
        %812 = vmatprep.subr.bf16.mxu0 0
        %813 = vmatpush1.bf16.msra.mxu0 0
        %814 = vmatprep.subr.bf16.mxu0 0
        %815 = vmatpush1.bf16.msra.mxu0 %v798
        %816 = vmatprep.subr.bf16.mxu0 0
        %817 = vmatpush2.bf16.msra.mxu0 0
        %818 = vmatprep.subr.bf16.mxu0 0
        %819 = vmatpush2.bf16.msra.mxu0 0
        %820 = vmatprep.subr.bf16.mxu0 0
        %821 = vmatpush2.bf16.msra.mxu0 0
        %822 = vmatprep.subr.bf16.mxu0 0
        %823 = vmatpush2.bf16.msra.mxu0 0
        %824 = vmatprep.subr.bf16.mxu0 0
        %825 = vmatpush2.bf16.msra.mxu0 0
        %826 = vmatprep.subr.bf16.mxu0 0
        %827 = vmatpush2.bf16.msra.mxu0 0
        %828 = vmatprep.subr.bf16.mxu0 0
        %829 = vmatpush2.bf16.msra.mxu0 0
        %830 = vmatprep.subr.bf16.mxu0 0
        %831 = vmatpush2.bf16.msra.mxu0 0
        %832 = vmatprep.mubr.bf16.mxu0 0
        %833 = vmatmul.mubr.bf16.gmra.mxu0 %v794
        %v834 = vpop.f32.mrf.mxu0
        %v835 = vadd.f32 0.0, %v834
        %v836 = vpop.f32.mrf.mxu0
        %v837 = vpop.f32.mrf.mxu0
        %v838 = vpop.f32.mrf.mxu0
        %839 = vdwg.mxu0
        %v841 = vsel %vm468, %v786, 0
        %v844 = vsel %vm796, %v790, 0
        %846 = vmatprep.subr.bf16.mxu0 0
        %847 = vmatpush1.bf16.msra.mxu0 0
        %848 = vmatprep.subr.bf16.mxu0 0
        %849 = vmatpush1.bf16.msra.mxu0 0
        %850 = vmatprep.subr.bf16.mxu0 0
        %851 = vmatpush1.bf16.msra.mxu0 0
        %852 = vmatprep.subr.bf16.mxu0 0
        %853 = vmatpush1.bf16.msra.mxu0 0
        %854 = vmatprep.subr.bf16.mxu0 0
        %855 = vmatpush1.bf16.msra.mxu0 0
        %856 = vmatprep.subr.bf16.mxu0 0
        %857 = vmatpush1.bf16.msra.mxu0 0
        %858 = vmatprep.subr.bf16.mxu0 0
        %859 = vmatpush1.bf16.msra.mxu0 0
        %860 = vmatprep.subr.bf16.mxu0 0
        %861 = vmatpush1.bf16.msra.mxu0 %v844
        %862 = vmatprep.subr.bf16.mxu0 0
        %863 = vmatpush2.bf16.msra.mxu0 0
        %864 = vmatprep.subr.bf16.mxu0 0
        %865 = vmatpush2.bf16.msra.mxu0 0
        %866 = vmatprep.subr.bf16.mxu0 0
        %867 = vmatpush2.bf16.msra.mxu0 0
        %868 = vmatprep.subr.bf16.mxu0 0
        %869 = vmatpush2.bf16.msra.mxu0 0
        %870 = vmatprep.subr.bf16.mxu0 0
        %871 = vmatpush2.bf16.msra.mxu0 0
        %872 = vmatprep.subr.bf16.mxu0 0
        %873 = vmatpush2.bf16.msra.mxu0 0
        %874 = vmatprep.subr.bf16.mxu0 0
        %875 = vmatpush2.bf16.msra.mxu0 0
        %876 = vmatprep.subr.bf16.mxu0 0
        %877 = vmatpush2.bf16.msra.mxu0 0
        %878 = vmatprep.mubr.bf16.mxu0 0
        %879 = vmatmul.mubr.bf16.gmra.mxu0 %v841
        %v880 = vpop.f32.mrf.mxu0
        %v881 = vadd.f32 0.0, %v880
        %v882 = vpop.f32.mrf.mxu0
        %v883 = vpop.f32.mrf.mxu0
        %v884 = vpop.f32.mrf.mxu0
        %885 = vdwg.mxu0
        %v887 = vsel %vm468, %v787, 0
        %v890 = vsel %vm796, %v791, 0
        %892 = vmatprep.subr.bf16.mxu0 0
        %893 = vmatpush1.bf16.msra.mxu0 0
        %894 = vmatprep.subr.bf16.mxu0 0
        %895 = vmatpush1.bf16.msra.mxu0 0
        %896 = vmatprep.subr.bf16.mxu0 0
        %897 = vmatpush1.bf16.msra.mxu0 0
        %898 = vmatprep.subr.bf16.mxu0 0
        %899 = vmatpush1.bf16.msra.mxu0 0
        %900 = vmatprep.subr.bf16.mxu0 0
        %901 = vmatpush1.bf16.msra.mxu0 0
        %902 = vmatprep.subr.bf16.mxu0 0
        %903 = vmatpush1.bf16.msra.mxu0 0
        %904 = vmatprep.subr.bf16.mxu0 0
        %905 = vmatpush1.bf16.msra.mxu0 0
        %906 = vmatprep.subr.bf16.mxu0 0
        %907 = vmatpush1.bf16.msra.mxu0 %v890
        %908 = vmatprep.subr.bf16.mxu0 0
        %909 = vmatpush2.bf16.msra.mxu0 0
        %910 = vmatprep.subr.bf16.mxu0 0
        %911 = vmatpush2.bf16.msra.mxu0 0
        %912 = vmatprep.subr.bf16.mxu0 0
        %913 = vmatpush2.bf16.msra.mxu0 0
        %914 = vmatprep.subr.bf16.mxu0 0
        %915 = vmatpush2.bf16.msra.mxu0 0
        %916 = vmatprep.subr.bf16.mxu0 0
        %917 = vmatpush2.bf16.msra.mxu0 0
        %918 = vmatprep.subr.bf16.mxu0 0
        %919 = vmatpush2.bf16.msra.mxu0 0
        %920 = vmatprep.subr.bf16.mxu0 0
        %921 = vmatpush2.bf16.msra.mxu0 0
        %922 = vmatprep.subr.bf16.mxu0 0
        %923 = vmatpush2.bf16.msra.mxu0 0
        %924 = vmatprep.mubr.bf16.mxu0 0
        %925 = vmatmul.mubr.bf16.gmra.mxu0 %v887
        %v926 = vpop.f32.mrf.mxu0
        %v927 = vadd.f32 0.0, %v926
        %v928 = vpop.f32.mrf.mxu0
        %v929 = vpop.f32.mrf.mxu0
        %v930 = vpop.f32.mrf.mxu0
        %931 = vdwg.mxu0
        %v933 = vsel %vm468, %v788, 0
        %v936 = vsel %vm796, %v792, 0
        %938 = vmatprep.subr.bf16.mxu0 0
        %939 = vmatpush1.bf16.msra.mxu0 0
        %940 = vmatprep.subr.bf16.mxu0 0
        %941 = vmatpush1.bf16.msra.mxu0 0
        %942 = vmatprep.subr.bf16.mxu0 0
        %943 = vmatpush1.bf16.msra.mxu0 0
        %944 = vmatprep.subr.bf16.mxu0 0
        %945 = vmatpush1.bf16.msra.mxu0 0
        %946 = vmatprep.subr.bf16.mxu0 0
        %947 = vmatpush1.bf16.msra.mxu0 0
        %948 = vmatprep.subr.bf16.mxu0 0
        %949 = vmatpush1.bf16.msra.mxu0 0
        %950 = vmatprep.subr.bf16.mxu0 0
        %951 = vmatpush1.bf16.msra.mxu0 0
        %952 = vmatprep.subr.bf16.mxu0 0
        %953 = vmatpush1.bf16.msra.mxu0 %v936
        %954 = vmatprep.subr.bf16.mxu0 0
        %955 = vmatpush2.bf16.msra.mxu0 0
        %956 = vmatprep.subr.bf16.mxu0 0
        %957 = vmatpush2.bf16.msra.mxu0 0
        %958 = vmatprep.subr.bf16.mxu0 0
        %959 = vmatpush2.bf16.msra.mxu0 0
        %960 = vmatprep.subr.bf16.mxu0 0
        %961 = vmatpush2.bf16.msra.mxu0 0
        %962 = vmatprep.subr.bf16.mxu0 0
        %963 = vmatpush2.bf16.msra.mxu0 0
        %964 = vmatprep.subr.bf16.mxu0 0
        %965 = vmatpush2.bf16.msra.mxu0 0
        %966 = vmatprep.subr.bf16.mxu0 0
        %967 = vmatpush2.bf16.msra.mxu0 0
        %968 = vmatprep.subr.bf16.mxu0 0
        %969 = vmatpush2.bf16.msra.mxu0 0
        %970 = vmatprep.mubr.bf16.mxu0 0
        %971 = vmatmul.mubr.bf16.gmra.mxu0 %v933
        %v972 = vpop.f32.mrf.mxu0
        %v973 = vadd.f32 0.0, %v972
        %v974 = vpop.f32.mrf.mxu0
        %v975 = vpop.f32.mrf.mxu0
        %v976 = vpop.f32.mrf.mxu0
        %977 = vdwg.mxu0
        %v978 = vadd.f32 %v781, %v835
        %v979 = vadd.f32 %v782, %v881
        %v980 = vadd.f32 %v783, %v927
        %v981 = vadd.f32 %v784, %v973
        %982 = vst.msk [vmem:[#allocation4] sm:$0xff] %vm468, %v978
        %983 = vst.msk [vmem:[#allocation4 + $0x8] sm:$0xff] %vm468, %v979
        %984 = vst.msk [vmem:[#allocation4 + $0x10] sm:$0xff] %vm468, %v980
        %985 = vst.msk [vmem:[#allocation4 + $0x18] sm:$0xff] %vm468, %v981
        %986 = vst.msk [vmem:[#allocation2] sm:$0xff] %vm752, %v680
        %987 = vst.msk [vmem:[#allocation2 + $0x8] sm:$0xff] %vm752, %v681
        %988 = vst.msk [vmem:[#allocation2 + $0x10] sm:$0xff] %vm752, %v682
        %989 = vst.msk [vmem:[#allocation2 + $0x18] sm:$0xff] %vm752, %v683
        // Predicated region
        $region69: #{tpu_custom_call.1} parent=43 // pred_check
          %p990 = pneg %p438
        $region70: #{tpu_custom_call.1} parent=43 // pred_check_branch
          %992 = sbr.rel (%p990) target = $region72
        $region71: #{tpu_custom_call.1} parent=43 // pred_region
          %v993 = vld [vmem:[#allocation4] sm:$0xff]
          %v994 = vld [vmem:[#allocation4 + $0x8] sm:$0xff]
          %v995 = vld [vmem:[#allocation4 + $0x10] sm:$0xff]
          %v996 = vld [vmem:[#allocation4 + $0x18] sm:$0xff]
          %v997 = vld [vmem:[#allocation3] sm:$0xff]
          %v998 = vld [vmem:[#allocation3 + $0x8] sm:$0xff]
          %v999 = vld [vmem:[#allocation3 + $0x10] sm:$0xff]
          %v1000 = vld [vmem:[#allocation3 + $0x18] sm:$0xff]
          %v1001 = vrcp.pop %v997
          %v1002 = vrcp.pop %v998
          %v1003 = vrcp.pop %v999
          %v1004 = vrcp.pop %v1000
          %1006 = vset.pattern.permute.xlu0 0
          %1007 = vperm.xlu0 %1006, %v1001
          %v1008 = vpop.permute.xlu0 %1007
          %1011 = vset.pattern.permute.xlu0 0
          %1012 = vperm.xlu0 %1011, %v1002
          %v1013 = vpop.permute.xlu0 %1012
          %1016 = vset.pattern.permute.xlu0 0
          %1017 = vperm.xlu0 %1016, %v1003
          %v1018 = vpop.permute.xlu0 %1017
          %1021 = vset.pattern.permute.xlu0 0
          %1022 = vperm.xlu0 %1021, %v1004
          %v1023 = vpop.permute.xlu0 %1022
          %v1025 = vmul.f32 %v993, %v1008
          %v1026 = vmul.f32 %v994, %v1013
          %v1027 = vmul.f32 %v995, %v1018
          %v1028 = vmul.f32 %v996, %v1023
          %v1029 = vpack.c.bf16 %v1025, %v1025
          %v1030 = vpack.c.bf16 %v1026, %v1026
          %v1031 = vpack.c.bf16 %v1027, %v1027
          %v1032 = vpack.c.bf16 %v1028, %v1028
          %v1033 = vld [vmem:[#allocation13] sm:$0xf]
          %s1034 = scalar_lea.vmem [#allocation13], 4
          %v1035 = vld [vmem:[%s1034] sm:$0xf]
          %v1037 = vsel %vm468, %v1030, 0
          %v1040 = vsel %vm796, %v1035, 0
          %1042 = vmatprep.subr.bf16.mxu0 0
          %1043 = vmatpush1.bf16.msra.mxu0 0
          %1044 = vmatprep.subr.bf16.mxu0 0
          %1045 = vmatpush1.bf16.msra.mxu0 0
          %1046 = vmatprep.subr.bf16.mxu0 0
          %1047 = vmatpush1.bf16.msra.mxu0 0
          %1048 = vmatprep.subr.bf16.mxu0 0
          %1049 = vmatpush1.bf16.msra.mxu0 0
          %1050 = vmatprep.subr.bf16.mxu0 0
          %1051 = vmatpush1.bf16.msra.mxu0 0
          %1052 = vmatprep.subr.bf16.mxu0 0
          %1053 = vmatpush1.bf16.msra.mxu0 0
          %1054 = vmatprep.subr.bf16.mxu0 0
          %1055 = vmatpush1.bf16.msra.mxu0 0
          %1056 = vmatprep.subr.bf16.mxu0 0
          %1057 = vmatpush1.bf16.msra.mxu0 %v1040
          %1058 = vmatprep.subr.bf16.mxu0 0
          %1059 = vmatpush2.bf16.msra.mxu0 0
          %1060 = vmatprep.subr.bf16.mxu0 0
          %1061 = vmatpush2.bf16.msra.mxu0 0
          %1062 = vmatprep.subr.bf16.mxu0 0
          %1063 = vmatpush2.bf16.msra.mxu0 0
          %1064 = vmatprep.subr.bf16.mxu0 0
          %1065 = vmatpush2.bf16.msra.mxu0 0
          %1066 = vmatprep.subr.bf16.mxu0 0
          %1067 = vmatpush2.bf16.msra.mxu0 0
          %1068 = vmatprep.subr.bf16.mxu0 0
          %1069 = vmatpush2.bf16.msra.mxu0 0
          %1070 = vmatprep.subr.bf16.mxu0 0
          %1071 = vmatpush2.bf16.msra.mxu0 0
          %1072 = vmatprep.subr.bf16.mxu0 0
          %1073 = vmatpush2.bf16.msra.mxu0 0
          %1074 = vmatprep.mubr.bf16.mxu0 0
          %1075 = vmatmul.mubr.bf16.gmra.mxu0 %v1037
          %v1076 = vpop.f32.mrf.mxu0
          %v1077 = vadd.f32 0.0, %v1076
          %v1078 = vpop.f32.mrf.mxu0
          %v1079 = vpop.f32.mrf.mxu0
          %v1080 = vpop.f32.mrf.mxu0
          %1081 = vdwg.mxu0
          %v1083 = vsel %vm468, %v1029, 0
          %v1086 = vsel %vm796, %v1033, 0
          %1088 = vmatprep.subr.bf16.mxu0 0
          %1089 = vmatpush1.bf16.msra.mxu0 0
          %1090 = vmatprep.subr.bf16.mxu0 0
          %1091 = vmatpush1.bf16.msra.mxu0 0
          %1092 = vmatprep.subr.bf16.mxu0 0
          %1093 = vmatpush1.bf16.msra.mxu0 0
          %1094 = vmatprep.subr.bf16.mxu0 0
          %1095 = vmatpush1.bf16.msra.mxu0 0
          %1096 = vmatprep.subr.bf16.mxu0 0
          %1097 = vmatpush1.bf16.msra.mxu0 0
          %1098 = vmatprep.subr.bf16.mxu0 0
          %1099 = vmatpush1.bf16.msra.mxu0 0
          %1100 = vmatprep.subr.bf16.mxu0 0
          %1101 = vmatpush1.bf16.msra.mxu0 0
          %1102 = vmatprep.subr.bf16.mxu0 0
          %1103 = vmatpush1.bf16.msra.mxu0 %v1086
          %1104 = vmatprep.subr.bf16.mxu0 0
          %1105 = vmatpush2.bf16.msra.mxu0 0
          %1106 = vmatprep.subr.bf16.mxu0 0
          %1107 = vmatpush2.bf16.msra.mxu0 0
          %1108 = vmatprep.subr.bf16.mxu0 0
          %1109 = vmatpush2.bf16.msra.mxu0 0
          %1110 = vmatprep.subr.bf16.mxu0 0
          %1111 = vmatpush2.bf16.msra.mxu0 0
          %1112 = vmatprep.subr.bf16.mxu0 0
          %1113 = vmatpush2.bf16.msra.mxu0 0
          %1114 = vmatprep.subr.bf16.mxu0 0
          %1115 = vmatpush2.bf16.msra.mxu0 0
          %1116 = vmatprep.subr.bf16.mxu0 0
          %1117 = vmatpush2.bf16.msra.mxu0 0
          %1118 = vmatprep.subr.bf16.mxu0 0
          %1119 = vmatpush2.bf16.msra.mxu0 0
          %1120 = vmatprep.mubr.bf16.mxu0 0
          %1121 = vmatmul.mubr.bf16.gmra.mxu0 %v1083
          %v1122 = vpop.f32.mrf.mxu0
          %v1123 = vadd.f32 %v1077, %v1122
          %v1124 = vpop.f32.mrf.mxu0
          %v1125 = vpop.f32.mrf.mxu0
          %v1126 = vpop.f32.mrf.mxu0
          %1127 = vdwg.mxu0
          %s1128 = scalar_lea.vmem [#allocation13], 8
          %v1129 = vld [vmem:[%s1128] sm:$0xf]
          %v1131 = vsel %vm468, %v1031, 0
          %v1134 = vsel %vm796, %v1129, 0
          %1136 = vmatprep.subr.bf16.mxu0 0
          %1137 = vmatpush1.bf16.msra.mxu0 0
          %1138 = vmatprep.subr.bf16.mxu0 0
          %1139 = vmatpush1.bf16.msra.mxu0 0
          %1140 = vmatprep.subr.bf16.mxu0 0
          %1141 = vmatpush1.bf16.msra.mxu0 0
          %1142 = vmatprep.subr.bf16.mxu0 0
          %1143 = vmatpush1.bf16.msra.mxu0 0
          %1144 = vmatprep.subr.bf16.mxu0 0
          %1145 = vmatpush1.bf16.msra.mxu0 0
          %1146 = vmatprep.subr.bf16.mxu0 0
          %1147 = vmatpush1.bf16.msra.mxu0 0
          %1148 = vmatprep.subr.bf16.mxu0 0
          %1149 = vmatpush1.bf16.msra.mxu0 0
          %1150 = vmatprep.subr.bf16.mxu0 0
          %1151 = vmatpush1.bf16.msra.mxu0 %v1134
          %1152 = vmatprep.subr.bf16.mxu0 0
          %1153 = vmatpush2.bf16.msra.mxu0 0
          %1154 = vmatprep.subr.bf16.mxu0 0
          %1155 = vmatpush2.bf16.msra.mxu0 0
          %1156 = vmatprep.subr.bf16.mxu0 0
          %1157 = vmatpush2.bf16.msra.mxu0 0
          %1158 = vmatprep.subr.bf16.mxu0 0
          %1159 = vmatpush2.bf16.msra.mxu0 0
          %1160 = vmatprep.subr.bf16.mxu0 0
          %1161 = vmatpush2.bf16.msra.mxu0 0
          %1162 = vmatprep.subr.bf16.mxu0 0
          %1163 = vmatpush2.bf16.msra.mxu0 0
          %1164 = vmatprep.subr.bf16.mxu0 0
          %1165 = vmatpush2.bf16.msra.mxu0 0
          %1166 = vmatprep.subr.bf16.mxu0 0
          %1167 = vmatpush2.bf16.msra.mxu0 0
          %1168 = vmatprep.mubr.bf16.mxu0 0
          %1169 = vmatmul.mubr.bf16.gmra.mxu0 %v1131
          %v1170 = vpop.f32.mrf.mxu0
          %v1171 = vadd.f32 0.0, %v1170
          %v1172 = vpop.f32.mrf.mxu0
          %v1173 = vpop.f32.mrf.mxu0
          %v1174 = vpop.f32.mrf.mxu0
          %1175 = vdwg.mxu0
          %v1176 = vadd.f32 %v1123, %v1171
          %s1177 = scalar_lea.vmem [#allocation13], 12
          %v1178 = vld [vmem:[%s1177] sm:$0xf]
          %v1180 = vsel %vm468, %v1032, 0
          %v1183 = vsel %vm796, %v1178, 0
          %1185 = vmatprep.subr.bf16.mxu0 0
          %1186 = vmatpush1.bf16.msra.mxu0 0
          %1187 = vmatprep.subr.bf16.mxu0 0
          %1188 = vmatpush1.bf16.msra.mxu0 0
          %1189 = vmatprep.subr.bf16.mxu0 0
          %1190 = vmatpush1.bf16.msra.mxu0 0
          %1191 = vmatprep.subr.bf16.mxu0 0
          %1192 = vmatpush1.bf16.msra.mxu0 0
          %1193 = vmatprep.subr.bf16.mxu0 0
          %1194 = vmatpush1.bf16.msra.mxu0 0
          %1195 = vmatprep.subr.bf16.mxu0 0
          %1196 = vmatpush1.bf16.msra.mxu0 0
          %1197 = vmatprep.subr.bf16.mxu0 0
          %1198 = vmatpush1.bf16.msra.mxu0 0
          %1199 = vmatprep.subr.bf16.mxu0 0
          %1200 = vmatpush1.bf16.msra.mxu0 %v1183
          %1201 = vmatprep.subr.bf16.mxu0 0
          %1202 = vmatpush2.bf16.msra.mxu0 0
          %1203 = vmatprep.subr.bf16.mxu0 0
          %1204 = vmatpush2.bf16.msra.mxu0 0
          %1205 = vmatprep.subr.bf16.mxu0 0
          %1206 = vmatpush2.bf16.msra.mxu0 0
          %1207 = vmatprep.subr.bf16.mxu0 0
          %1208 = vmatpush2.bf16.msra.mxu0 0
          %1209 = vmatprep.subr.bf16.mxu0 0
          %1210 = vmatpush2.bf16.msra.mxu0 0
          %1211 = vmatprep.subr.bf16.mxu0 0
          %1212 = vmatpush2.bf16.msra.mxu0 0
          %1213 = vmatprep.subr.bf16.mxu0 0
          %1214 = vmatpush2.bf16.msra.mxu0 0
          %1215 = vmatprep.subr.bf16.mxu0 0
          %1216 = vmatpush2.bf16.msra.mxu0 0
          %1217 = vmatprep.mubr.bf16.mxu0 0
          %1218 = vmatmul.mubr.bf16.gmra.mxu0 %v1180
          %v1219 = vpop.f32.mrf.mxu0
          %v1220 = vadd.f32 0.0, %v1219
          %v1221 = vpop.f32.mrf.mxu0
          %v1222 = vpop.f32.mrf.mxu0
          %v1223 = vpop.f32.mrf.mxu0
          %1224 = vdwg.mxu0
          %v1225 = vadd.f32 %v1176, %v1220
          %v1226 = vld [vmem:[%s5] sm:$0x1]
          %v1228 = vlaneseq
          %v1229 = vshrl.u32 %v1228, 7
          %v1230 = vsub.s32 0, %v1229
          %v1231 = vrot.slane %v1226, %v1230
          %v1233 = vadd.f32 %v1225, %v1231
          %vm1234 = vcmask 261120
          %1235 = vst.msk [vmem:[%s433] sm:$0xff] %vm1234, %v1233
        $region72: #{tpu_custom_call.1} parent=43 // pred_fallthru
          _
        %s1236 = sand.u32 %s214, 1
        %s1237 = scalar_lea.sflag [#allocation7], %s1236
        %s1238 = sand.u32 %s214, 1
        %s1239 = smul.addr %s1238, 8
        %s1240 = scalar_lea.vmem [#allocation14], %s1239
        // Predicated region
        $region73: #{tpu_custom_call.1} parent=43 // pred_check
          %p1241 = pneg %p224
        $region74: #{tpu_custom_call.1} parent=43 // pred_check_branch
          %1243 = sbr.rel (%p1241) target = $region76
        $region75: #{tpu_custom_call.1} parent=43 // pred_region
          %s1245 = ssub.s32 128, 128
          %1246 = vsyncadd %s1237, %s1245
          %s1247 = sadd.s32 %s35, %s34
          %s1248 = smul.addr %s1247, 128
          %s1249 = scalar_lea.hbm %s6, %s1248
          %s1251 = sshll.u32 %s1240, 4
          %s1252 = int_to_ptr.vmem [resolvable:$true] %s1251
          %1254 = dma.vmem_to_hbm [thread:$0]  %s1252, 128, %s1249, %s1237
        $region76: #{tpu_custom_call.1} parent=43 // pred_fallthru
          _
      $region44: #{tpu_custom_call.1} parent=5 // pred_fallthru
        _
      %p1255 = scmp.le.s32.totalorder 2, %s24
      // Predicated region
      $region77: #{tpu_custom_call.1} parent=5 // pred_check
        %p1256 = pneg %p1255
      $region78: #{tpu_custom_call.1} parent=5 // pred_check_branch
        %1258 = sbr.rel (%p1256) target = $region80
      $region79: #{tpu_custom_call.1} parent=5 // pred_region
        %s1259 = ssub.s32 %s24, 2
        // Predicated region
        $region81: #{tpu_custom_call.1} parent=79 // pred_check
          %p1260 = pneg %p230
        $region82: #{tpu_custom_call.1} parent=79 // pred_check_branch
          %1262 = sbr.rel (%p1260) target = $region84
        $region83: #{tpu_custom_call.1} parent=79 // pred_region
          %s1263 = sand.u32 %s215, 1
          %s1264 = scalar_lea.sflag [#allocation7], %s1263
          %s1265 = sand.u32 %s215, 1
          %s1266 = smul.addr %s1265, 8
          %s1267 = scalar_lea.vmem [#allocation14], %s1266
          %1268 = dma.done %s1264, 128
        $region84: #{tpu_custom_call.1} parent=79 // pred_fallthru
          _
      $region80: #{tpu_custom_call.1} parent=5 // pred_fallthru
        _
    $region6: #{tpu_custom_call.1} parent=1 // loop_footer
      %s28 = sadd.s32 1, %s24
    $region7: #{tpu_custom_call.1} parent=1 // loop_footer_branch
      %23 = sbr.rel target = $region3
    $region8: #{tpu_custom_call.1} parent=1 // loop_exit
      _
    %1269 = vsyncpa [#allocation6], 1
    %s1270 = scalar_lea.sflag [#allocation6], 1
    %1271 = vsyncpa %s1270, 1
    %1272 = vsyncpa [#allocation9], 1
    %s1273 = scalar_lea.sflag [#allocation9], 1
    %1274 = vsyncpa %s1273, 1
    %1275 = vsyncpa [#allocation12], 1
    %s1276 = scalar_lea.sflag [#allocation12], 1
    %1277 = vsyncpa %s1276, 1
    %1278 = vsyncpa [#allocation7], 1
    %s1279 = scalar_lea.sflag [#allocation7], 1
    %1280 = vsyncpa %s1279, 1

</llo_original>
